<compile_context>
chip_gen: v5e
topology: v5e:2x2
jax: 0.10.0
libtpu: 0.0.40
codegen_flags: <defaults>
</compile_context>

<pallas_src>
import functools

import jax
import jax.numpy as jnp
from jax import lax
from jax.experimental import pallas as pl
from jax.experimental.pallas import tpu as pltpu

NUM_FEATURES = 784
NUM_HIDDEN_1 = 128
NUM_HIDDEN_2 = 256
NUM_CLASSES = 10
BN_EPS = 1e-5

_C_PAD = 128      # 10 classes padded to 128 for lane-dense logits/probas stores
_NEG_BIG = -1e30  # bias for padded classes -> exp() == 0 in the softmax


def _round_up(x, m):
    return (x + m - 1) // m * m


def _fold_bn(s_ref, ss_ref, g_ref, beta_ref, inv_b):
    """Reduce per-shard partial sums and fold BN into (scale, shift). Tiny
    (1,H) math, recomputed per tile -- free filler under the DMA/MXU."""
    s = jnp.sum(s_ref[...], axis=0)          # (1, H)
    ss = jnp.sum(ss_ref[...], axis=0)        # (1, H)
    mean = s * inv_b
    # Single-pass E[h^2] - mean^2 variance (f32 accumulation mitigates
    # cancellation; inputs here are BN-normalized-ish activations).
    var = jnp.maximum(ss * inv_b - mean * mean, 0.0)
    scale = g_ref[...] * lax.rsqrt(var + BN_EPS)
    shift = beta_ref[...] - mean * scale
    return scale, shift


# --------------------------------------------------------------------------
# Pass 1: h1_pre = x @ W1 (bf16 MXU, f32 acc) + per-shard BN1 sum / sum-sq.
# Linear bias b1 is exactly cancelled by the training-mode BN mean
# subtraction, so it is not applied.
# --------------------------------------------------------------------------
def _layer1_kernel(x_ref, w1_ref, h1_ref, s1_ref, ss1_ref):
    @pl.when(pl.program_id(1) == 0)
    def _():
        s1_ref[...] = jnp.zeros_like(s1_ref)
        ss1_ref[...] = jnp.zeros_like(ss1_ref)

    h = jnp.dot(x_ref[...].astype(jnp.bfloat16), w1_ref[...],
                preferred_element_type=jnp.float32)
    hb = h.astype(jnp.bfloat16)          # bf16 intermediate written to HBM
    h1_ref[...] = hb
    hf = hb.astype(jnp.float32)          # stats of exactly what pass 2 reads
    s1_ref[...] += jnp.sum(hf, axis=0, keepdims=True)[None]
    ss1_ref[...] += jnp.sum(hf * hf, axis=0, keepdims=True)[None]


# --------------------------------------------------------------------------
# Pass 2: BN1 fold + ReLU + row-mask, h2_pre = h1 @ W2, per-shard BN2 stats.
# --------------------------------------------------------------------------
def _layer2_kernel(h1p_ref, mask_ref, w2_ref, s1_ref, ss1_ref, g1_ref, beta1_ref,
                   h2_ref, s2_ref, ss2_ref, *, inv_b):
    @pl.when(pl.program_id(1) == 0)
    def _():
        s2_ref[...] = jnp.zeros_like(s2_ref)
        ss2_ref[...] = jnp.zeros_like(ss2_ref)

    scale1, shift1 = _fold_bn(s1_ref, ss1_ref, g1_ref, beta1_ref, inv_b)
    h1 = jnp.maximum(h1p_ref[...].astype(jnp.float32) * scale1 + shift1, 0.0)
    # Zero padded batch rows (0/1 row mask) so they don't pollute BN2 stats.
    h1 = h1 * mask_ref[...]

    h = jnp.dot(h1.astype(jnp.bfloat16), w2_ref[...],
                preferred_element_type=jnp.float32)
    hb = h.astype(jnp.bfloat16)
    h2_ref[...] = hb
    hf = hb.astype(jnp.float32)
    s2_ref[...] += jnp.sum(hf, axis=0, keepdims=True)[None]
    ss2_ref[...] += jnp.sum(hf * hf, axis=0, keepdims=True)[None]


# --------------------------------------------------------------------------
# Pass 3: BN2 fold + ReLU + logits = h2 @ W3 + b3, softmax (lane-dense 128).
# Padded classes get bias -1e30 so exp() == 0; probas stored bf16 (item 7).
# --------------------------------------------------------------------------
def _output_kernel(h2p_ref, w3_ref, b3_ref, s2_ref, ss2_ref, g2_ref, beta2_ref,
                   logits_ref, probas_ref, *, inv_b):
    scale2, shift2 = _fold_bn(s2_ref, ss2_ref, g2_ref, beta2_ref, inv_b)
    h2 = jnp.maximum(h2p_ref[...].astype(jnp.float32) * scale2 + shift2, 0.0)

    logits = jnp.dot(h2.astype(jnp.bfloat16), w3_ref[...],
                     preferred_element_type=jnp.float32) + b3_ref[...]
    logits_ref[...] = logits

    m = jnp.max(logits, axis=1, keepdims=True)
    e = jnp.exp(logits - m)                       # padded classes -> exactly 0
    probas = e * pl.reciprocal(jnp.sum(e, axis=1, keepdims=True), approx=False)
    probas_ref[...] = probas.astype(probas_ref.dtype)


# --------------------------------------------------------------------------
# Wrapper
# --------------------------------------------------------------------------
def mlp_forward(x, params, *, tm=None):
    """x: (B, 784) float32. Returns (logits, probas), each (B, 10) float32."""
    B = x.shape[0]
    (w1, b1, g1, beta1, w2, b2, g2, beta2, w3, b3) = params
    del b1, b2  # exactly cancelled by training-mode BatchNorm mean subtraction

    # --- batch tiling -------------------------------------------------------
    if tm is None:
        if B <= 1024:
            tm = _round_up(B, 8)
        else:
            nt = _round_up(pl.cdiv(B, 1024), 2)     # even tile count (v7x split)
            tm = _round_up(pl.cdiv(B, nt), 16)
    tm = _round_up(tm, 8)
    num_tiles = pl.cdiv(B, tm)
    b_pad = num_tiles * tm
    # Leading "parallel" shard axis: lets v7x split passes 1-2 over its 2 TCs.
    n_shards = 2 if (num_tiles >= 2 and num_tiles % 2 == 0) else 1
    tiles_per_shard = num_tiles // n_shards
    inv_b = 1.0 / B

    # --- one-time wrapper-side prep (no K pad, no x dtype repack) -----------
    xp = x if b_pad == B else jnp.pad(x, ((0, b_pad - B), (0, 0)))
    w1b = w1.astype(jnp.bfloat16)
    w2b = w2.astype(jnp.bfloat16)
    w3b = jnp.pad(w3, ((0, 0), (0, _C_PAD - NUM_CLASSES))).astype(jnp.bfloat16)
    b3p = jnp.pad(b3, ((0, 0), (0, _C_PAD - NUM_CLASSES)),
                  constant_values=_NEG_BIG).astype(jnp.float32)
    # 0/1 row-validity mask (zeros only on the padded tail rows).
    mask = (jnp.arange(b_pad, dtype=jnp.int32) < B).astype(jnp.float32)
    mask = mask.reshape(b_pad, 1)

    tile_idx = lambda c, j: (c * tiles_per_shard + j, 0)
    shard_stat = lambda c, j: (c, 0, 0)
    full2 = lambda shape: pl.BlockSpec(shape, lambda c, j: (0, 0))
    full3 = lambda shape: pl.BlockSpec(shape, lambda c, j: (0, 0, 0))

    # ---- pass 1 -------------------------------------------------------------
    h1_pre, s1, ss1 = pl.pallas_call(
        _layer1_kernel,
        grid_spec=pltpu.PrefetchScalarGridSpec(
            num_scalar_prefetch=0,
            grid=(n_shards, tiles_per_shard),
            in_specs=[pl.BlockSpec((tm, NUM_FEATURES), tile_idx),
                      full2((NUM_FEATURES, NUM_HIDDEN_1))],
            out_specs=(pl.BlockSpec((tm, NUM_HIDDEN_1), tile_idx),
                       pl.BlockSpec((1, 1, NUM_HIDDEN_1), shard_stat),
                       pl.BlockSpec((1, 1, NUM_HIDDEN_1), shard_stat))),
        out_shape=(jax.ShapeDtypeStruct((b_pad, NUM_HIDDEN_1), jnp.bfloat16),
                   jax.ShapeDtypeStruct((n_shards, 1, NUM_HIDDEN_1), jnp.float32),
                   jax.ShapeDtypeStruct((n_shards, 1, NUM_HIDDEN_1), jnp.float32)),
        compiler_params=pltpu.CompilerParams(
            dimension_semantics=("parallel", "arbitrary")),
    )(xp, w1b)

    # ---- pass 2 -------------------------------------------------------------
    k2 = functools.partial(_layer2_kernel, inv_b=inv_b)
    h2_pre, s2, ss2 = pl.pallas_call(
        k2,
        grid_spec=pltpu.PrefetchScalarGridSpec(
            num_scalar_prefetch=0,
            grid=(n_shards, tiles_per_shard),
            in_specs=[pl.BlockSpec((tm, NUM_HIDDEN_1), tile_idx),
                      pl.BlockSpec((tm, 1), tile_idx),
                      full2((NUM_HIDDEN_1, NUM_HIDDEN_2)),
                      full3((n_shards, 1, NUM_HIDDEN_1)),
                      full3((n_shards, 1, NUM_HIDDEN_1)),
                      full2((1, NUM_HIDDEN_1)),
                      full2((1, NUM_HIDDEN_1))],
            out_specs=(pl.BlockSpec((tm, NUM_HIDDEN_2), tile_idx),
                       pl.BlockSpec((1, 1, NUM_HIDDEN_2), shard_stat),
                       pl.BlockSpec((1, 1, NUM_HIDDEN_2), shard_stat))),
        out_shape=(jax.ShapeDtypeStruct((b_pad, NUM_HIDDEN_2), jnp.bfloat16),
                   jax.ShapeDtypeStruct((n_shards, 1, NUM_HIDDEN_2), jnp.float32),
                   jax.ShapeDtypeStruct((n_shards, 1, NUM_HIDDEN_2), jnp.float32)),
        compiler_params=pltpu.CompilerParams(
            dimension_semantics=("parallel", "arbitrary")),
    )(h1_pre, mask, w2b, s1, ss1, g1, beta1)

    # ---- pass 3 (no resident state -> flat fully-parallel batch axis) -------
    k3 = functools.partial(_output_kernel, inv_b=inv_b)
    logits_p, probas_p = pl.pallas_call(
        k3,
        grid_spec=pltpu.PrefetchScalarGridSpec(
            num_scalar_prefetch=0,
            grid=(num_tiles,),
            in_specs=[pl.BlockSpec((tm, NUM_HIDDEN_2), lambda i: (i, 0)),
                      pl.BlockSpec((NUM_HIDDEN_2, _C_PAD), lambda i: (0, 0)),
                      pl.BlockSpec((1, _C_PAD), lambda i: (0, 0)),
                      pl.BlockSpec((n_shards, 1, NUM_HIDDEN_2), lambda i: (0, 0, 0)),
                      pl.BlockSpec((n_shards, 1, NUM_HIDDEN_2), lambda i: (0, 0, 0)),
                      pl.BlockSpec((1, NUM_HIDDEN_2), lambda i: (0, 0)),
                      pl.BlockSpec((1, NUM_HIDDEN_2), lambda i: (0, 0))],
            out_specs=(pl.BlockSpec((tm, _C_PAD), lambda i: (i, 0)),
                       pl.BlockSpec((tm, _C_PAD), lambda i: (i, 0)))),
        out_shape=(jax.ShapeDtypeStruct((b_pad, _C_PAD), jnp.float32),
                   jax.ShapeDtypeStruct((b_pad, _C_PAD), jnp.bfloat16)),
        compiler_params=pltpu.CompilerParams(
            dimension_semantics=("parallel",)),
    )(h2_pre, w3b, b3p, s2, ss2, g2, beta2)

    logits = logits_p[:B, :NUM_CLASSES]
    probas = probas_p[:B, :NUM_CLASSES].astype(jnp.float32)
    return logits, probas


# --------------------------------------------------------------------------
# Parameters & reference
# --------------------------------------------------------------------------
def init_params(key):
    """Matches the PyTorch __init__: weights ~ Normal(0, 0.1), biases zero,
    BN gamma=1 / beta=0. Linear weights stored as (in, out) = W^T."""
    k1, k2, k3 = jax.random.split(key, 3)
    w1 = jax.random.normal(k1, (NUM_FEATURES, NUM_HIDDEN_1), jnp.float32) * 0.1
    b1 = jnp.zeros((1, NUM_HIDDEN_1), jnp.float32)
    g1 = jnp.ones((1, NUM_HIDDEN_1), jnp.float32)
    beta1 = jnp.zeros((1, NUM_HIDDEN_1), jnp.float32)

    w2 = jax.random.normal(k2, (NUM_HIDDEN_1, NUM_HIDDEN_2), jnp.float32) * 0.1
    b2 = jnp.zeros((1, NUM_HIDDEN_2), jnp.float32)
    g2 = jnp.ones((1, NUM_HIDDEN_2), jnp.float32)
    beta2 = jnp.zeros((1, NUM_HIDDEN_2), jnp.float32)

    w3 = jax.random.normal(k3, (NUM_HIDDEN_2, NUM_CLASSES), jnp.float32) * 0.1
    b3 = jnp.zeros((1, NUM_CLASSES), jnp.float32)

    return (w1, b1, g1, beta1, w2, b2, g2, beta2, w3, b3)


def _reference_mixed(x, params):
    """Pure-JAX reference using the same mixed-precision recipe as the kernels
    (bf16 MXU operands, f32 accumulation, bf16-rounded intermediates,
    bias-free BN layers)."""
    w1, b1, g1, beta1, w2, b2, g2, beta2, w3, b3 = params
    bf = jnp.bfloat16

    def bn(hb, g, beta):
        h = hb.astype(jnp.float32)
        mean = jnp.mean(h, axis=0, keepdims=True)
        var = jnp.maximum(jnp.mean(h * h, axis=0, keepdims=True) - mean * mean, 0.0)
        scale = g * lax.rsqrt(var + BN_EPS)
        return h * scale + (beta - mean * scale)

    h1 = jnp.dot(x.astype(bf), w1.astype(bf),
                 preferred_element_type=jnp.float32).astype(bf)
    a1 = jnp.maximum(bn(h1, g1, beta1), 0.0)
    h2 = jnp.dot(a1.astype(bf), w2.astype(bf),
                 preferred_element_type=jnp.float32).astype(bf)
    a2 = jnp.maximum(bn(h2, g2, beta2), 0.0)
    logits = jnp.dot(a2.astype(bf), w3.astype(bf),
                     preferred_element_type=jnp.float32) + b3
    return logits, jax.nn.softmax(logits, axis=1)


if __name__ == "__main__":
    key = jax.random.PRNGKey(0)
    kx, kp = jax.random.split(key)

    B = 200   # not a multiple of the tile -> exercises batch padding + mask
    TM = 64   # 4 tiles, 2 shards -> exercises BN-stat partials + accumulation
    x = jax.random.normal(kx, (B, NUM_FEATURES), jnp.float32)
    params = init_params(kp)

    fwd = jax.jit(functools.partial(mlp_forward, tm=TM))
    logits, probas = fwd(x, params)
    jax.block_until_ready((logits, probas))

    assert logits.shape == (B, NUM_CLASSES)
    assert probas.shape == (B, NUM_CLASSES)

    ref_logits, ref_probas = _reference_mixed(x, params)
    assert jnp.allclose(logits, ref_logits, atol=1e-2, rtol=1e-2), \
        float(jnp.max(jnp.abs(logits - ref_logits)))
    assert jnp.allclose(probas, ref_probas, atol=1e-2, rtol=5e-2), \
        float(jnp.max(jnp.abs(probas - ref_probas)))
    assert jnp.allclose(probas.sum(axis=1), 1.0, atol=2e-2)
    assert bool(jnp.all(jnp.isfinite(logits)))
    assert bool(jnp.all(jnp.isfinite(probas)))

    print("KERNEL_OK")
</pallas_src>

<mosaic_0001>
module attributes {stable_mosaic.version = 11 : i64} {
  func.func @_layer1_kernel(%arg0: i32, %arg1: i32, %arg2: memref<64x784xf32, #tpu.memory_space<vmem>>, %arg3: memref<784x128xbf16, #tpu.memory_space<vmem>>, %arg4: memref<64x128xbf16, #tpu.memory_space<vmem>>, %arg5: memref<1x1x128xf32, #tpu.memory_space<vmem>>, %arg6: memref<1x1x128xf32, #tpu.memory_space<vmem>>) attributes {dimension_semantics = [#tpu.dimension_semantics<parallel>, #tpu.dimension_semantics<arbitrary>], iteration_bounds = array<i64: 2, 2>, scalar_prefetch = 0 : i64, scratch_operands = 0 : i64, tpu.core_type = #tpu.core_type<tc>, window_params = [{transform_indices = @transform_0, window_bounds = array<i64: 64, 784>}, {pipeline_mode = #tpu.pipeline_mode<synchronous>, transform_indices = @transform_1, window_bounds = array<i64: 784, 128>}, {transform_indices = @transform_2, window_bounds = array<i64: 64, 128>}, {transform_indices = @transform_3, window_bounds = array<i64: 1, 1, 128>}, {transform_indices = @transform_4, window_bounds = array<i64: 1, 1, 128>}]} {
    %c0_i32 = arith.constant 0 : i32
    %0 = arith.cmpi eq, %arg1, %c0_i32 : i32
    %1 = arith.extui %0 : i1 to i32
    %c0_i32_0 = arith.constant 0 : i32
    %2 = arith.cmpi ne, %1, %c0_i32_0 : i32
    scf.if %2 {
      %cst_20 = arith.constant 0.000000e+00 : f32
      %23 = vector.broadcast %cst_20 : f32 to vector<1x1x128xf32>
      %c0_21 = arith.constant 0 : index
      %c0_22 = arith.constant 0 : index
      %c0_23 = arith.constant 0 : index
      %24 = vector.load %arg5[%c0_21, %c0_22, %c0_23] : memref<1x1x128xf32, #tpu.memory_space<vmem>>, vector<1x1x128xf32>
      tpu.vector_store %arg5[%c0_21, %c0_22, %c0_23], %23 {strides = array<i32>} : memref<1x1x128xf32, #tpu.memory_space<vmem>>, vector<1x1x128xf32>,
      %cst_24 = arith.constant 0.000000e+00 : f32
      %25 = vector.broadcast %cst_24 : f32 to vector<1x1x128xf32>
      %c0_25 = arith.constant 0 : index
      %c0_26 = arith.constant 0 : index
      %c0_27 = arith.constant 0 : index
      %26 = vector.load %arg6[%c0_25, %c0_26, %c0_27] : memref<1x1x128xf32, #tpu.memory_space<vmem>>, vector<1x1x128xf32>
      tpu.vector_store %arg6[%c0_25, %c0_26, %c0_27], %25 {strides = array<i32>} : memref<1x1x128xf32, #tpu.memory_space<vmem>>, vector<1x1x128xf32>,
    } else {
    }
    %c0 = arith.constant 0 : index
    %c0_1 = arith.constant 0 : index
    %3 = vector.load %arg2[%c0, %c0_1] : memref<64x784xf32, #tpu.memory_space<vmem>>, vector<64x784xf32>
    %4 = arith.truncf %3 : vector<64x784xf32> to vector<64x784xbf16>
    %c0_2 = arith.constant 0 : index
    %c0_3 = arith.constant 0 : index
    %5 = vector.load %arg3[%c0_2, %c0_3] : memref<784x128xbf16, #tpu.memory_space<vmem>>, vector<784x128xbf16>
    %cst = arith.constant dense<0.000000e+00> : vector<64x128xf32>
    %6 = tpu.matmul %4, %5, %cst {dimension_numbers = #tpu.dot_dimension_numbers<[1], [0], [0], [1], [0, 0, 1, 1], [], []>} : vector<64x784xbf16>, vector<784x128xbf16>, vector<64x128xf32> -> vector<64x128xf32>
    %7 = arith.truncf %6 : vector<64x128xf32> to vector<64x128xbf16>
    %c0_4 = arith.constant 0 : index
    %c0_5 = arith.constant 0 : index
    %8 = vector.load %arg4[%c0_4, %c0_5] : memref<64x128xbf16, #tpu.memory_space<vmem>>, vector<64x128xbf16>
    tpu.vector_store %arg4[%c0_4, %c0_5], %7 {strides = array<i32>} : memref<64x128xbf16, #tpu.memory_space<vmem>>, vector<64x128xbf16>,
    %9 = arith.extf %7 : vector<64x128xbf16> to vector<64x128xf32>
    %c0_6 = arith.constant 0 : index
    %c0_7 = arith.constant 0 : index
    %c0_8 = arith.constant 0 : index
    %10 = vector.load %arg5[%c0_6, %c0_7, %c0_8] : memref<1x1x128xf32, #tpu.memory_space<vmem>>, vector<1x1x128xf32>
    %cst_9 = arith.constant dense<0.000000e+00> : vector<128xf32>
    %11 = vector.multi_reduction <add>, %9, %cst_9 [0] : vector<64x128xf32> to vector<128xf32>
    %12 = vector.shape_cast %11 : vector<128xf32> to vector<1x128xf32>
    %13 = vector.shape_cast %12 : vector<1x128xf32> to vector<1x1x128xf32>
    %14 = arith.addf %10, %13 : vector<1x1x128xf32>
    %c0_10 = arith.constant 0 : index
    %c0_11 = arith.constant 0 : index
    %c0_12 = arith.constant 0 : index
    %15 = vector.load %arg5[%c0_10, %c0_11, %c0_12] : memref<1x1x128xf32, #tpu.memory_space<vmem>>, vector<1x1x128xf32>
    tpu.vector_store %arg5[%c0_10, %c0_11, %c0_12], %14 {strides = array<i32>} : memref<1x1x128xf32, #tpu.memory_space<vmem>>, vector<1x1x128xf32>,
    %c0_13 = arith.constant 0 : index
    %c0_14 = arith.constant 0 : index
    %c0_15 = arith.constant 0 : index
    %16 = vector.load %arg6[%c0_13, %c0_14, %c0_15] : memref<1x1x128xf32, #tpu.memory_space<vmem>>, vector<1x1x128xf32>
    %17 = arith.mulf %9, %9 : vector<64x128xf32>
    %cst_16 = arith.constant dense<0.000000e+00> : vector<128xf32>
    %18 = vector.multi_reduction <add>, %17, %cst_16 [0] : vector<64x128xf32> to vector<128xf32>
    %19 = vector.shape_cast %18 : vector<128xf32> to vector<1x128xf32>
    %20 = vector.shape_cast %19 : vector<1x128xf32> to vector<1x1x128xf32>
    %21 = arith.addf %16, %20 : vector<1x1x128xf32>
    %c0_17 = arith.constant 0 : index
    %c0_18 = arith.constant 0 : index
    %c0_19 = arith.constant 0 : index
    %22 = vector.load %arg6[%c0_17, %c0_18, %c0_19] : memref<1x1x128xf32, #tpu.memory_space<vmem>>, vector<1x1x128xf32>
    tpu.vector_store %arg6[%c0_17, %c0_18, %c0_19], %21 {strides = array<i32>} : memref<1x1x128xf32, #tpu.memory_space<vmem>>, vector<1x1x128xf32>,
    return
  }
  func.func @transform_0(%arg0: i32, %arg1: i32) -> (i32, i32) {
    %c2_i32 = arith.constant 2 : i32
    %0 = arith.muli %arg0, %c2_i32 : i32
    %1 = arith.addi %0, %arg1 : i32
    %c0_i32 = arith.constant 0 : i32
    %c0_i32_0 = arith.constant 0 : i32
    return %1, %c0_i32 : i32, i32
  }
  func.func @transform_1(%arg0: i32, %arg1: i32) -> (i32, i32) {
    %c0_i32 = arith.constant 0 : i32
    %c0_i32_0 = arith.constant 0 : i32
    %c0_i32_1 = arith.constant 0 : i32
    return %c0_i32, %c0_i32_0 : i32, i32
  }
  func.func @transform_2(%arg0: i32, %arg1: i32) -> (i32, i32) {
    %c2_i32 = arith.constant 2 : i32
    %0 = arith.muli %arg0, %c2_i32 : i32
    %1 = arith.addi %0, %arg1 : i32
    %c0_i32 = arith.constant 0 : i32
    %c0_i32_0 = arith.constant 0 : i32
    return %1, %c0_i32 : i32, i32
  }
  func.func @transform_3(%arg0: i32, %arg1: i32) -> (i32, i32, i32) {
    %c0_i32 = arith.constant 0 : i32
    %c0_i32_0 = arith.constant 0 : i32
    %c0_i32_1 = arith.constant 0 : i32
    return %arg0, %c0_i32, %c0_i32_0 : i32, i32, i32
  }
  func.func @transform_4(%arg0: i32, %arg1: i32) -> (i32, i32, i32) {
    %c0_i32 = arith.constant 0 : i32
    %c0_i32_0 = arith.constant 0 : i32
    %c0_i32_1 = arith.constant 0 : i32
    return %arg0, %c0_i32, %c0_i32_0 : i32, i32, i32
  }
}

module attributes {stable_mosaic.version = 11 : i64} {
  func.func @_layer2_kernel(%arg0: i32, %arg1: i32, %arg2: memref<64x128xbf16, #tpu.memory_space<vmem>>, %arg3: memref<64x1xf32, #tpu.memory_space<vmem>>, %arg4: memref<128x256xbf16, #tpu.memory_space<vmem>>, %arg5: memref<2x1x128xf32, #tpu.memory_space<vmem>>, %arg6: memref<2x1x128xf32, #tpu.memory_space<vmem>>, %arg7: memref<1x128xf32, #tpu.memory_space<vmem>>, %arg8: memref<1x128xf32, #tpu.memory_space<vmem>>, %arg9: memref<64x256xbf16, #tpu.memory_space<vmem>>, %arg10: memref<1x1x256xf32, #tpu.memory_space<vmem>>, %arg11: memref<1x1x256xf32, #tpu.memory_space<vmem>>) attributes {dimension_semantics = [#tpu.dimension_semantics<parallel>, #tpu.dimension_semantics<arbitrary>], iteration_bounds = array<i64: 2, 2>, scalar_prefetch = 0 : i64, scratch_operands = 0 : i64, tpu.core_type = #tpu.core_type<tc>, window_params = [{transform_indices = @transform_0, window_bounds = array<i64: 64, 128>}, {transform_indices = @transform_1, window_bounds = array<i64: 64, 1>}, {pipeline_mode = #tpu.pipeline_mode<synchronous>, transform_indices = @transform_2, window_bounds = array<i64: 128, 256>}, {pipeline_mode = #tpu.pipeline_mode<synchronous>, transform_indices = @transform_3, window_bounds = array<i64: 2, 1, 128>}, {pipeline_mode = #tpu.pipeline_mode<synchronous>, transform_indices = @transform_4, window_bounds = array<i64: 2, 1, 128>}, {pipeline_mode = #tpu.pipeline_mode<synchronous>, transform_indices = @transform_5, window_bounds = array<i64: 1, 128>}, {pipeline_mode = #tpu.pipeline_mode<synchronous>, transform_indices = @transform_6, window_bounds = array<i64: 1, 128>}, {transform_indices = @transform_7, window_bounds = array<i64: 64, 256>}, {transform_indices = @transform_8, window_bounds = array<i64: 1, 1, 256>}, {transform_indices = @transform_9, window_bounds = array<i64: 1, 1, 256>}]} {
    %c0_i32 = arith.constant 0 : i32
    %0 = arith.cmpi eq, %arg1, %c0_i32 : i32
    %1 = arith.extui %0 : i1 to i32
    %c0_i32_0 = arith.constant 0 : i32
    %2 = arith.cmpi ne, %1, %c0_i32_0 : i32
    scf.if %2 {
      %cst_39 = arith.constant 0.000000e+00 : f32
      %53 = vector.broadcast %cst_39 : f32 to vector<1x1x256xf32>
      %c0_40 = arith.constant 0 : index
      %c0_41 = arith.constant 0 : index
      %c0_42 = arith.constant 0 : index
      %54 = vector.load %arg10[%c0_40, %c0_41, %c0_42] : memref<1x1x256xf32, #tpu.memory_space<vmem>>, vector<1x1x256xf32>
      tpu.vector_store %arg10[%c0_40, %c0_41, %c0_42], %53 {strides = array<i32>} : memref<1x1x256xf32, #tpu.memory_space<vmem>>, vector<1x1x256xf32>,
      %cst_43 = arith.constant 0.000000e+00 : f32
      %55 = vector.broadcast %cst_43 : f32 to vector<1x1x256xf32>
      %c0_44 = arith.constant 0 : index
      %c0_45 = arith.constant 0 : index
      %c0_46 = arith.constant 0 : index
      %56 = vector.load %arg11[%c0_44, %c0_45, %c0_46] : memref<1x1x256xf32, #tpu.memory_space<vmem>>, vector<1x1x256xf32>
      tpu.vector_store %arg11[%c0_44, %c0_45, %c0_46], %55 {strides = array<i32>} : memref<1x1x256xf32, #tpu.memory_space<vmem>>, vector<1x1x256xf32>,
    } else {
    }
    %c0 = arith.constant 0 : index
    %c0_1 = arith.constant 0 : index
    %c0_2 = arith.constant 0 : index
    %3 = vector.load %arg5[%c0, %c0_1, %c0_2] : memref<2x1x128xf32, #tpu.memory_space<vmem>>, vector<2x1x128xf32>
    %cst = arith.constant dense<0.000000e+00> : vector<1x128xf32>
    %4 = vector.multi_reduction <add>, %3, %cst [0] : vector<2x1x128xf32> to vector<1x128xf32>
    %c0_3 = arith.constant 0 : index
    %c0_4 = arith.constant 0 : index
    %c0_5 = arith.constant 0 : index
    %5 = vector.load %arg6[%c0_3, %c0_4, %c0_5] : memref<2x1x128xf32, #tpu.memory_space<vmem>>, vector<2x1x128xf32>
    %cst_6 = arith.constant dense<0.000000e+00> : vector<1x128xf32>
    %6 = vector.multi_reduction <add>, %5, %cst_6 [0] : vector<2x1x128xf32> to vector<1x128xf32>
    %cst_7 = arith.constant 5.000000e-03 : f32
    %7 = vector.broadcast %cst_7 : f32 to vector<1x128xf32>
    %8 = arith.mulf %4, %7 : vector<1x128xf32>
    %cst_8 = arith.constant 5.000000e-03 : f32
    %9 = vector.broadcast %cst_8 : f32 to vector<1x128xf32>
    %10 = arith.mulf %6, %9 : vector<1x128xf32>
    %11 = arith.mulf %8, %8 : vector<1x128xf32>
    %12 = arith.subf %10, %11 : vector<1x128xf32>
    %cst_9 = arith.constant 0.000000e+00 : f32
    %13 = vector.broadcast %cst_9 : f32 to vector<1x128xf32>
    %14 = arith.maximumf %12, %13 : vector<1x128xf32>
    %c0_10 = arith.constant 0 : index
    %c0_11 = arith.constant 0 : index
    %15 = vector.load %arg7[%c0_10, %c0_11] : memref<1x128xf32, #tpu.memory_space<vmem>>, vector<1x128xf32>
    %cst_12 = arith.constant 9.99999974E-6 : f32
    %16 = vector.broadcast %cst_12 : f32 to vector<1x128xf32>
    %17 = arith.addf %14, %16 : vector<1x128xf32>
    %18 = math.rsqrt %17 : vector<1x128xf32>
    %19 = arith.mulf %15, %18 : vector<1x128xf32>
    %c0_13 = arith.constant 0 : index
    %c0_14 = arith.constant 0 : index
    %20 = vector.load %arg8[%c0_13, %c0_14] : memref<1x128xf32, #tpu.memory_space<vmem>>, vector<1x128xf32>
    %21 = arith.mulf %8, %19 : vector<1x128xf32>
    %22 = arith.subf %20, %21 : vector<1x128xf32>
    %c0_15 = arith.constant 0 : index
    %c0_16 = arith.constant 0 : index
    %23 = vector.load %arg2[%c0_15, %c0_16] : memref<64x128xbf16, #tpu.memory_space<vmem>>, vector<64x128xbf16>
    %24 = arith.extf %23 : vector<64x128xbf16> to vector<64x128xf32>
    %25 = vector.broadcast %19 : vector<1x128xf32> to vector<64x128xf32>
    %26 = arith.mulf %24, %25 : vector<64x128xf32>
    %27 = vector.broadcast %22 : vector<1x128xf32> to vector<64x128xf32>
    %28 = arith.addf %26, %27 : vector<64x128xf32>
    %cst_17 = arith.constant 0.000000e+00 : f32
    %29 = vector.broadcast %cst_17 : f32 to vector<64x128xf32>
    %30 = arith.maximumf %28, %29 : vector<64x128xf32>
    %c0_18 = arith.constant 0 : index
    %c0_19 = arith.constant 0 : index
    %31 = vector.load %arg3[%c0_18, %c0_19] : memref<64x1xf32, #tpu.memory_space<vmem>>, vector<64x1xf32>
    %32 = vector.broadcast %31 : vector<64x1xf32> to vector<64x128xf32>
    %33 = arith.mulf %30, %32 : vector<64x128xf32>
    %34 = arith.truncf %33 : vector<64x128xf32> to vector<64x128xbf16>
    %c0_20 = arith.constant 0 : index
    %c0_21 = arith.constant 0 : index
    %35 = vector.load %arg4[%c0_20, %c0_21] : memref<128x256xbf16, #tpu.memory_space<vmem>>, vector<128x256xbf16>
    %cst_22 = arith.constant dense<0.000000e+00> : vector<64x256xf32>
    %36 = tpu.matmul %34, %35, %cst_22 {dimension_numbers = #tpu.dot_dimension_numbers<[1], [0], [0], [1], [0, 0, 1, 1], [], []>} : vector<64x128xbf16>, vector<128x256xbf16>, vector<64x256xf32> -> vector<64x256xf32>
    %37 = arith.truncf %36 : vector<64x256xf32> to vector<64x256xbf16>
    %c0_23 = arith.constant 0 : index
    %c0_24 = arith.constant 0 : index
    %38 = vector.load %arg9[%c0_23, %c0_24] : memref<64x256xbf16, #tpu.memory_space<vmem>>, vector<64x256xbf16>
    tpu.vector_store %arg9[%c0_23, %c0_24], %37 {strides = array<i32>} : memref<64x256xbf16, #tpu.memory_space<vmem>>, vector<64x256xbf16>,
    %39 = arith.extf %37 : vector<64x256xbf16> to vector<64x256xf32>
    %c0_25 = arith.constant 0 : index
    %c0_26 = arith.constant 0 : index
    %c0_27 = arith.constant 0 : index
    %40 = vector.load %arg10[%c0_25, %c0_26, %c0_27] : memref<1x1x256xf32, #tpu.memory_space<vmem>>, vector<1x1x256xf32>
    %cst_28 = arith.constant dense<0.000000e+00> : vector<256xf32>
    %41 = vector.multi_reduction <add>, %39, %cst_28 [0] : vector<64x256xf32> to vector<256xf32>
    %42 = vector.shape_cast %41 : vector<256xf32> to vector<1x256xf32>
    %43 = vector.shape_cast %42 : vector<1x256xf32> to vector<1x1x256xf32>
    %44 = arith.addf %40, %43 : vector<1x1x256xf32>
    %c0_29 = arith.constant 0 : index
    %c0_30 = arith.constant 0 : index
    %c0_31 = arith.constant 0 : index
    %45 = vector.load %arg10[%c0_29, %c0_30, %c0_31] : memref<1x1x256xf32, #tpu.memory_space<vmem>>, vector<1x1x256xf32>
    tpu.vector_store %arg10[%c0_29, %c0_30, %c0_31], %44 {strides = array<i32>} : memref<1x1x256xf32, #tpu.memory_space<vmem>>, vector<1x1x256xf32>,
    %c0_32 = arith.constant 0 : index
    %c0_33 = arith.constant 0 : index
    %c0_34 = arith.constant 0 : index
    %46 = vector.load %arg11[%c0_32, %c0_33, %c0_34] : memref<1x1x256xf32, #tpu.memory_space<vmem>>, vector<1x1x256xf32>
    %47 = arith.mulf %39, %39 : vector<64x256xf32>
    %cst_35 = arith.constant dense<0.000000e+00> : vector<256xf32>
    %48 = vector.multi_reduction <add>, %47, %cst_35 [0] : vector<64x256xf32> to vector<256xf32>
    %49 = vector.shape_cast %48 : vector<256xf32> to vector<1x256xf32>
    %50 = vector.shape_cast %49 : vector<1x256xf32> to vector<1x1x256xf32>
    %51 = arith.addf %46, %50 : vector<1x1x256xf32>
    %c0_36 = arith.constant 0 : index
    %c0_37 = arith.constant 0 : index
    %c0_38 = arith.constant 0 : index
    %52 = vector.load %arg11[%c0_36, %c0_37, %c0_38] : memref<1x1x256xf32, #tpu.memory_space<vmem>>, vector<1x1x256xf32>
    tpu.vector_store %arg11[%c0_36, %c0_37, %c0_38], %51 {strides = array<i32>} : memref<1x1x256xf32, #tpu.memory_space<vmem>>, vector<1x1x256xf32>,
    return
  }
  func.func @transform_0(%arg0: i32, %arg1: i32) -> (i32, i32) {
    %c2_i32 = arith.constant 2 : i32
    %0 = arith.muli %arg0, %c2_i32 : i32
    %1 = arith.addi %0, %arg1 : i32
    %c0_i32 = arith.constant 0 : i32
    %c0_i32_0 = arith.constant 0 : i32
    return %1, %c0_i32 : i32, i32
  }
  func.func @transform_1(%arg0: i32, %arg1: i32) -> (i32, i32) {
    %c2_i32 = arith.constant 2 : i32
    %0 = arith.muli %arg0, %c2_i32 : i32
    %1 = arith.addi %0, %arg1 : i32
    %c0_i32 = arith.constant 0 : i32
    %c0_i32_0 = arith.constant 0 : i32
    return %1, %c0_i32 : i32, i32
  }
  func.func @transform_2(%arg0: i32, %arg1: i32) -> (i32, i32) {
    %c0_i32 = arith.constant 0 : i32
    %c0_i32_0 = arith.constant 0 : i32
    %c0_i32_1 = arith.constant 0 : i32
    return %c0_i32, %c0_i32_0 : i32, i32
  }
  func.func @transform_3(%arg0: i32, %arg1: i32) -> (i32, i32, i32) {
    %c0_i32 = arith.constant 0 : i32
    %c0_i32_0 = arith.constant 0 : i32
    %c0_i32_1 = arith.constant 0 : i32
    %c0_i32_2 = arith.constant 0 : i32
    return %c0_i32, %c0_i32_0, %c0_i32_1 : i32, i32, i32
  }
  func.func @transform_4(%arg0: i32, %arg1: i32) -> (i32, i32, i32) {
    %c0_i32 = arith.constant 0 : i32
    %c0_i32_0 = arith.constant 0 : i32
    %c0_i32_1 = arith.constant 0 : i32
    %c0_i32_2 = arith.constant 0 : i32
    return %c0_i32, %c0_i32_0, %c0_i32_1 : i32, i32, i32
  }
  func.func @transform_5(%arg0: i32, %arg1: i32) -> (i32, i32) {
    %c0_i32 = arith.constant 0 : i32
    %c0_i32_0 = arith.constant 0 : i32
    %c0_i32_1 = arith.constant 0 : i32
    return %c0_i32, %c0_i32_0 : i32, i32
  }
  func.func @transform_6(%arg0: i32, %arg1: i32) -> (i32, i32) {
    %c0_i32 = arith.constant 0 : i32
    %c0_i32_0 = arith.constant 0 : i32
    %c0_i32_1 = arith.constant 0 : i32
    return %c0_i32, %c0_i32_0 : i32, i32
  }
  func.func @transform_7(%arg0: i32, %arg1: i32) -> (i32, i32) {
    %c2_i32 = arith.constant 2 : i32
    %0 = arith.muli %arg0, %c2_i32 : i32
    %1 = arith.addi %0, %arg1 : i32
    %c0_i32 = arith.constant 0 : i32
    %c0_i32_0 = arith.constant 0 : i32
    return %1, %c0_i32 : i32, i32
  }
  func.func @transform_8(%arg0: i32, %arg1: i32) -> (i32, i32, i32) {
    %c0_i32 = arith.constant 0 : i32
    %c0_i32_0 = arith.constant 0 : i32
    %c0_i32_1 = arith.constant 0 : i32
    return %arg0, %c0_i32, %c0_i32_0 : i32, i32, i32
  }
  func.func @transform_9(%arg0: i32, %arg1: i32) -> (i32, i32, i32) {
    %c0_i32 = arith.constant 0 : i32
    %c0_i32_0 = arith.constant 0 : i32
    %c0_i32_1 = arith.constant 0 : i32
    return %arg0, %c0_i32, %c0_i32_0 : i32, i32, i32
  }
}

module attributes {stable_mosaic.version = 11 : i64} {
  func.func @_output_kernel(%arg0: i32, %arg1: memref<64x256xbf16, #tpu.memory_space<vmem>>, %arg2: memref<256x128xbf16, #tpu.memory_space<vmem>>, %arg3: memref<1x128xf32, #tpu.memory_space<vmem>>, %arg4: memref<2x1x256xf32, #tpu.memory_space<vmem>>, %arg5: memref<2x1x256xf32, #tpu.memory_space<vmem>>, %arg6: memref<1x256xf32, #tpu.memory_space<vmem>>, %arg7: memref<1x256xf32, #tpu.memory_space<vmem>>, %arg8: memref<64x128xf32, #tpu.memory_space<vmem>>, %arg9: memref<64x128xbf16, #tpu.memory_space<vmem>>) attributes {dimension_semantics = [#tpu.dimension_semantics<parallel>], iteration_bounds = array<i64: 4>, scalar_prefetch = 0 : i64, scratch_operands = 0 : i64, tpu.core_type = #tpu.core_type<tc>, window_params = [{transform_indices = @transform_0, window_bounds = array<i64: 64, 256>}, {pipeline_mode = #tpu.pipeline_mode<synchronous>, transform_indices = @transform_1, window_bounds = array<i64: 256, 128>}, {pipeline_mode = #tpu.pipeline_mode<synchronous>, transform_indices = @transform_2, window_bounds = array<i64: 1, 128>}, {pipeline_mode = #tpu.pipeline_mode<synchronous>, transform_indices = @transform_3, window_bounds = array<i64: 2, 1, 256>}, {pipeline_mode = #tpu.pipeline_mode<synchronous>, transform_indices = @transform_4, window_bounds = array<i64: 2, 1, 256>}, {pipeline_mode = #tpu.pipeline_mode<synchronous>, transform_indices = @transform_5, window_bounds = array<i64: 1, 256>}, {pipeline_mode = #tpu.pipeline_mode<synchronous>, transform_indices = @transform_6, window_bounds = array<i64: 1, 256>}, {transform_indices = @transform_7, window_bounds = array<i64: 64, 128>}, {transform_indices = @transform_8, window_bounds = array<i64: 64, 128>}]} {
    %c0 = arith.constant 0 : index
    %c0_0 = arith.constant 0 : index
    %c0_1 = arith.constant 0 : index
    %0 = vector.load %arg4[%c0, %c0_0, %c0_1] : memref<2x1x256xf32, #tpu.memory_space<vmem>>, vector<2x1x256xf32>
    %cst = arith.constant dense<0.000000e+00> : vector<1x256xf32>
    %1 = vector.multi_reduction <add>, %0, %cst [0] : vector<2x1x256xf32> to vector<1x256xf32>
    %c0_2 = arith.constant 0 : index
    %c0_3 = arith.constant 0 : index
    %c0_4 = arith.constant 0 : index
    %2 = vector.load %arg5[%c0_2, %c0_3, %c0_4] : memref<2x1x256xf32, #tpu.memory_space<vmem>>, vector<2x1x256xf32>
    %cst_5 = arith.constant dense<0.000000e+00> : vector<1x256xf32>
    %3 = vector.multi_reduction <add>, %2, %cst_5 [0] : vector<2x1x256xf32> to vector<1x256xf32>
    %cst_6 = arith.constant 5.000000e-03 : f32
    %4 = vector.broadcast %cst_6 : f32 to vector<1x256xf32>
    %5 = arith.mulf %1, %4 : vector<1x256xf32>
    %cst_7 = arith.constant 5.000000e-03 : f32
    %6 = vector.broadcast %cst_7 : f32 to vector<1x256xf32>
    %7 = arith.mulf %3, %6 : vector<1x256xf32>
    %8 = arith.mulf %5, %5 : vector<1x256xf32>
    %9 = arith.subf %7, %8 : vector<1x256xf32>
    %cst_8 = arith.constant 0.000000e+00 : f32
    %10 = vector.broadcast %cst_8 : f32 to vector<1x256xf32>
    %11 = arith.maximumf %9, %10 : vector<1x256xf32>
    %c0_9 = arith.constant 0 : index
    %c0_10 = arith.constant 0 : index
    %12 = vector.load %arg6[%c0_9, %c0_10] : memref<1x256xf32, #tpu.memory_space<vmem>>, vector<1x256xf32>
    %cst_11 = arith.constant 9.99999974E-6 : f32
    %13 = vector.broadcast %cst_11 : f32 to vector<1x256xf32>
    %14 = arith.addf %11, %13 : vector<1x256xf32>
    %15 = math.rsqrt %14 : vector<1x256xf32>
    %16 = arith.mulf %12, %15 : vector<1x256xf32>
    %c0_12 = arith.constant 0 : index
    %c0_13 = arith.constant 0 : index
    %17 = vector.load %arg7[%c0_12, %c0_13] : memref<1x256xf32, #tpu.memory_space<vmem>>, vector<1x256xf32>
    %18 = arith.mulf %5, %16 : vector<1x256xf32>
    %19 = arith.subf %17, %18 : vector<1x256xf32>
    %c0_14 = arith.constant 0 : index
    %c0_15 = arith.constant 0 : index
    %20 = vector.load %arg1[%c0_14, %c0_15] : memref<64x256xbf16, #tpu.memory_space<vmem>>, vector<64x256xbf16>
    %21 = arith.extf %20 : vector<64x256xbf16> to vector<64x256xf32>
    %22 = vector.broadcast %16 : vector<1x256xf32> to vector<64x256xf32>
    %23 = arith.mulf %21, %22 : vector<64x256xf32>
    %24 = vector.broadcast %19 : vector<1x256xf32> to vector<64x256xf32>
    %25 = arith.addf %23, %24 : vector<64x256xf32>
    %cst_16 = arith.constant 0.000000e+00 : f32
    %26 = vector.broadcast %cst_16 : f32 to vector<64x256xf32>
    %27 = arith.maximumf %25, %26 : vector<64x256xf32>
    %28 = arith.truncf %27 : vector<64x256xf32> to vector<64x256xbf16>
    %c0_17 = arith.constant 0 : index
    %c0_18 = arith.constant 0 : index
    %29 = vector.load %arg2[%c0_17, %c0_18] : memref<256x128xbf16, #tpu.memory_space<vmem>>, vector<256x128xbf16>
    %cst_19 = arith.constant dense<0.000000e+00> : vector<64x128xf32>
    %30 = tpu.matmul %28, %29, %cst_19 {dimension_numbers = #tpu.dot_dimension_numbers<[1], [0], [0], [1], [0, 0, 1, 1], [], []>} : vector<64x256xbf16>, vector<256x128xbf16>, vector<64x128xf32> -> vector<64x128xf32>
    %c0_20 = arith.constant 0 : index
    %c0_21 = arith.constant 0 : index
    %31 = vector.load %arg3[%c0_20, %c0_21] : memref<1x128xf32, #tpu.memory_space<vmem>>, vector<1x128xf32>
    %32 = vector.broadcast %31 : vector<1x128xf32> to vector<64x128xf32>
    %33 = arith.addf %30, %32 : vector<64x128xf32>
    %c0_22 = arith.constant 0 : index
    %c0_23 = arith.constant 0 : index
    %34 = vector.load %arg8[%c0_22, %c0_23] : memref<64x128xf32, #tpu.memory_space<vmem>>, vector<64x128xf32>
    tpu.vector_store %arg8[%c0_22, %c0_23], %33 {strides = array<i32>} : memref<64x128xf32, #tpu.memory_space<vmem>>, vector<64x128xf32>,
    %cst_24 = arith.constant dense<0xFF800000> : vector<64xf32>
    %35 = vector.multi_reduction <maximumf>, %33, %cst_24 [1] : vector<64x128xf32> to vector<64xf32>
    %36 = vector.shape_cast %35 : vector<64xf32> to vector<64x1xf32>
    %37 = vector.broadcast %36 : vector<64x1xf32> to vector<64x128xf32>
    %38 = arith.subf %33, %37 : vector<64x128xf32>
    %39 = math.exp %38 : vector<64x128xf32>
    %cst_25 = arith.constant dense<0.000000e+00> : vector<64xf32>
    %40 = vector.multi_reduction <add>, %39, %cst_25 [1] : vector<64x128xf32> to vector<64xf32>
    %41 = vector.shape_cast %40 : vector<64xf32> to vector<64x1xf32>
    %42 = tpu.reciprocal %41 : vector<64x1xf32> -> vector<64x1xf32>
    %43 = vector.broadcast %42 : vector<64x1xf32> to vector<64x128xf32>
    %44 = arith.mulf %39, %43 : vector<64x128xf32>
    %45 = arith.truncf %44 : vector<64x128xf32> to vector<64x128xbf16>
    %c0_26 = arith.constant 0 : index
    %c0_27 = arith.constant 0 : index
    %46 = vector.load %arg9[%c0_26, %c0_27] : memref<64x128xbf16, #tpu.memory_space<vmem>>, vector<64x128xbf16>
    tpu.vector_store %arg9[%c0_26, %c0_27], %45 {strides = array<i32>} : memref<64x128xbf16, #tpu.memory_space<vmem>>, vector<64x128xbf16>,
    return
  }
  func.func @transform_0(%arg0: i32) -> (i32, i32) {
    %c0_i32 = arith.constant 0 : i32
    %c0_i32_0 = arith.constant 0 : i32
    return %arg0, %c0_i32 : i32, i32
  }
  func.func @transform_1(%arg0: i32) -> (i32, i32) {
    %c0_i32 = arith.constant 0 : i32
    %c0_i32_0 = arith.constant 0 : i32
    %c0_i32_1 = arith.constant 0 : i32
    return %c0_i32, %c0_i32_0 : i32, i32
  }
  func.func @transform_2(%arg0: i32) -> (i32, i32) {
    %c0_i32 = arith.constant 0 : i32
    %c0_i32_0 = arith.constant 0 : i32
    %c0_i32_1 = arith.constant 0 : i32
    return %c0_i32, %c0_i32_0 : i32, i32
  }
  func.func @transform_3(%arg0: i32) -> (i32, i32, i32) {
    %c0_i32 = arith.constant 0 : i32
    %c0_i32_0 = arith.constant 0 : i32
    %c0_i32_1 = arith.constant 0 : i32
    %c0_i32_2 = arith.constant 0 : i32
    return %c0_i32, %c0_i32_0, %c0_i32_1 : i32, i32, i32
  }
  func.func @transform_4(%arg0: i32) -> (i32, i32, i32) {
    %c0_i32 = arith.constant 0 : i32
    %c0_i32_0 = arith.constant 0 : i32
    %c0_i32_1 = arith.constant 0 : i32
    %c0_i32_2 = arith.constant 0 : i32
    return %c0_i32, %c0_i32_0, %c0_i32_1 : i32, i32, i32
  }
  func.func @transform_5(%arg0: i32) -> (i32, i32) {
    %c0_i32 = arith.constant 0 : i32
    %c0_i32_0 = arith.constant 0 : i32
    %c0_i32_1 = arith.constant 0 : i32
    return %c0_i32, %c0_i32_0 : i32, i32
  }
  func.func @transform_6(%arg0: i32) -> (i32, i32) {
    %c0_i32 = arith.constant 0 : i32
    %c0_i32_0 = arith.constant 0 : i32
    %c0_i32_1 = arith.constant 0 : i32
    return %c0_i32, %c0_i32_0 : i32, i32
  }
  func.func @transform_7(%arg0: i32) -> (i32, i32) {
    %c0_i32 = arith.constant 0 : i32
    %c0_i32_0 = arith.constant 0 : i32
    return %arg0, %c0_i32 : i32, i32
  }
  func.func @transform_8(%arg0: i32) -> (i32, i32) {
    %c0_i32 = arith.constant 0 : i32
    %c0_i32_0 = arith.constant 0 : i32
    return %arg0, %c0_i32 : i32, i32
  }
}

</mosaic_0001>

<llo_original>
// kernel: mlp_forward.4
$region0: #{mlp_forward.4}
  #allocation0 [shape = 'u32[]', space=smem, size = 0x4, offset = 0x4, fixed_abs, tag = 'smem constant byte address 0x4 - core index']
  #allocation1 [shape = 'u32[72,128]{1,0:T(1,128)}', space=vmem, size = 0x9000, scoped, tag = 'internal scratch']
  %s0 = inlined_call_operand.vmem [shape: bf16[256,128], index: 0, kind: input, shape index: {}]
  %s1 = inlined_call_operand.vmem [shape: f32[256,1], index: 1, kind: input, shape index: {}]
  %s2 = inlined_call_operand.vmem [shape: bf16[128,256], index: 2, kind: input, shape index: {}]
  %s3 = inlined_call_operand.vmem [shape: f32[2,1,128], index: 3, kind: input, shape index: {}]
  %s4 = inlined_call_operand.vmem [shape: f32[2,1,128], index: 4, kind: input, shape index: {}]
  %s5 = inlined_call_operand.vmem [shape: f32[1,128], index: 5, kind: input, shape index: {}]
  %s6 = inlined_call_operand.vmem [shape: f32[1,128], index: 6, kind: input, shape index: {}]
  %s7 = inlined_call_operand.vmem [shape: bf16[256,256], index: 7, kind: output, shape index: {0}]
  %s8 = inlined_call_operand.vmem [shape: f32[2,1,256], index: 8, kind: output, shape index: {1}]
  %s9 = inlined_call_operand.vmem [shape: f32[2,1,256], index: 9, kind: output, shape index: {2}]
  %10 = xla_tuple %s7, %s8, %s9
  %s11 = sld [smem:[#allocation0]]
  $region81: #{mlp_forward.4} parent=0
    _
  %s13 = ssub.s32 1, %s11
  %s14 = scalar_select 0, %s13, %s11
  loop: start=0, step=1, limit=6
  $region2: #{mlp_forward.4} parent=0 // loop_pre_header
    _
  $region3: #{mlp_forward.4} parent=0 // loop_header
    %s16 = sphi 0, %s20
    %p17 = scmp.ge.s32.totalorder %s16, 6
    %s23 = sphi 0, %s35
    %s24 = sphi 0, %s31
    %s25 = sphi 0, %s23
    %s26 = sphi 0, %s24
    %s27 = sphi 0, %s25
    %s28 = sphi 0, %s26
    %s42 = sphi 0, %s44
    %s45 = sphi 0, %s42
    %s46 = sphi 0, %s45
    %s62 = sphi 0, %s46
    %s72 = sphi 0, %s74
    %s75 = sphi 0, %s72
    %s76 = sphi 0, %s75
    %s92 = sphi 0, %s76
    %s96 = sphi 0, %s96
    %s98 = sphi 0, %s96
    %s99 = sphi 0, %s98
    %s113 = sphi 0, %s99
    %s117 = sphi 0, %s117
    %s119 = sphi 0, %s117
    %s120 = sphi 0, %s119
    %s134 = sphi 0, %s120
    %s138 = sphi 0, %s138
    %s140 = sphi 0, %s138
    %s141 = sphi 0, %s140
    %s155 = sphi 0, %s141
    %s159 = sphi 0, %s159
    %s161 = sphi 0, %s159
    %s162 = sphi 0, %s161
    %s176 = sphi 0, %s162
    %s180 = sphi 0, %s180
    %s182 = sphi 0, %s180
    %s183 = sphi 0, %s182
    %s197 = sphi 0, %s183
    %s207 = sphi 0, %s209
    %s210 = sphi 0, %s207
    %s211 = sphi 0, %s210
    %s227 = sphi 0, %s211
    %s233 = sphi 0, %s235
    %s236 = sphi 0, %s233
    %s237 = sphi 0, %s236
    %s253 = sphi 0, %s237
    %s259 = sphi 0, %s261
    %s262 = sphi 0, %s259
    %s263 = sphi 0, %s262
    %s279 = sphi 0, %s263
  $region4: #{mlp_forward.4} parent=0 // loop_header_branch
    %19 = sbr.rel (%p17) target = $region8
  $region5: #{mlp_forward.4} parent=0 // loop_body
    %s21 = ssub.s32 %s16, 1
    %s22 = ssub.s32 %s16, 2
    %s29 = sadd.s32 1, %s24
    %p30 = scmp.ge.s32.totalorder %s29, 2
    %s31 = scalar_select %p30, 0, %s29
    %s32 = sadd.s32 1, %s23
    %s33 = scalar_select %p30, %s32, %s23
    %p34 = scmp.ge.s32.totalorder %s33, 2
    %s35 = scalar_select %p34, 0, %s33
    %s36 = smul.u32 %s23, 2
    %s37 = sadd.s32 %s36, %s24
    %s38 = smul.u32 %s35, 2
    %s39 = sadd.s32 %s38, %s31
    %s40 = ssub.s32 %s37, %s39
    %p41 = scmp.eq.s32.totalorder %s40, 0
    %s43 = sadd.s32 %s42, 1
    %s44 = scalar_select %p41, %s42, %s43
    %p47 = pneg %p41
    %p48 = scmp.eq.s32.totalorder %s16, 3
    %p49 = por %p47, %p48
    %p50 = scmp.ne.s32.totalorder %s42, %s45
    %p51 = scmp.eq.s32.totalorder %s16, 0
    %p52 = por %p50, %p51
    %p53 = scmp.ne.s32.totalorder %s42, %s45
    %p54 = scmp.eq.s32.totalorder %s21, 3
    %p55 = por %p53, %p54
    %p56 = scmp.ne.s32.totalorder %s45, %s46
    %p57 = scmp.eq.s32.totalorder %s21, 0
    %p58 = por %p56, %p57
    %p59 = scmp.ne.s32.totalorder %s45, %s46
    %p60 = scmp.eq.s32.totalorder %s22, 3
    %p61 = por %p59, %p60
    %p63 = scmp.ne.s32.totalorder %s46, %s62
    %p64 = scmp.eq.s32.totalorder %s22, 0
    %p65 = por %p63, %p64
    %s66 = smul.u32 %s23, 2
    %s67 = sadd.s32 %s66, %s24
    %s68 = smul.u32 %s35, 2
    %s69 = sadd.s32 %s68, %s31
    %s70 = ssub.s32 %s67, %s69
    %p71 = scmp.eq.s32.totalorder %s70, 0
    %s73 = sadd.s32 %s72, 1
    %s74 = scalar_select %p71, %s72, %s73
    %p77 = pneg %p71
    %p78 = scmp.eq.s32.totalorder %s16, 3
    %p79 = por %p77, %p78
    %p80 = scmp.ne.s32.totalorder %s72, %s75
    %p81 = scmp.eq.s32.totalorder %s16, 0
    %p82 = por %p80, %p81
    %p83 = scmp.ne.s32.totalorder %s72, %s75
    %p84 = scmp.eq.s32.totalorder %s21, 3
    %p85 = por %p83, %p84
    %p86 = scmp.ne.s32.totalorder %s75, %s76
    %p87 = scmp.eq.s32.totalorder %s21, 0
    %p88 = por %p86, %p87
    %p89 = scmp.ne.s32.totalorder %s75, %s76
    %p90 = scmp.eq.s32.totalorder %s22, 3
    %p91 = por %p89, %p90
    %p93 = scmp.ne.s32.totalorder %s76, %s92
    %p94 = scmp.eq.s32.totalorder %s22, 0
    %p95 = por %p93, %p94
    %s97 = sadd.s32 %s96, 1
    %p100 = scmp.eq.s32.totalorder %s16, 3
    %p101 = scmp.ne.s32.totalorder %s96, %s98
    %p102 = scmp.eq.s32.totalorder %s16, 0
    %p103 = por %p101, %p102
    %p104 = scmp.ne.s32.totalorder %s96, %s98
    %p105 = scmp.eq.s32.totalorder %s21, 3
    %p106 = por %p104, %p105
    %p107 = scmp.ne.s32.totalorder %s98, %s99
    %p108 = scmp.eq.s32.totalorder %s21, 0
    %p109 = por %p107, %p108
    %p110 = scmp.ne.s32.totalorder %s98, %s99
    %p111 = scmp.eq.s32.totalorder %s22, 3
    %p112 = por %p110, %p111
    %p114 = scmp.ne.s32.totalorder %s99, %s113
    %p115 = scmp.eq.s32.totalorder %s22, 0
    %p116 = por %p114, %p115
    %s118 = sadd.s32 %s117, 1
    %p121 = scmp.eq.s32.totalorder %s16, 3
    %p122 = scmp.ne.s32.totalorder %s117, %s119
    %p123 = scmp.eq.s32.totalorder %s16, 0
    %p124 = por %p122, %p123
    %p125 = scmp.ne.s32.totalorder %s117, %s119
    %p126 = scmp.eq.s32.totalorder %s21, 3
    %p127 = por %p125, %p126
    %p128 = scmp.ne.s32.totalorder %s119, %s120
    %p129 = scmp.eq.s32.totalorder %s21, 0
    %p130 = por %p128, %p129
    %p131 = scmp.ne.s32.totalorder %s119, %s120
    %p132 = scmp.eq.s32.totalorder %s22, 3
    %p133 = por %p131, %p132
    %p135 = scmp.ne.s32.totalorder %s120, %s134
    %p136 = scmp.eq.s32.totalorder %s22, 0
    %p137 = por %p135, %p136
    %s139 = sadd.s32 %s138, 1
    %p142 = scmp.eq.s32.totalorder %s16, 3
    %p143 = scmp.ne.s32.totalorder %s138, %s140
    %p144 = scmp.eq.s32.totalorder %s16, 0
    %p145 = por %p143, %p144
    %p146 = scmp.ne.s32.totalorder %s138, %s140
    %p147 = scmp.eq.s32.totalorder %s21, 3
    %p148 = por %p146, %p147
    %p149 = scmp.ne.s32.totalorder %s140, %s141
    %p150 = scmp.eq.s32.totalorder %s21, 0
    %p151 = por %p149, %p150
    %p152 = scmp.ne.s32.totalorder %s140, %s141
    %p153 = scmp.eq.s32.totalorder %s22, 3
    %p154 = por %p152, %p153
    %p156 = scmp.ne.s32.totalorder %s141, %s155
    %p157 = scmp.eq.s32.totalorder %s22, 0
    %p158 = por %p156, %p157
    %s160 = sadd.s32 %s159, 1
    %p163 = scmp.eq.s32.totalorder %s16, 3
    %p164 = scmp.ne.s32.totalorder %s159, %s161
    %p165 = scmp.eq.s32.totalorder %s16, 0
    %p166 = por %p164, %p165
    %p167 = scmp.ne.s32.totalorder %s159, %s161
    %p168 = scmp.eq.s32.totalorder %s21, 3
    %p169 = por %p167, %p168
    %p170 = scmp.ne.s32.totalorder %s161, %s162
    %p171 = scmp.eq.s32.totalorder %s21, 0
    %p172 = por %p170, %p171
    %p173 = scmp.ne.s32.totalorder %s161, %s162
    %p174 = scmp.eq.s32.totalorder %s22, 3
    %p175 = por %p173, %p174
    %p177 = scmp.ne.s32.totalorder %s162, %s176
    %p178 = scmp.eq.s32.totalorder %s22, 0
    %p179 = por %p177, %p178
    %s181 = sadd.s32 %s180, 1
    %p184 = scmp.eq.s32.totalorder %s16, 3
    %p185 = scmp.ne.s32.totalorder %s180, %s182
    %p186 = scmp.eq.s32.totalorder %s16, 0
    %p187 = por %p185, %p186
    %p188 = scmp.ne.s32.totalorder %s180, %s182
    %p189 = scmp.eq.s32.totalorder %s21, 3
    %p190 = por %p188, %p189
    %p191 = scmp.ne.s32.totalorder %s182, %s183
    %p192 = scmp.eq.s32.totalorder %s21, 0
    %p193 = por %p191, %p192
    %p194 = scmp.ne.s32.totalorder %s182, %s183
    %p195 = scmp.eq.s32.totalorder %s22, 3
    %p196 = por %p194, %p195
    %p198 = scmp.ne.s32.totalorder %s183, %s197
    %p199 = scmp.eq.s32.totalorder %s22, 0
    %p200 = por %p198, %p199
    %s201 = smul.u32 %s23, 2
    %s202 = sadd.s32 %s201, %s24
    %s203 = smul.u32 %s35, 2
    %s204 = sadd.s32 %s203, %s31
    %s205 = ssub.s32 %s202, %s204
    %p206 = scmp.eq.s32.totalorder %s205, 0
    %s208 = sadd.s32 %s207, 1
    %s209 = scalar_select %p206, %s207, %s208
    %p212 = pneg %p206
    %p213 = scmp.eq.s32.totalorder %s16, 3
    %p214 = por %p212, %p213
    %p215 = scmp.ne.s32.totalorder %s207, %s210
    %p216 = scmp.eq.s32.totalorder %s16, 0
    %p217 = por %p215, %p216
    %p218 = scmp.ne.s32.totalorder %s207, %s210
    %p219 = scmp.eq.s32.totalorder %s21, 3
    %p220 = por %p218, %p219
    %p221 = scmp.ne.s32.totalorder %s210, %s211
    %p222 = scmp.eq.s32.totalorder %s21, 0
    %p223 = por %p221, %p222
    %p224 = scmp.ne.s32.totalorder %s210, %s211
    %p225 = scmp.eq.s32.totalorder %s22, 3
    %p226 = por %p224, %p225
    %p228 = scmp.ne.s32.totalorder %s211, %s227
    %p229 = scmp.eq.s32.totalorder %s22, 0
    %p230 = por %p228, %p229
    %s231 = ssub.s32 %s23, %s35
    %p232 = scmp.eq.s32.totalorder %s231, 0
    %s234 = sadd.s32 %s233, 1
    %s235 = scalar_select %p232, %s233, %s234
    %p238 = pneg %p232
    %p239 = scmp.eq.s32.totalorder %s16, 3
    %p240 = por %p238, %p239
    %p241 = scmp.ne.s32.totalorder %s233, %s236
    %p242 = scmp.eq.s32.totalorder %s16, 0
    %p243 = por %p241, %p242
    %p244 = scmp.ne.s32.totalorder %s233, %s236
    %p245 = scmp.eq.s32.totalorder %s21, 3
    %p246 = por %p244, %p245
    %p247 = scmp.ne.s32.totalorder %s236, %s237
    %p248 = scmp.eq.s32.totalorder %s21, 0
    %p249 = por %p247, %p248
    %p250 = scmp.ne.s32.totalorder %s236, %s237
    %p251 = scmp.eq.s32.totalorder %s22, 3
    %p252 = por %p250, %p251
    %p254 = scmp.ne.s32.totalorder %s237, %s253
    %p255 = scmp.eq.s32.totalorder %s22, 0
    %p256 = por %p254, %p255
    %s257 = ssub.s32 %s23, %s35
    %p258 = scmp.eq.s32.totalorder %s257, 0
    %s260 = sadd.s32 %s259, 1
    %s261 = scalar_select %p258, %s259, %s260
    %p264 = pneg %p258
    %p265 = scmp.eq.s32.totalorder %s16, 3
    %p266 = por %p264, %p265
    %p267 = scmp.ne.s32.totalorder %s259, %s262
    %p268 = scmp.eq.s32.totalorder %s16, 0
    %p269 = por %p267, %p268
    %p270 = scmp.ne.s32.totalorder %s259, %s262
    %p271 = scmp.eq.s32.totalorder %s21, 3
    %p272 = por %p270, %p271
    %p273 = scmp.ne.s32.totalorder %s262, %s263
    %p274 = scmp.eq.s32.totalorder %s21, 0
    %p275 = por %p273, %p274
    %p276 = scmp.ne.s32.totalorder %s262, %s263
    %p277 = scmp.eq.s32.totalorder %s22, 3
    %p278 = por %p276, %p277
    %p280 = scmp.ne.s32.totalorder %s263, %s279
    %p281 = scmp.eq.s32.totalorder %s22, 0
    %p282 = por %p280, %p281
    %p283 = scmp.le.s32.totalorder 1, %s16
    %p284 = scmp.lt.s32.totalorder %s16, 5
    %p285 = pnand %p283, %p284
    %p286 = pneg %p285
    // Predicated region
    $region9: #{mlp_forward.4} parent=5 // pred_check
      _
    $region10: #{mlp_forward.4} parent=5 // pred_check_branch
      %288 = sbr.rel (%p285) target = $region12
    $region11: #{mlp_forward.4} parent=5 // pred_region
      %s289 = ssub.s32 %s16, 1
      // Predicated region
      $region13: #{mlp_forward.4} parent=11 // pred_check
        %p290 = pneg %p109
      $region14: #{mlp_forward.4} parent=11 // pred_check_branch
        %292 = sbr.rel (%p290) target = $region16
      $region15: #{mlp_forward.4} parent=11 // pred_region
        _
      $region16: #{mlp_forward.4} parent=11 // pred_fallthru
        _
      // Predicated region
      $region17: #{mlp_forward.4} parent=11 // pred_check
        %p293 = pneg %p130
      $region18: #{mlp_forward.4} parent=11 // pred_check_branch
        %295 = sbr.rel (%p293) target = $region20
      $region19: #{mlp_forward.4} parent=11 // pred_region
        _
      $region20: #{mlp_forward.4} parent=11 // pred_fallthru
        _
      // Predicated region
      $region21: #{mlp_forward.4} parent=11 // pred_check
        %p296 = pneg %p151
      $region22: #{mlp_forward.4} parent=11 // pred_check_branch
        %298 = sbr.rel (%p296) target = $region24
      $region23: #{mlp_forward.4} parent=11 // pred_region
        _
      $region24: #{mlp_forward.4} parent=11 // pred_fallthru
        _
      // Predicated region
      $region25: #{mlp_forward.4} parent=11 // pred_check
        %p299 = pneg %p172
      $region26: #{mlp_forward.4} parent=11 // pred_check_branch
        %301 = sbr.rel (%p299) target = $region28
      $region27: #{mlp_forward.4} parent=11 // pred_region
        _
      $region28: #{mlp_forward.4} parent=11 // pred_fallthru
        _
      // Predicated region
      $region29: #{mlp_forward.4} parent=11 // pred_check
        %p302 = pneg %p193
      $region30: #{mlp_forward.4} parent=11 // pred_check_branch
        %304 = sbr.rel (%p302) target = $region32
      $region31: #{mlp_forward.4} parent=11 // pred_region
        _
      $region32: #{mlp_forward.4} parent=11 // pred_fallthru
        _
    $region12: #{mlp_forward.4} parent=5 // pred_fallthru
      _
    %p305 = scmp.lt.s32.totalorder %s16, 4
    // Predicated region
    $region33: #{mlp_forward.4} parent=5 // pred_check
      %p306 = pneg %p305
    $region34: #{mlp_forward.4} parent=5 // pred_check_branch
      %308 = sbr.rel (%p306) target = $region36
    $region35: #{mlp_forward.4} parent=5 // pred_region
      // Predicated region
      $region37: #{mlp_forward.4} parent=35 // pred_check
        %p309 = pneg %p52
      $region38: #{mlp_forward.4} parent=35 // pred_check_branch
        %311 = sbr.rel (%p309) target = $region40
      $region39: #{mlp_forward.4} parent=35 // pred_region
        %s312 = smul.u32 %s23, 2
        %s313 = sadd.s32 %s312, %s24
        %s314 = smul.u32 8, %s313
        %p315 = scmp.lt.s32.totalorder %s314, 31
        %s316 = scalar_select %p315, %s314, 31
        %s317 = smul.addr %s316, 4
        %s318 = scalar_lea.vmem %s0, %s317
        %s319 = smul.u32 %s23, 2
        %s320 = sadd.s32 %s319, %s24
        %s321 = smul.u32 8, %s320
      $region40: #{mlp_forward.4} parent=35 // pred_fallthru
        _
      // Predicated region
      $region41: #{mlp_forward.4} parent=35 // pred_check
        %p322 = pneg %p82
      $region42: #{mlp_forward.4} parent=35 // pred_check_branch
        %324 = sbr.rel (%p322) target = $region44
      $region43: #{mlp_forward.4} parent=35 // pred_region
        %s325 = smul.u32 %s23, 2
        %s326 = sadd.s32 %s325, %s24
        %s327 = smul.u32 8, %s326
        %p328 = scmp.lt.s32.totalorder %s327, 31
        %s329 = scalar_select %p328, %s327, 31
        %s330 = smul.addr %s329, 8
        %s331 = scalar_lea.vmem %s1, %s330
        %s332 = smul.u32 %s23, 2
        %s333 = sadd.s32 %s332, %s24
        %s334 = smul.u32 8, %s333
      $region44: #{mlp_forward.4} parent=35 // pred_fallthru
        _
    $region36: #{mlp_forward.4} parent=5 // pred_fallthru
      _
    %p335 = scmp.le.s32.totalorder 1, %s16
    %p336 = scmp.lt.s32.totalorder %s16, 5
    %p337 = pnand %p335, %p336
    %p338 = pneg %p337
    // Predicated region
    $region45: #{mlp_forward.4} parent=5 // pred_check
      _
    $region46: #{mlp_forward.4} parent=5 // pred_check_branch
      %340 = sbr.rel (%p337) target = $region48
    $region47: #{mlp_forward.4} parent=5 // pred_region
      %s341 = ssub.s32 %s16, 1
      %s342 = smul.u32 %s25, 2
      %s343 = sadd.s32 %s342, %s26
      %s344 = smul.u32 8, %s343
      %p345 = scmp.lt.s32.totalorder %s344, 31
      %s346 = scalar_select %p345, %s344, 31
      %s347 = smul.addr %s346, 4
      %s348 = scalar_lea.vmem %s0, %s347
      %p349 = pneg %p58
      %p350 = pneg %p55
      %s351 = smul.u32 %s25, 2
      %s352 = sadd.s32 %s351, %s26
      %s353 = smul.u32 8, %s352
      %p354 = scmp.lt.s32.totalorder %s353, 31
      %s355 = scalar_select %p354, %s353, 31
      %s356 = smul.addr %s355, 8
      %s357 = scalar_lea.vmem %s1, %s356
      %p358 = pneg %p88
      %p359 = pneg %p85
      %p360 = pneg %p109
      %p361 = pneg %p106
      %p362 = pneg %p130
      %p363 = pneg %p127
      %p364 = pneg %p151
      %p365 = pneg %p148
      %p366 = pneg %p172
      %p367 = pneg %p169
      %p368 = pneg %p193
      %p369 = pneg %p190
      %p370 = pneg %p223
      %p371 = pneg %p220
      %s372 = smul.u32 %s25, 2
      %s373 = sadd.s32 %s372, %s26
      %s374 = smul.u32 8, %s373
      %p375 = scmp.lt.s32.totalorder %s374, 31
      %s376 = scalar_select %p375, %s374, 31
      %s377 = smul.addr %s376, 2
      %s378 = smul.addr %s377, 4
      %s379 = scalar_lea.vmem %s7, %s378
      %p380 = pneg %p249
      %p381 = pneg %p246
      %p382 = scmp.lt.s32.totalorder %s25, 1
      %s383 = scalar_select %p382, %s25, 1
      %s384 = smul.addr %s383, 2
      %s385 = scalar_lea.vmem %s8, %s384
      %p386 = pneg %p275
      %p387 = pneg %p272
      %p388 = scmp.lt.s32.totalorder %s25, 1
      %s389 = scalar_select %p388, %s25, 1
      %s390 = smul.addr %s389, 2
      %s391 = scalar_lea.vmem %s9, %s390
      %s392 = smul.u32 %s25, 2
      %s393 = sadd.s32 %s392, %s26
      %s394 = smul.u32 8, %s393
      %p395 = scmp.lt.s32.totalorder %s394, 31
      %s396 = scalar_select %p395, %s394, 31
      %s397 = smul.addr %s396, 4
      %s398 = scalar_lea.vmem %s0, %s397
      %s399 = smul.u32 %s25, 2
      %s400 = sadd.s32 %s399, %s26
      %s401 = smul.u32 8, %s400
      %s402 = smul.u32 %s25, 2
      %s403 = sadd.s32 %s402, %s26
      %s404 = smul.u32 8, %s403
      %p405 = scmp.lt.s32.totalorder %s404, 31
      %s406 = scalar_select %p405, %s404, 31
      %s407 = smul.addr %s406, 8
      %s408 = scalar_lea.vmem %s1, %s407
      %s409 = smul.u32 %s25, 2
      %s410 = sadd.s32 %s409, %s26
      %s411 = smul.u32 8, %s410
      %s412 = smul.u32 %s25, 2
      %s413 = sadd.s32 %s412, %s26
      %s414 = smul.u32 8, %s413
      %p415 = scmp.lt.s32.totalorder %s414, 31
      %s416 = scalar_select %p415, %s414, 31
      %s417 = smul.addr %s416, 2
      %s418 = smul.addr %s417, 4
      %s419 = scalar_lea.vmem %s7, %s418
      %s420 = smul.u32 %s25, 2
      %s421 = sadd.s32 %s420, %s26
      %s422 = smul.u32 8, %s421
      %p423 = scmp.lt.s32.totalorder %s25, 1
      %s424 = scalar_select %p423, %s25, 1
      %s425 = smul.addr %s424, 2
      %s426 = scalar_lea.vmem %s8, %s425
      %p427 = scmp.lt.s32.totalorder %s25, 1
      %s428 = scalar_select %p427, %s25, 1
      %s429 = smul.addr %s428, 2
      %s430 = scalar_lea.vmem %s9, %s429
      %p431 = scmp.eq.s32.totalorder %s26, 0
      // Predicated region
      $region49: #{mlp_forward.4} parent=47 // pred_check
        %p432 = pneg %p431
      $region50: #{mlp_forward.4} parent=47 // pred_check_branch
        %434 = sbr.rel (%p432) target = $region52
      $region51: #{mlp_forward.4} parent=47 // pred_region
        %v435 = vlaneseq
        %vm436 = vcmp.ge.s32.totalorder %v435, 0
        %vm437 = vcmp.lt.s32.totalorder %v435, 256
        %vm438 = vmand %vm436, %vm437
        %439 = vst.msk [vmem:[%s426] sm:$0x3] %vm438, 0.0
        %440 = vst.msk [vmem:[%s430] sm:$0x3] %vm438, 0.0
      $region52: #{mlp_forward.4} parent=47 // pred_fallthru
        _
      %v441 = vld [vmem:[%s3] sm:$0x1]
      %v442 = vld [vmem:[%s3 + $0x1] sm:$0x1]
      %vm443 = vcmask 1040384
      %v444 = vsel %vm443, %v441, 0.0
      %v445 = vsel %vm443, %v442, 0.0
      %v446 = vadd.f32 %v444, %v445
      %v447 = vld [vmem:[%s4] sm:$0x1]
      %v448 = vld [vmem:[%s4 + $0x1] sm:$0x1]
      %v449 = vsel %vm443, %v447, 0.0
      %v450 = vsel %vm443, %v448, 0.0
      %v451 = vadd.f32 %v449, %v450
      %v452 = vmul.f32 %v446, 0.005
      %v453 = vmul.f32 %v451, 0.005
      %v454 = vmul.f32 %v452, %v452
      %v455 = vsub.f32 %v453, %v454
      %v456 = vmax.f32 %v455, 0.0
      %v457 = vld [vmem:[%s5] sm:$0x1]
      %v458 = vadd.f32 %v456, 1e-05
      %v459 = vrsqrt.pop %v458
      %v460 = vmul.f32 %v459, %v458
      %v461 = vmul.f32 %v460, %v459
      %v462 = vmul.f32 0.5, %v461
      %v463 = vsub.f32 1.5, %v462
      %v464 = vmul.f32 %v459, %v463
      %vm465 = vweird.f32 %v458
      %vm466 = vweird.f32 %v459
      %vm467 = vmor %vm465, %vm466
      %v468 = vsel %vm467, %v459, %v464
      %v469 = vmul.f32 %v457, %v468
      %v470 = vld [vmem:[%s6] sm:$0x1]
      %v471 = vmul.f32 %v452, %v469
      %v472 = vsub.f32 %v470, %v471
      %v473 = vld [vmem:[%s398] sm:$0xf]
      %v474 = vld [vmem:[%s398 + $0x4] sm:$0xf]
      %v475 = vld [vmem:[%s398 + $0x8] sm:$0xf]
      %v476 = vld [vmem:[%s398 + $0xc] sm:$0xf]
      %v477 = vld [vmem:[%s398 + $0x10] sm:$0xf]
      %v478 = vld [vmem:[%s398 + $0x14] sm:$0xf]
      %v479 = vld [vmem:[%s398 + $0x18] sm:$0xf]
      %v480 = vld [vmem:[%s398 + $0x1c] sm:$0xf]
      %v481 = vunpack.c.l.bf16 %v473
      %v482 = vunpack.c.l.bf16 %v474
      %v483 = vunpack.c.l.bf16 %v475
      %v484 = vunpack.c.l.bf16 %v476
      %v485 = vunpack.c.l.bf16 %v477
      %v486 = vunpack.c.l.bf16 %v478
      %v487 = vunpack.c.l.bf16 %v479
      %v488 = vunpack.c.l.bf16 %v480
      %v490 = vperm.slane %v469, 0
      %v492 = vmul.f32 %v481, %v490
      %v493 = vmul.f32 %v482, %v490
      %v494 = vmul.f32 %v483, %v490
      %v495 = vmul.f32 %v484, %v490
      %v496 = vmul.f32 %v485, %v490
      %v497 = vmul.f32 %v486, %v490
      %v498 = vmul.f32 %v487, %v490
      %v499 = vmul.f32 %v488, %v490
      %v501 = vperm.slane %v472, 0
      %v503 = vadd.f32 %v492, %v501
      %v504 = vadd.f32 %v493, %v501
      %v505 = vadd.f32 %v494, %v501
      %v506 = vadd.f32 %v495, %v501
      %v507 = vadd.f32 %v496, %v501
      %v508 = vadd.f32 %v497, %v501
      %v509 = vadd.f32 %v498, %v501
      %v510 = vadd.f32 %v499, %v501
      %v511 = vmax.f32 %v503, 0.0
      %v512 = vmax.f32 %v504, 0.0
      %v513 = vmax.f32 %v505, 0.0
      %v514 = vmax.f32 %v506, 0.0
      %v515 = vmax.f32 %v507, 0.0
      %v516 = vmax.f32 %v508, 0.0
      %v517 = vmax.f32 %v509, 0.0
      %v518 = vmax.f32 %v510, 0.0
      %v519 = vld [vmem:[%s408] sm:$0xff]
      %v520 = vld [vmem:[%s408 + $0x8] sm:$0xff]
      %v521 = vld [vmem:[%s408 + $0x10] sm:$0xff]
      %v522 = vld [vmem:[%s408 + $0x18] sm:$0xff]
      %v523 = vld [vmem:[%s408 + $0x20] sm:$0xff]
      %v524 = vld [vmem:[%s408 + $0x28] sm:$0xff]
      %v525 = vld [vmem:[%s408 + $0x30] sm:$0xff]
      %v526 = vld [vmem:[%s408 + $0x38] sm:$0xff]
      %528 = vset.pattern.permute.xlu0 0
      %529 = vperm.xlu0 %528, %v519
      %v530 = vpop.permute.xlu0 %529
      %533 = vset.pattern.permute.xlu0 0
      %534 = vperm.xlu0 %533, %v520
      %v535 = vpop.permute.xlu0 %534
      %538 = vset.pattern.permute.xlu0 0
      %539 = vperm.xlu0 %538, %v521
      %v540 = vpop.permute.xlu0 %539
      %543 = vset.pattern.permute.xlu0 0
      %544 = vperm.xlu0 %543, %v522
      %v545 = vpop.permute.xlu0 %544
      %548 = vset.pattern.permute.xlu0 0
      %549 = vperm.xlu0 %548, %v523
      %v550 = vpop.permute.xlu0 %549
      %553 = vset.pattern.permute.xlu0 0
      %554 = vperm.xlu0 %553, %v524
      %v555 = vpop.permute.xlu0 %554
      %558 = vset.pattern.permute.xlu0 0
      %559 = vperm.xlu0 %558, %v525
      %v560 = vpop.permute.xlu0 %559
      %563 = vset.pattern.permute.xlu0 0
      %564 = vperm.xlu0 %563, %v526
      %v565 = vpop.permute.xlu0 %564
      %v567 = vmul.f32 %v511, %v530
      %v568 = vmul.f32 %v512, %v535
      %v569 = vmul.f32 %v513, %v540
      %v570 = vmul.f32 %v514, %v545
      %v571 = vmul.f32 %v515, %v550
      %v572 = vmul.f32 %v516, %v555
      %v573 = vmul.f32 %v517, %v560
      %v574 = vmul.f32 %v518, %v565
      %v575 = vpack.c.bf16 %v568, %v567
      %v576 = vpack.c.bf16 %v570, %v569
      %v577 = vpack.c.bf16 %v572, %v571
      %v578 = vpack.c.bf16 %v574, %v573
      %v579 = vld [vmem:[%s2] sm:$0xff]
      %v580 = vld [vmem:[%s2 + $0x8] sm:$0xff]
      %v581 = vld [vmem:[%s2 + $0x10] sm:$0xff]
      %v582 = vld [vmem:[%s2 + $0x18] sm:$0xff]
      %v583 = vld [vmem:[%s2 + $0x20] sm:$0xff]
      %v584 = vld [vmem:[%s2 + $0x28] sm:$0xff]
      %v585 = vld [vmem:[%s2 + $0x30] sm:$0xff]
      %v586 = vld [vmem:[%s2 + $0x38] sm:$0xff]
      %v587 = vld [vmem:[%s2 + $0x40] sm:$0xff]
      %v588 = vld [vmem:[%s2 + $0x48] sm:$0xff]
      %v589 = vld [vmem:[%s2 + $0x50] sm:$0xff]
      %v590 = vld [vmem:[%s2 + $0x58] sm:$0xff]
      %v591 = vld [vmem:[%s2 + $0x60] sm:$0xff]
      %v592 = vld [vmem:[%s2 + $0x68] sm:$0xff]
      %v593 = vld [vmem:[%s2 + $0x70] sm:$0xff]
      %v594 = vld [vmem:[%s2 + $0x78] sm:$0xff]
      %v611 = vunpack.c.l.b16 %v579
      %v612 = vunpack.c.h.b16 %v579
      %v613 = vunpack.c.l.b16 %v580
      %v614 = vunpack.c.h.b16 %v580
      %v615 = vunpack.c.l.b16 %v581
      %v616 = vunpack.c.h.b16 %v581
      %v617 = vunpack.c.l.b16 %v582
      %v618 = vunpack.c.h.b16 %v582
      %v619 = vunpack.c.l.b16 %v583
      %v620 = vunpack.c.h.b16 %v583
      %v621 = vunpack.c.l.b16 %v584
      %v622 = vunpack.c.h.b16 %v584
      %v623 = vunpack.c.l.b16 %v585
      %v624 = vunpack.c.h.b16 %v585
      %v625 = vunpack.c.l.b16 %v586
      %v626 = vunpack.c.h.b16 %v586
      %v627 = vunpack.c.l.b16 %v587
      %v628 = vunpack.c.h.b16 %v587
      %v629 = vunpack.c.l.b16 %v588
      %v630 = vunpack.c.h.b16 %v588
      %v631 = vunpack.c.l.b16 %v589
      %v632 = vunpack.c.h.b16 %v589
      %v633 = vunpack.c.l.b16 %v590
      %v634 = vunpack.c.h.b16 %v590
      %v635 = vunpack.c.l.b16 %v591
      %v636 = vunpack.c.h.b16 %v591
      %v637 = vunpack.c.l.b16 %v592
      %v638 = vunpack.c.h.b16 %v592
      %v639 = vunpack.c.l.b16 %v593
      %v640 = vunpack.c.h.b16 %v593
      %v641 = vunpack.c.l.b16 %v594
      %v642 = vunpack.c.h.b16 %v594
      %v643 = vpack.c.b16 %v613, %v611
      %v644 = vpack.c.b16 %v614, %v612
      %v645 = vpack.c.b16 %v617, %v615
      %v646 = vpack.c.b16 %v618, %v616
      %v647 = vpack.c.b16 %v621, %v619
      %v648 = vpack.c.b16 %v622, %v620
      %v649 = vpack.c.b16 %v625, %v623
      %v650 = vpack.c.b16 %v626, %v624
      %v651 = vpack.c.b16 %v629, %v627
      %v652 = vpack.c.b16 %v630, %v628
      %v653 = vpack.c.b16 %v633, %v631
      %v654 = vpack.c.b16 %v634, %v632
      %v655 = vpack.c.b16 %v637, %v635
      %v656 = vpack.c.b16 %v638, %v636
      %v657 = vpack.c.b16 %v641, %v639
      %v658 = vpack.c.b16 %v642, %v640
      %675 = vmatpush.bf16.msra.mxu0 %v657
      %676 = vmatpush.bf16.msra.mxu0 %v655
      %677 = vmatpush.bf16.msra.mxu0 %v653
      %678 = vmatpush.bf16.msra.mxu0 %v651
      %679 = vmatpush.bf16.msra.mxu0 %v649
      %680 = vmatpush.bf16.msra.mxu0 %v647
      %681 = vmatpush.bf16.msra.mxu0 %v645
      %682 = vmatpush.bf16.msra.mxu0 %v643
      %683 = vmatmul.bf16.gmra.mxu0 %v575
      %v684 = vpop.f32.mrf.mxu0
      %v685 = vadd.f32 0.0, %v684
      %v686 = vpop.f32.mrf.mxu0
      %v687 = vadd.f32 0.0, %v686
      %688 = vmatmul.bf16.gmra.mxu0 %v576
      %v689 = vpop.f32.mrf.mxu0
      %v690 = vadd.f32 0.0, %v689
      %v691 = vpop.f32.mrf.mxu0
      %v692 = vadd.f32 0.0, %v691
      %693 = vmatmul.bf16.gmra.mxu0 %v577
      %v694 = vpop.f32.mrf.mxu0
      %v695 = vadd.f32 0.0, %v694
      %v696 = vpop.f32.mrf.mxu0
      %v697 = vadd.f32 0.0, %v696
      %698 = vmatmul.bf16.gmra.mxu0 %v578
      %v699 = vpop.f32.mrf.mxu0
      %v700 = vadd.f32 0.0, %v699
      %v701 = vpop.f32.mrf.mxu0
      %v702 = vadd.f32 0.0, %v701
      %703 = vdwg.mxu0
      %704 = vmatpush.bf16.msra.mxu0 %v658
      %705 = vmatpush.bf16.msra.mxu0 %v656
      %706 = vmatpush.bf16.msra.mxu0 %v654
      %707 = vmatpush.bf16.msra.mxu0 %v652
      %708 = vmatpush.bf16.msra.mxu0 %v650
      %709 = vmatpush.bf16.msra.mxu0 %v648
      %710 = vmatpush.bf16.msra.mxu0 %v646
      %711 = vmatpush.bf16.msra.mxu0 %v644
      %712 = vmatmul.bf16.gmra.mxu0 %v575
      %v713 = vpop.f32.mrf.mxu0
      %v714 = vadd.f32 0.0, %v713
      %v715 = vpop.f32.mrf.mxu0
      %v716 = vadd.f32 0.0, %v715
      %717 = vmatmul.bf16.gmra.mxu0 %v576
      %v718 = vpop.f32.mrf.mxu0
      %v719 = vadd.f32 0.0, %v718
      %v720 = vpop.f32.mrf.mxu0
      %v721 = vadd.f32 0.0, %v720
      %722 = vmatmul.bf16.gmra.mxu0 %v577
      %v723 = vpop.f32.mrf.mxu0
      %v724 = vadd.f32 0.0, %v723
      %v725 = vpop.f32.mrf.mxu0
      %v726 = vadd.f32 0.0, %v725
      %727 = vmatmul.bf16.gmra.mxu0 %v578
      %v728 = vpop.f32.mrf.mxu0
      %v729 = vadd.f32 0.0, %v728
      %v730 = vpop.f32.mrf.mxu0
      %v731 = vadd.f32 0.0, %v730
      %732 = vdwg.mxu0
      %v733 = vpack.c.bf16 %v714, %v685
      %v734 = vpack.c.bf16 %v716, %v687
      %v735 = vpack.c.bf16 %v719, %v690
      %v736 = vpack.c.bf16 %v721, %v692
      %v737 = vpack.c.bf16 %v724, %v695
      %v738 = vpack.c.bf16 %v726, %v697
      %v739 = vpack.c.bf16 %v729, %v700
      %v740 = vpack.c.bf16 %v731, %v702
      %741 = vst [vmem:[%s419] sm:$0xff] %v733
      %742 = vst [vmem:[%s419 + $0x8] sm:$0xff] %v734
      %743 = vst [vmem:[%s419 + $0x10] sm:$0xff] %v735
      %744 = vst [vmem:[%s419 + $0x18] sm:$0xff] %v736
      %745 = vst [vmem:[%s419 + $0x20] sm:$0xff] %v737
      %746 = vst [vmem:[%s419 + $0x28] sm:$0xff] %v738
      %747 = vst [vmem:[%s419 + $0x30] sm:$0xff] %v739
      %748 = vst [vmem:[%s419 + $0x38] sm:$0xff] %v740
      %v749 = vunpack.c.l.bf16 %v733
      %v750 = vunpack.c.h.bf16 %v733
      %v751 = vunpack.c.l.bf16 %v734
      %v752 = vunpack.c.h.bf16 %v734
      %v753 = vunpack.c.l.bf16 %v735
      %v754 = vunpack.c.h.bf16 %v735
      %v755 = vunpack.c.l.bf16 %v736
      %v756 = vunpack.c.h.bf16 %v736
      %v757 = vunpack.c.l.bf16 %v737
      %v758 = vunpack.c.h.bf16 %v737
      %v759 = vunpack.c.l.bf16 %v738
      %v760 = vunpack.c.h.bf16 %v738
      %v761 = vunpack.c.l.bf16 %v739
      %v762 = vunpack.c.h.bf16 %v739
      %v763 = vunpack.c.l.bf16 %v740
      %v764 = vunpack.c.h.bf16 %v740
      %v765 = vld [vmem:[%s426] sm:$0x3]
      %v766 = vadd.f32 %v749, %v751
      %v767 = vadd.f32 %v766, %v753
      %v768 = vadd.f32 %v767, %v755
      %v769 = vadd.f32 %v768, %v757
      %v770 = vadd.f32 %v769, %v759
      %v771 = vadd.f32 %v770, %v761
      %v772 = vadd.f32 %v771, %v763
      %v773 = vrot.slane %v772, 4
      %v774 = vadd.f32 %v772, %v773
      %v775 = vrot.slane %v774, 2
      %v776 = vadd.f32 %v774, %v775
      %v777 = vrot.slane %v776, 1
      %v778 = vadd.f32 %v776, %v777
      %v779 = vadd.f32 %v750, %v752
      %v780 = vadd.f32 %v779, %v754
      %v781 = vadd.f32 %v780, %v756
      %v782 = vadd.f32 %v781, %v758
      %v783 = vadd.f32 %v782, %v760
      %v784 = vadd.f32 %v783, %v762
      %v785 = vadd.f32 %v784, %v764
      %v786 = vrot.slane %v785, 4
      %v787 = vadd.f32 %v785, %v786
      %v788 = vrot.slane %v787, 2
      %v789 = vadd.f32 %v787, %v788
      %v790 = vrot.slane %v789, 1
      %v791 = vadd.f32 %v789, %v790
      %v794 = vrot.slane %v791, 7
      %v795 = vsel %vm443, %v778, %v794
      %v797 = vadd.f32 %v765, %v795
      %v798 = vlaneseq
      %vm799 = vcmp.ge.s32.totalorder %v798, 0
      %vm800 = vcmp.lt.s32.totalorder %v798, 256
      %vm801 = vmand %vm799, %vm800
      %802 = vst.msk [vmem:[%s426] sm:$0x3] %vm801, %v797
      %v803 = vld [vmem:[%s430] sm:$0x3]
      %v804 = vmul.f32 %v749, %v749
      %v805 = vmul.f32 %v750, %v750
      %v806 = vmul.f32 %v751, %v751
      %v807 = vmul.f32 %v752, %v752
      %v808 = vmul.f32 %v753, %v753
      %v809 = vmul.f32 %v754, %v754
      %v810 = vmul.f32 %v755, %v755
      %v811 = vmul.f32 %v756, %v756
      %v812 = vmul.f32 %v757, %v757
      %v813 = vmul.f32 %v758, %v758
      %v814 = vmul.f32 %v759, %v759
      %v815 = vmul.f32 %v760, %v760
      %v816 = vmul.f32 %v761, %v761
      %v817 = vmul.f32 %v762, %v762
      %v818 = vmul.f32 %v763, %v763
      %v819 = vmul.f32 %v764, %v764
      %v820 = vadd.f32 %v804, %v806
      %v821 = vadd.f32 %v820, %v808
      %v822 = vadd.f32 %v821, %v810
      %v823 = vadd.f32 %v822, %v812
      %v824 = vadd.f32 %v823, %v814
      %v825 = vadd.f32 %v824, %v816
      %v826 = vadd.f32 %v825, %v818
      %v827 = vrot.slane %v826, 4
      %v828 = vadd.f32 %v826, %v827
      %v829 = vrot.slane %v828, 2
      %v830 = vadd.f32 %v828, %v829
      %v831 = vrot.slane %v830, 1
      %v832 = vadd.f32 %v830, %v831
      %v833 = vadd.f32 %v805, %v807
      %v834 = vadd.f32 %v833, %v809
      %v835 = vadd.f32 %v834, %v811
      %v836 = vadd.f32 %v835, %v813
      %v837 = vadd.f32 %v836, %v815
      %v838 = vadd.f32 %v837, %v817
      %v839 = vadd.f32 %v838, %v819
      %v840 = vrot.slane %v839, 4
      %v841 = vadd.f32 %v839, %v840
      %v842 = vrot.slane %v841, 2
      %v843 = vadd.f32 %v841, %v842
      %v844 = vrot.slane %v843, 1
      %v845 = vadd.f32 %v843, %v844
      %v848 = vrot.slane %v845, 7
      %v849 = vsel %vm443, %v832, %v848
      %v851 = vadd.f32 %v803, %v849
      %852 = vst.msk [vmem:[%s430] sm:$0x3] %vm801, %v851
      %s853 = smul.u32 %s25, 2
      %s854 = sadd.s32 %s853, %s26
      %s855 = smul.u32 8, %s854
      %p856 = scmp.lt.s32.totalorder %s855, 31
      %s857 = scalar_select %p856, %s855, 31
      %s858 = smul.addr %s857, 2
      %s859 = smul.addr %s858, 4
      %s860 = scalar_lea.vmem %s7, %s859
      %p861 = scmp.lt.s32.totalorder %s25, 1
      %s862 = scalar_select %p861, %s25, 1
      %s863 = smul.addr %s862, 2
      %s864 = scalar_lea.vmem %s8, %s863
      %p865 = scmp.lt.s32.totalorder %s25, 1
      %s866 = scalar_select %p865, %s25, 1
      %s867 = smul.addr %s866, 2
      %s868 = scalar_lea.vmem %s9, %s867
      // Predicated region
      $region53: #{mlp_forward.4} parent=47 // pred_check
        %p869 = pneg %p220
      $region54: #{mlp_forward.4} parent=47 // pred_check_branch
        %871 = sbr.rel (%p869) target = $region56
      $region55: #{mlp_forward.4} parent=47 // pred_region
        %s872 = smul.u32 %s25, 2
        %s873 = sadd.s32 %s872, %s26
        %s874 = smul.u32 8, %s873
      $region56: #{mlp_forward.4} parent=47 // pred_fallthru
        _
      // Predicated region
      $region57: #{mlp_forward.4} parent=47 // pred_check
        %p875 = pneg %p246
      $region58: #{mlp_forward.4} parent=47 // pred_check_branch
        %877 = sbr.rel (%p875) target = $region60
      $region59: #{mlp_forward.4} parent=47 // pred_region
        _
      $region60: #{mlp_forward.4} parent=47 // pred_fallthru
        _
      // Predicated region
      $region61: #{mlp_forward.4} parent=47 // pred_check
        %p878 = pneg %p272
      $region62: #{mlp_forward.4} parent=47 // pred_check_branch
        %880 = sbr.rel (%p878) target = $region64
      $region63: #{mlp_forward.4} parent=47 // pred_region
        _
      $region64: #{mlp_forward.4} parent=47 // pred_fallthru
        _
    $region48: #{mlp_forward.4} parent=5 // pred_fallthru
      _
    %p881 = scmp.le.s32.totalorder 2, %s16
    // Predicated region
    $region65: #{mlp_forward.4} parent=5 // pred_check
      %p882 = pneg %p881
    $region66: #{mlp_forward.4} parent=5 // pred_check_branch
      %884 = sbr.rel (%p882) target = $region68
    $region67: #{mlp_forward.4} parent=5 // pred_region
      %s885 = ssub.s32 %s16, 2
      // Predicated region
      $region69: #{mlp_forward.4} parent=67 // pred_check
        %p886 = pneg %p226
      $region70: #{mlp_forward.4} parent=67 // pred_check_branch
        %888 = sbr.rel (%p886) target = $region72
      $region71: #{mlp_forward.4} parent=67 // pred_region
        %s889 = smul.u32 %s27, 2
        %s890 = sadd.s32 %s889, %s28
        %s891 = smul.u32 8, %s890
        %p892 = scmp.lt.s32.totalorder %s891, 31
        %s893 = scalar_select %p892, %s891, 31
        %s894 = smul.addr %s893, 2
        %s895 = smul.addr %s894, 4
        %s896 = scalar_lea.vmem %s7, %s895
      $region72: #{mlp_forward.4} parent=67 // pred_fallthru
        _
      // Predicated region
      $region73: #{mlp_forward.4} parent=67 // pred_check
        %p897 = pneg %p252
      $region74: #{mlp_forward.4} parent=67 // pred_check_branch
        %899 = sbr.rel (%p897) target = $region76
      $region75: #{mlp_forward.4} parent=67 // pred_region
        %p900 = scmp.lt.s32.totalorder %s27, 1
        %s901 = scalar_select %p900, %s27, 1
        %s902 = smul.addr %s901, 2
        %s903 = scalar_lea.vmem %s8, %s902
      $region76: #{mlp_forward.4} parent=67 // pred_fallthru
        _
      // Predicated region
      $region77: #{mlp_forward.4} parent=67 // pred_check
        %p904 = pneg %p278
      $region78: #{mlp_forward.4} parent=67 // pred_check_branch
        %906 = sbr.rel (%p904) target = $region80
      $region79: #{mlp_forward.4} parent=67 // pred_region
        %p907 = scmp.lt.s32.totalorder %s27, 1
        %s908 = scalar_select %p907, %s27, 1
        %s909 = smul.addr %s908, 2
        %s910 = scalar_lea.vmem %s9, %s909
      $region80: #{mlp_forward.4} parent=67 // pred_fallthru
        _
    $region68: #{mlp_forward.4} parent=5 // pred_fallthru
      _
  $region6: #{mlp_forward.4} parent=0 // loop_footer
    %s20 = sadd.s32 1, %s16
  $region7: #{mlp_forward.4} parent=0 // loop_footer_branch
    %15 = sbr.rel target = $region3
  $region8: #{mlp_forward.4} parent=0 // loop_exit
    _

// kernel: mlp_forward.3
$region0: #{mlp_forward.3}
  #allocation0 [shape = 'u32[]', space=smem, size = 0x4, offset = 0x4, fixed_abs, tag = 'smem constant byte address 0x4 - core index']
  #allocation1 [shape = 'u32[72,128]{1,0:T(1,128)}', space=vmem, size = 0x9000, scoped, tag = 'internal scratch']
  %s0 = inlined_call_operand.vmem [shape: f32[256,784], index: 0, kind: input, shape index: {}]
  %s1 = inlined_call_operand.vmem [shape: bf16[784,128], index: 1, kind: input, shape index: {}]
  %s2 = inlined_call_operand.vmem [shape: bf16[256,128], index: 2, kind: output, shape index: {0}]
  %s3 = inlined_call_operand.vmem [shape: f32[2,1,128], index: 3, kind: output, shape index: {1}]
  %s4 = inlined_call_operand.vmem [shape: f32[2,1,128], index: 4, kind: output, shape index: {2}]
  %5 = xla_tuple %s2, %s3, %s4
  %s6 = sld [smem:[#allocation0]]
  $region61: #{mlp_forward.3} parent=0
    _
  %s8 = ssub.s32 1, %s6
  %s9 = scalar_select 0, %s8, %s6
  loop: start=0, step=1, limit=6
  $region2: #{mlp_forward.3} parent=0 // loop_pre_header
    _
  $region3: #{mlp_forward.3} parent=0 // loop_header
    %s11 = sphi 0, %s15
    %p12 = scmp.ge.s32.totalorder %s11, 6
    %s18 = sphi 0, %s30
    %s19 = sphi 0, %s26
    %s20 = sphi 0, %s18
    %s21 = sphi 0, %s19
    %s22 = sphi 0, %s20
    %s23 = sphi 0, %s21
    %s37 = sphi 0, %s39
    %s40 = sphi 0, %s37
    %s41 = sphi 0, %s40
    %s57 = sphi 0, %s41
    %s61 = sphi 0, %s61
    %s63 = sphi 0, %s61
    %s64 = sphi 0, %s63
    %s78 = sphi 0, %s64
    %s88 = sphi 0, %s90
    %s91 = sphi 0, %s88
    %s92 = sphi 0, %s91
    %s108 = sphi 0, %s92
    %s114 = sphi 0, %s116
    %s117 = sphi 0, %s114
    %s118 = sphi 0, %s117
    %s134 = sphi 0, %s118
    %s140 = sphi 0, %s142
    %s143 = sphi 0, %s140
    %s144 = sphi 0, %s143
    %s160 = sphi 0, %s144
  $region4: #{mlp_forward.3} parent=0 // loop_header_branch
    %14 = sbr.rel (%p12) target = $region8
  $region5: #{mlp_forward.3} parent=0 // loop_body
    %s16 = ssub.s32 %s11, 1
    %s17 = ssub.s32 %s11, 2
    %s24 = sadd.s32 1, %s19
    %p25 = scmp.ge.s32.totalorder %s24, 2
    %s26 = scalar_select %p25, 0, %s24
    %s27 = sadd.s32 1, %s18
    %s28 = scalar_select %p25, %s27, %s18
    %p29 = scmp.ge.s32.totalorder %s28, 2
    %s30 = scalar_select %p29, 0, %s28
    %s31 = smul.u32 %s18, 2
    %s32 = sadd.s32 %s31, %s19
    %s33 = smul.u32 %s30, 2
    %s34 = sadd.s32 %s33, %s26
    %s35 = ssub.s32 %s32, %s34
    %p36 = scmp.eq.s32.totalorder %s35, 0
    %s38 = sadd.s32 %s37, 1
    %s39 = scalar_select %p36, %s37, %s38
    %p42 = pneg %p36
    %p43 = scmp.eq.s32.totalorder %s11, 3
    %p44 = por %p42, %p43
    %p45 = scmp.ne.s32.totalorder %s37, %s40
    %p46 = scmp.eq.s32.totalorder %s11, 0
    %p47 = por %p45, %p46
    %p48 = scmp.ne.s32.totalorder %s37, %s40
    %p49 = scmp.eq.s32.totalorder %s16, 3
    %p50 = por %p48, %p49
    %p51 = scmp.ne.s32.totalorder %s40, %s41
    %p52 = scmp.eq.s32.totalorder %s16, 0
    %p53 = por %p51, %p52
    %p54 = scmp.ne.s32.totalorder %s40, %s41
    %p55 = scmp.eq.s32.totalorder %s17, 3
    %p56 = por %p54, %p55
    %p58 = scmp.ne.s32.totalorder %s41, %s57
    %p59 = scmp.eq.s32.totalorder %s17, 0
    %p60 = por %p58, %p59
    %s62 = sadd.s32 %s61, 1
    %p65 = scmp.eq.s32.totalorder %s11, 3
    %p66 = scmp.ne.s32.totalorder %s61, %s63
    %p67 = scmp.eq.s32.totalorder %s11, 0
    %p68 = por %p66, %p67
    %p69 = scmp.ne.s32.totalorder %s61, %s63
    %p70 = scmp.eq.s32.totalorder %s16, 3
    %p71 = por %p69, %p70
    %p72 = scmp.ne.s32.totalorder %s63, %s64
    %p73 = scmp.eq.s32.totalorder %s16, 0
    %p74 = por %p72, %p73
    %p75 = scmp.ne.s32.totalorder %s63, %s64
    %p76 = scmp.eq.s32.totalorder %s17, 3
    %p77 = por %p75, %p76
    %p79 = scmp.ne.s32.totalorder %s64, %s78
    %p80 = scmp.eq.s32.totalorder %s17, 0
    %p81 = por %p79, %p80
    %s82 = smul.u32 %s18, 2
    %s83 = sadd.s32 %s82, %s19
    %s84 = smul.u32 %s30, 2
    %s85 = sadd.s32 %s84, %s26
    %s86 = ssub.s32 %s83, %s85
    %p87 = scmp.eq.s32.totalorder %s86, 0
    %s89 = sadd.s32 %s88, 1
    %s90 = scalar_select %p87, %s88, %s89
    %p93 = pneg %p87
    %p94 = scmp.eq.s32.totalorder %s11, 3
    %p95 = por %p93, %p94
    %p96 = scmp.ne.s32.totalorder %s88, %s91
    %p97 = scmp.eq.s32.totalorder %s11, 0
    %p98 = por %p96, %p97
    %p99 = scmp.ne.s32.totalorder %s88, %s91
    %p100 = scmp.eq.s32.totalorder %s16, 3
    %p101 = por %p99, %p100
    %p102 = scmp.ne.s32.totalorder %s91, %s92
    %p103 = scmp.eq.s32.totalorder %s16, 0
    %p104 = por %p102, %p103
    %p105 = scmp.ne.s32.totalorder %s91, %s92
    %p106 = scmp.eq.s32.totalorder %s17, 3
    %p107 = por %p105, %p106
    %p109 = scmp.ne.s32.totalorder %s92, %s108
    %p110 = scmp.eq.s32.totalorder %s17, 0
    %p111 = por %p109, %p110
    %s112 = ssub.s32 %s18, %s30
    %p113 = scmp.eq.s32.totalorder %s112, 0
    %s115 = sadd.s32 %s114, 1
    %s116 = scalar_select %p113, %s114, %s115
    %p119 = pneg %p113
    %p120 = scmp.eq.s32.totalorder %s11, 3
    %p121 = por %p119, %p120
    %p122 = scmp.ne.s32.totalorder %s114, %s117
    %p123 = scmp.eq.s32.totalorder %s11, 0
    %p124 = por %p122, %p123
    %p125 = scmp.ne.s32.totalorder %s114, %s117
    %p126 = scmp.eq.s32.totalorder %s16, 3
    %p127 = por %p125, %p126
    %p128 = scmp.ne.s32.totalorder %s117, %s118
    %p129 = scmp.eq.s32.totalorder %s16, 0
    %p130 = por %p128, %p129
    %p131 = scmp.ne.s32.totalorder %s117, %s118
    %p132 = scmp.eq.s32.totalorder %s17, 3
    %p133 = por %p131, %p132
    %p135 = scmp.ne.s32.totalorder %s118, %s134
    %p136 = scmp.eq.s32.totalorder %s17, 0
    %p137 = por %p135, %p136
    %s138 = ssub.s32 %s18, %s30
    %p139 = scmp.eq.s32.totalorder %s138, 0
    %s141 = sadd.s32 %s140, 1
    %s142 = scalar_select %p139, %s140, %s141
    %p145 = pneg %p139
    %p146 = scmp.eq.s32.totalorder %s11, 3
    %p147 = por %p145, %p146
    %p148 = scmp.ne.s32.totalorder %s140, %s143
    %p149 = scmp.eq.s32.totalorder %s11, 0
    %p150 = por %p148, %p149
    %p151 = scmp.ne.s32.totalorder %s140, %s143
    %p152 = scmp.eq.s32.totalorder %s16, 3
    %p153 = por %p151, %p152
    %p154 = scmp.ne.s32.totalorder %s143, %s144
    %p155 = scmp.eq.s32.totalorder %s16, 0
    %p156 = por %p154, %p155
    %p157 = scmp.ne.s32.totalorder %s143, %s144
    %p158 = scmp.eq.s32.totalorder %s17, 3
    %p159 = por %p157, %p158
    %p161 = scmp.ne.s32.totalorder %s144, %s160
    %p162 = scmp.eq.s32.totalorder %s17, 0
    %p163 = por %p161, %p162
    %p164 = scmp.le.s32.totalorder 1, %s11
    %p165 = scmp.lt.s32.totalorder %s11, 5
    %p166 = pnand %p164, %p165
    %p167 = pneg %p166
    // Predicated region
    $region9: #{mlp_forward.3} parent=5 // pred_check
      _
    $region10: #{mlp_forward.3} parent=5 // pred_check_branch
      %169 = sbr.rel (%p166) target = $region12
    $region11: #{mlp_forward.3} parent=5 // pred_region
      %s170 = ssub.s32 %s11, 1
      // Predicated region
      $region13: #{mlp_forward.3} parent=11 // pred_check
        %p171 = pneg %p74
      $region14: #{mlp_forward.3} parent=11 // pred_check_branch
        %173 = sbr.rel (%p171) target = $region16
      $region15: #{mlp_forward.3} parent=11 // pred_region
        _
      $region16: #{mlp_forward.3} parent=11 // pred_fallthru
        _
    $region12: #{mlp_forward.3} parent=5 // pred_fallthru
      _
    %p174 = scmp.lt.s32.totalorder %s11, 4
    // Predicated region
    $region17: #{mlp_forward.3} parent=5 // pred_check
      %p175 = pneg %p174
    $region18: #{mlp_forward.3} parent=5 // pred_check_branch
      %177 = sbr.rel (%p175) target = $region20
    $region19: #{mlp_forward.3} parent=5 // pred_region
      // Predicated region
      $region21: #{mlp_forward.3} parent=19 // pred_check
        %p178 = pneg %p47
      $region22: #{mlp_forward.3} parent=19 // pred_check_branch
        %180 = sbr.rel (%p178) target = $region24
      $region23: #{mlp_forward.3} parent=19 // pred_region
        %s181 = smul.u32 %s18, 2
        %s182 = sadd.s32 %s181, %s19
        %s183 = smul.u32 8, %s182
        %p184 = scmp.lt.s32.totalorder %s183, 31
        %s185 = scalar_select %p184, %s183, 31
        %s186 = smul.addr %s185, 7
        %s187 = smul.addr %s186, 8
        %s188 = scalar_lea.vmem %s0, %s187
        %s189 = smul.u32 %s18, 2
        %s190 = sadd.s32 %s189, %s19
        %s191 = smul.u32 8, %s190
      $region24: #{mlp_forward.3} parent=19 // pred_fallthru
        _
    $region20: #{mlp_forward.3} parent=5 // pred_fallthru
      _
    %p192 = scmp.le.s32.totalorder 1, %s11
    %p193 = scmp.lt.s32.totalorder %s11, 5
    %p194 = pnand %p192, %p193
    %p195 = pneg %p194
    // Predicated region
    $region25: #{mlp_forward.3} parent=5 // pred_check
      _
    $region26: #{mlp_forward.3} parent=5 // pred_check_branch
      %197 = sbr.rel (%p194) target = $region28
    $region27: #{mlp_forward.3} parent=5 // pred_region
      %s198 = ssub.s32 %s11, 1
      %s199 = smul.u32 %s20, 2
      %s200 = sadd.s32 %s199, %s21
      %s201 = smul.u32 8, %s200
      %p202 = scmp.lt.s32.totalorder %s201, 31
      %s203 = scalar_select %p202, %s201, 31
      %s204 = smul.addr %s203, 7
      %s205 = smul.addr %s204, 8
      %s206 = scalar_lea.vmem %s0, %s205
      %p207 = pneg %p53
      %p208 = pneg %p50
      %p209 = pneg %p74
      %p210 = pneg %p71
      %p211 = pneg %p104
      %p212 = pneg %p101
      %s213 = smul.u32 %s20, 2
      %s214 = sadd.s32 %s213, %s21
      %s215 = smul.u32 8, %s214
      %p216 = scmp.lt.s32.totalorder %s215, 31
      %s217 = scalar_select %p216, %s215, 31
      %s218 = smul.addr %s217, 4
      %s219 = scalar_lea.vmem %s2, %s218
      %p220 = pneg %p130
      %p221 = pneg %p127
      %p222 = scmp.lt.s32.totalorder %s20, 1
      %s223 = scalar_select %p222, %s20, 1
      %s224 = scalar_lea.vmem %s3, %s223
      %p225 = pneg %p156
      %p226 = pneg %p153
      %p227 = scmp.lt.s32.totalorder %s20, 1
      %s228 = scalar_select %p227, %s20, 1
      %s229 = scalar_lea.vmem %s4, %s228
      %s230 = smul.u32 %s20, 2
      %s231 = sadd.s32 %s230, %s21
      %s232 = smul.u32 8, %s231
      %p233 = scmp.lt.s32.totalorder %s232, 31
      %s234 = scalar_select %p233, %s232, 31
      %s235 = smul.addr %s234, 7
      %s236 = smul.addr %s235, 8
      %s237 = scalar_lea.vmem %s0, %s236
      %s238 = smul.u32 %s20, 2
      %s239 = sadd.s32 %s238, %s21
      %s240 = smul.u32 8, %s239
      %s241 = smul.u32 %s20, 2
      %s242 = sadd.s32 %s241, %s21
      %s243 = smul.u32 8, %s242
      %p244 = scmp.lt.s32.totalorder %s243, 31
      %s245 = scalar_select %p244, %s243, 31
      %s246 = smul.addr %s245, 4
      %s247 = scalar_lea.vmem %s2, %s246
      %s248 = smul.u32 %s20, 2
      %s249 = sadd.s32 %s248, %s21
      %s250 = smul.u32 8, %s249
      %p251 = scmp.lt.s32.totalorder %s20, 1
      %s252 = scalar_select %p251, %s20, 1
      %s253 = scalar_lea.vmem %s3, %s252
      %p254 = scmp.lt.s32.totalorder %s20, 1
      %s255 = scalar_select %p254, %s20, 1
      %s256 = scalar_lea.vmem %s4, %s255
      %p258 = scmp.eq.s32.totalorder %s21, 0
      // Predicated region
      $region29: #{mlp_forward.3} parent=27 // pred_check
        %p259 = pneg %p258
      $region30: #{mlp_forward.3} parent=27 // pred_check_branch
        %261 = sbr.rel (%p259) target = $region32
      $region31: #{mlp_forward.3} parent=27 // pred_region
        %262 = vst [vmem:[%s253] sm:$0x1] 0.0
        %263 = vst [vmem:[%s256] sm:$0x1] 0.0
      $region32: #{mlp_forward.3} parent=27 // pred_fallthru
        _
      %v264 = vld [vmem:[%s237] sm:$0xff]
      %v265 = vld [vmem:[%s237 + $0x8] sm:$0xff]
      %v266 = vld [vmem:[%s237 + $0x10] sm:$0xff]
      %v267 = vld [vmem:[%s237 + $0x18] sm:$0xff]
      %v268 = vld [vmem:[%s237 + $0x20] sm:$0xff]
      %v269 = vld [vmem:[%s237 + $0x28] sm:$0xff]
      %v270 = vld [vmem:[%s237 + $0x30] sm:$0xff]
      %v271 = vld [vmem:[%s237 + $0x38] sm:$0xff]
      %v272 = vld [vmem:[%s237 + $0x40] sm:$0xff]
      %v273 = vld [vmem:[%s237 + $0x48] sm:$0xff]
      %v274 = vld [vmem:[%s237 + $0x50] sm:$0xff]
      %v275 = vld [vmem:[%s237 + $0x58] sm:$0xff]
      %v276 = vld [vmem:[%s237 + $0x60] sm:$0xff]
      %v277 = vld [vmem:[%s237 + $0x68] sm:$0xff]
      %v278 = vld [vmem:[%s237 + $0x70] sm:$0xff]
      %v279 = vld [vmem:[%s237 + $0x78] sm:$0xff]
      %v280 = vld [vmem:[%s237 + $0x80] sm:$0xff]
      %v281 = vld [vmem:[%s237 + $0x88] sm:$0xff]
      %v282 = vld [vmem:[%s237 + $0x90] sm:$0xff]
      %v283 = vld [vmem:[%s237 + $0x98] sm:$0xff]
      %v284 = vld [vmem:[%s237 + $0xa0] sm:$0xff]
      %v285 = vld [vmem:[%s237 + $0xa8] sm:$0xff]
      %v286 = vld [vmem:[%s237 + $0xb0] sm:$0xff]
      %v287 = vld [vmem:[%s237 + $0xb8] sm:$0xff]
      %v288 = vld [vmem:[%s237 + $0xc0] sm:$0xff]
      %v289 = vld [vmem:[%s237 + $0xc8] sm:$0xff]
      %v290 = vld [vmem:[%s237 + $0xd0] sm:$0xff]
      %v291 = vld [vmem:[%s237 + $0xd8] sm:$0xff]
      %v292 = vld [vmem:[%s237 + $0xe0] sm:$0xff]
      %v293 = vld [vmem:[%s237 + $0xe8] sm:$0xff]
      %v294 = vld [vmem:[%s237 + $0xf0] sm:$0xff]
      %v295 = vld [vmem:[%s237 + $0xf8] sm:$0xff]
      %v296 = vld [vmem:[%s237 + $0x100] sm:$0xff]
      %v297 = vld [vmem:[%s237 + $0x108] sm:$0xff]
      %v298 = vld [vmem:[%s237 + $0x110] sm:$0xff]
      %v299 = vld [vmem:[%s237 + $0x118] sm:$0xff]
      %v300 = vld [vmem:[%s237 + $0x120] sm:$0xff]
      %v301 = vld [vmem:[%s237 + $0x128] sm:$0xff]
      %v302 = vld [vmem:[%s237 + $0x130] sm:$0xff]
      %v303 = vld [vmem:[%s237 + $0x138] sm:$0xff]
      %v304 = vld [vmem:[%s237 + $0x140] sm:$0xff]
      %v305 = vld [vmem:[%s237 + $0x148] sm:$0xff]
      %v306 = vld [vmem:[%s237 + $0x150] sm:$0xff]
      %v307 = vld [vmem:[%s237 + $0x158] sm:$0xff]
      %v308 = vld [vmem:[%s237 + $0x160] sm:$0xff]
      %v309 = vld [vmem:[%s237 + $0x168] sm:$0xff]
      %v310 = vld [vmem:[%s237 + $0x170] sm:$0xff]
      %v311 = vld [vmem:[%s237 + $0x178] sm:$0xff]
      %v312 = vld [vmem:[%s237 + $0x180] sm:$0xff]
      %v313 = vld [vmem:[%s237 + $0x188] sm:$0xff]
      %v314 = vld [vmem:[%s237 + $0x190] sm:$0xff]
      %v315 = vld [vmem:[%s237 + $0x198] sm:$0xff]
      %v316 = vld [vmem:[%s237 + $0x1a0] sm:$0xff]
      %v317 = vld [vmem:[%s237 + $0x1a8] sm:$0xff]
      %v318 = vld [vmem:[%s237 + $0x1b0] sm:$0xff]
      %v319 = vld [vmem:[%s237 + $0x1b8] sm:$0xff]
      %v320 = vpack.c.bf16 %v271, %v264
      %v321 = vpack.c.bf16 %v272, %v265
      %v322 = vpack.c.bf16 %v273, %v266
      %v323 = vpack.c.bf16 %v274, %v267
      %v324 = vpack.c.bf16 %v275, %v268
      %v325 = vpack.c.bf16 %v276, %v269
      %v326 = vpack.c.bf16 %v277, %v270
      %v327 = vpack.c.bf16 %v285, %v278
      %v328 = vpack.c.bf16 %v286, %v279
      %v329 = vpack.c.bf16 %v287, %v280
      %v330 = vpack.c.bf16 %v288, %v281
      %v331 = vpack.c.bf16 %v289, %v282
      %v332 = vpack.c.bf16 %v290, %v283
      %v333 = vpack.c.bf16 %v291, %v284
      %v334 = vpack.c.bf16 %v299, %v292
      %v335 = vpack.c.bf16 %v300, %v293
      %v336 = vpack.c.bf16 %v301, %v294
      %v337 = vpack.c.bf16 %v302, %v295
      %v338 = vpack.c.bf16 %v303, %v296
      %v339 = vpack.c.bf16 %v304, %v297
      %v340 = vpack.c.bf16 %v305, %v298
      %v341 = vpack.c.bf16 %v313, %v306
      %v342 = vpack.c.bf16 %v314, %v307
      %v343 = vpack.c.bf16 %v315, %v308
      %v344 = vpack.c.bf16 %v316, %v309
      %v345 = vpack.c.bf16 %v317, %v310
      %v346 = vpack.c.bf16 %v318, %v311
      %v347 = vpack.c.bf16 %v319, %v312
      %v348 = vld [vmem:[%s1] sm:$0xf]
      %v349 = vld [vmem:[%s1 + $0x4] sm:$0xf]
      %v350 = vld [vmem:[%s1 + $0x8] sm:$0xf]
      %v351 = vld [vmem:[%s1 + $0xc] sm:$0xf]
      %v352 = vld [vmem:[%s1 + $0x10] sm:$0xf]
      %v353 = vld [vmem:[%s1 + $0x14] sm:$0xf]
      %v354 = vld [vmem:[%s1 + $0x18] sm:$0xf]
      %v355 = vld [vmem:[%s1 + $0x1c] sm:$0xf]
      %v356 = vld [vmem:[%s1 + $0x20] sm:$0xf]
      %v357 = vld [vmem:[%s1 + $0x24] sm:$0xf]
      %v358 = vld [vmem:[%s1 + $0x28] sm:$0xf]
      %v359 = vld [vmem:[%s1 + $0x2c] sm:$0xf]
      %v360 = vld [vmem:[%s1 + $0x30] sm:$0xf]
      %v361 = vld [vmem:[%s1 + $0x34] sm:$0xf]
      %v362 = vld [vmem:[%s1 + $0x38] sm:$0xf]
      %v363 = vld [vmem:[%s1 + $0x3c] sm:$0xf]
      %v364 = vld [vmem:[%s1 + $0x40] sm:$0xf]
      %v365 = vld [vmem:[%s1 + $0x44] sm:$0xf]
      %v366 = vld [vmem:[%s1 + $0x48] sm:$0xf]
      %v367 = vld [vmem:[%s1 + $0x4c] sm:$0xf]
      %v368 = vld [vmem:[%s1 + $0x50] sm:$0xf]
      %v369 = vld [vmem:[%s1 + $0x54] sm:$0xf]
      %v370 = vld [vmem:[%s1 + $0x58] sm:$0xf]
      %v371 = vld [vmem:[%s1 + $0x5c] sm:$0xf]
      %v372 = vld [vmem:[%s1 + $0x60] sm:$0xf]
      %v373 = vld [vmem:[%s1 + $0x64] sm:$0xf]
      %v374 = vld [vmem:[%s1 + $0x68] sm:$0xf]
      %v375 = vld [vmem:[%s1 + $0x6c] sm:$0xf]
      %v376 = vld [vmem:[%s1 + $0x70] sm:$0xf]
      %v377 = vld [vmem:[%s1 + $0x74] sm:$0xf]
      %v378 = vld [vmem:[%s1 + $0x78] sm:$0xf]
      %v379 = vld [vmem:[%s1 + $0x7c] sm:$0xf]
      %v380 = vld [vmem:[%s1 + $0x80] sm:$0xf]
      %v381 = vld [vmem:[%s1 + $0x84] sm:$0xf]
      %v382 = vld [vmem:[%s1 + $0x88] sm:$0xf]
      %v383 = vld [vmem:[%s1 + $0x8c] sm:$0xf]
      %v384 = vld [vmem:[%s1 + $0x90] sm:$0xf]
      %v385 = vld [vmem:[%s1 + $0x94] sm:$0xf]
      %v386 = vld [vmem:[%s1 + $0x98] sm:$0xf]
      %v387 = vld [vmem:[%s1 + $0x9c] sm:$0xf]
      %v388 = vld [vmem:[%s1 + $0xa0] sm:$0xf]
      %v389 = vld [vmem:[%s1 + $0xa4] sm:$0xf]
      %v390 = vld [vmem:[%s1 + $0xa8] sm:$0xf]
      %v391 = vld [vmem:[%s1 + $0xac] sm:$0xf]
      %v392 = vld [vmem:[%s1 + $0xb0] sm:$0xf]
      %v393 = vld [vmem:[%s1 + $0xb4] sm:$0xf]
      %v394 = vld [vmem:[%s1 + $0xb8] sm:$0xf]
      %v395 = vld [vmem:[%s1 + $0xbc] sm:$0xf]
      %v396 = vld [vmem:[%s1 + $0xc0] sm:$0xf]
      %v397 = vld [vmem:[%s1 + $0xc4] sm:$0xf]
      %v398 = vld [vmem:[%s1 + $0xc8] sm:$0xf]
      %v399 = vld [vmem:[%s1 + $0xcc] sm:$0xf]
      %v400 = vld [vmem:[%s1 + $0xd0] sm:$0xf]
      %v401 = vld [vmem:[%s1 + $0xd4] sm:$0xf]
      %v402 = vld [vmem:[%s1 + $0xd8] sm:$0xf]
      %v403 = vld [vmem:[%s1 + $0xdc] sm:$0xf]
      %v404 = vld [vmem:[%s1 + $0xe0] sm:$0xf]
      %v405 = vld [vmem:[%s1 + $0xe4] sm:$0xf]
      %v406 = vld [vmem:[%s1 + $0xe8] sm:$0xf]
      %v407 = vld [vmem:[%s1 + $0xec] sm:$0xf]
      %v408 = vld [vmem:[%s1 + $0xf0] sm:$0xf]
      %v409 = vld [vmem:[%s1 + $0xf4] sm:$0xf]
      %v410 = vld [vmem:[%s1 + $0xf8] sm:$0xf]
      %v411 = vld [vmem:[%s1 + $0xfc] sm:$0xf]
      %v412 = vld [vmem:[%s1 + $0x100] sm:$0xf]
      %v413 = vld [vmem:[%s1 + $0x104] sm:$0xf]
      %v414 = vld [vmem:[%s1 + $0x108] sm:$0xf]
      %v415 = vld [vmem:[%s1 + $0x10c] sm:$0xf]
      %v416 = vld [vmem:[%s1 + $0x110] sm:$0xf]
      %v417 = vld [vmem:[%s1 + $0x114] sm:$0xf]
      %v418 = vld [vmem:[%s1 + $0x118] sm:$0xf]
      %v419 = vld [vmem:[%s1 + $0x11c] sm:$0xf]
      %v420 = vld [vmem:[%s1 + $0x120] sm:$0xf]
      %v421 = vld [vmem:[%s1 + $0x124] sm:$0xf]
      %v422 = vld [vmem:[%s1 + $0x128] sm:$0xf]
      %v423 = vld [vmem:[%s1 + $0x12c] sm:$0xf]
      %v424 = vld [vmem:[%s1 + $0x130] sm:$0xf]
      %v425 = vld [vmem:[%s1 + $0x134] sm:$0xf]
      %v426 = vld [vmem:[%s1 + $0x138] sm:$0xf]
      %v427 = vld [vmem:[%s1 + $0x13c] sm:$0xf]
      %v428 = vld [vmem:[%s1 + $0x140] sm:$0xf]
      %v429 = vld [vmem:[%s1 + $0x144] sm:$0xf]
      %v430 = vld [vmem:[%s1 + $0x148] sm:$0xf]
      %v431 = vld [vmem:[%s1 + $0x14c] sm:$0xf]
      %v432 = vld [vmem:[%s1 + $0x150] sm:$0xf]
      %v433 = vld [vmem:[%s1 + $0x154] sm:$0xf]
      %v434 = vld [vmem:[%s1 + $0x158] sm:$0xf]
      %v435 = vld [vmem:[%s1 + $0x15c] sm:$0xf]
      %v436 = vld [vmem:[%s1 + $0x160] sm:$0xf]
      %v437 = vld [vmem:[%s1 + $0x164] sm:$0xf]
      %v438 = vld [vmem:[%s1 + $0x168] sm:$0xf]
      %v439 = vld [vmem:[%s1 + $0x16c] sm:$0xf]
      %v440 = vld [vmem:[%s1 + $0x170] sm:$0xf]
      %v441 = vld [vmem:[%s1 + $0x174] sm:$0xf]
      %v442 = vld [vmem:[%s1 + $0x178] sm:$0xf]
      %v443 = vld [vmem:[%s1 + $0x17c] sm:$0xf]
      %v444 = vld [vmem:[%s1 + $0x180] sm:$0xf]
      %v445 = vld [vmem:[%s1 + $0x184] sm:$0xf]
      %v544 = vunpack.c.l.b16 %v348
      %v545 = vunpack.c.l.b16 %v349
      %v546 = vunpack.c.l.b16 %v350
      %v547 = vunpack.c.l.b16 %v351
      %v548 = vunpack.c.l.b16 %v352
      %v549 = vunpack.c.l.b16 %v353
      %v550 = vunpack.c.l.b16 %v354
      %v551 = vunpack.c.l.b16 %v355
      %v552 = vunpack.c.l.b16 %v356
      %v553 = vunpack.c.l.b16 %v357
      %v554 = vunpack.c.l.b16 %v358
      %v555 = vunpack.c.l.b16 %v359
      %v556 = vunpack.c.l.b16 %v360
      %v557 = vunpack.c.l.b16 %v361
      %v558 = vunpack.c.l.b16 %v362
      %v559 = vunpack.c.l.b16 %v363
      %v560 = vunpack.c.l.b16 %v364
      %v561 = vunpack.c.l.b16 %v365
      %v562 = vunpack.c.l.b16 %v366
      %v563 = vunpack.c.l.b16 %v367
      %v564 = vunpack.c.l.b16 %v368
      %v565 = vunpack.c.l.b16 %v369
      %v566 = vunpack.c.l.b16 %v370
      %v567 = vunpack.c.l.b16 %v371
      %v568 = vunpack.c.l.b16 %v372
      %v569 = vunpack.c.l.b16 %v373
      %v570 = vunpack.c.l.b16 %v374
      %v571 = vunpack.c.l.b16 %v375
      %v572 = vunpack.c.l.b16 %v376
      %v573 = vunpack.c.l.b16 %v377
      %v574 = vunpack.c.l.b16 %v378
      %v575 = vunpack.c.l.b16 %v379
      %v576 = vunpack.c.l.b16 %v380
      %v577 = vunpack.c.l.b16 %v381
      %v578 = vunpack.c.l.b16 %v382
      %v579 = vunpack.c.l.b16 %v383
      %v580 = vunpack.c.l.b16 %v384
      %v581 = vunpack.c.l.b16 %v385
      %v582 = vunpack.c.l.b16 %v386
      %v583 = vunpack.c.l.b16 %v387
      %v584 = vunpack.c.l.b16 %v388
      %v585 = vunpack.c.l.b16 %v389
      %v586 = vunpack.c.l.b16 %v390
      %v587 = vunpack.c.l.b16 %v391
      %v588 = vunpack.c.l.b16 %v392
      %v589 = vunpack.c.l.b16 %v393
      %v590 = vunpack.c.l.b16 %v394
      %v591 = vunpack.c.l.b16 %v395
      %v592 = vunpack.c.l.b16 %v396
      %v593 = vunpack.c.l.b16 %v397
      %v594 = vunpack.c.l.b16 %v398
      %v595 = vunpack.c.l.b16 %v399
      %v596 = vunpack.c.l.b16 %v400
      %v597 = vunpack.c.l.b16 %v401
      %v598 = vunpack.c.l.b16 %v402
      %v599 = vunpack.c.l.b16 %v403
      %v600 = vunpack.c.l.b16 %v404
      %v601 = vunpack.c.l.b16 %v405
      %v602 = vunpack.c.l.b16 %v406
      %v603 = vunpack.c.l.b16 %v407
      %v604 = vunpack.c.l.b16 %v408
      %v605 = vunpack.c.l.b16 %v409
      %v606 = vunpack.c.l.b16 %v410
      %v607 = vunpack.c.l.b16 %v411
      %v608 = vunpack.c.l.b16 %v412
      %v609 = vunpack.c.l.b16 %v413
      %v610 = vunpack.c.l.b16 %v414
      %v611 = vunpack.c.l.b16 %v415
      %v612 = vunpack.c.l.b16 %v416
      %v613 = vunpack.c.l.b16 %v417
      %v614 = vunpack.c.l.b16 %v418
      %v615 = vunpack.c.l.b16 %v419
      %v616 = vunpack.c.l.b16 %v420
      %v617 = vunpack.c.l.b16 %v421
      %v618 = vunpack.c.l.b16 %v422
      %v619 = vunpack.c.l.b16 %v423
      %v620 = vunpack.c.l.b16 %v424
      %v621 = vunpack.c.l.b16 %v425
      %v622 = vunpack.c.l.b16 %v426
      %v623 = vunpack.c.l.b16 %v427
      %v624 = vunpack.c.l.b16 %v428
      %v625 = vunpack.c.l.b16 %v429
      %v626 = vunpack.c.l.b16 %v430
      %v627 = vunpack.c.l.b16 %v431
      %v628 = vunpack.c.l.b16 %v432
      %v629 = vunpack.c.l.b16 %v433
      %v630 = vunpack.c.l.b16 %v434
      %v631 = vunpack.c.l.b16 %v435
      %v632 = vunpack.c.l.b16 %v436
      %v633 = vunpack.c.l.b16 %v437
      %v634 = vunpack.c.l.b16 %v438
      %v635 = vunpack.c.l.b16 %v439
      %v636 = vunpack.c.l.b16 %v440
      %v637 = vunpack.c.l.b16 %v441
      %v638 = vunpack.c.l.b16 %v442
      %v639 = vunpack.c.l.b16 %v443
      %v640 = vunpack.c.l.b16 %v444
      %v641 = vunpack.c.l.b16 %v445
      %v642 = vpack.c.b16 %v545, %v544
      %v643 = vpack.c.b16 %v547, %v546
      %v644 = vpack.c.b16 %v549, %v548
      %v645 = vpack.c.b16 %v551, %v550
      %v646 = vpack.c.b16 %v553, %v552
      %v647 = vpack.c.b16 %v555, %v554
      %v648 = vpack.c.b16 %v557, %v556
      %v649 = vpack.c.b16 %v559, %v558
      %v650 = vpack.c.b16 %v561, %v560
      %v651 = vpack.c.b16 %v563, %v562
      %v652 = vpack.c.b16 %v565, %v564
      %v653 = vpack.c.b16 %v567, %v566
      %v654 = vpack.c.b16 %v569, %v568
      %v655 = vpack.c.b16 %v571, %v570
      %v656 = vpack.c.b16 %v573, %v572
      %v657 = vpack.c.b16 %v575, %v574
      %v658 = vpack.c.b16 %v577, %v576
      %v659 = vpack.c.b16 %v579, %v578
      %v660 = vpack.c.b16 %v581, %v580
      %v661 = vpack.c.b16 %v583, %v582
      %v662 = vpack.c.b16 %v585, %v584
      %v663 = vpack.c.b16 %v587, %v586
      %v664 = vpack.c.b16 %v589, %v588
      %v665 = vpack.c.b16 %v591, %v590
      %v666 = vpack.c.b16 %v593, %v592
      %v667 = vpack.c.b16 %v595, %v594
      %v668 = vpack.c.b16 %v597, %v596
      %v669 = vpack.c.b16 %v599, %v598
      %v670 = vpack.c.b16 %v601, %v600
      %v671 = vpack.c.b16 %v603, %v602
      %v672 = vpack.c.b16 %v605, %v604
      %v673 = vpack.c.b16 %v607, %v606
      %v674 = vpack.c.b16 %v609, %v608
      %v675 = vpack.c.b16 %v611, %v610
      %v676 = vpack.c.b16 %v613, %v612
      %v677 = vpack.c.b16 %v615, %v614
      %v678 = vpack.c.b16 %v617, %v616
      %v679 = vpack.c.b16 %v619, %v618
      %v680 = vpack.c.b16 %v621, %v620
      %v681 = vpack.c.b16 %v623, %v622
      %v682 = vpack.c.b16 %v625, %v624
      %v683 = vpack.c.b16 %v627, %v626
      %v684 = vpack.c.b16 %v629, %v628
      %v685 = vpack.c.b16 %v631, %v630
      %v686 = vpack.c.b16 %v633, %v632
      %v687 = vpack.c.b16 %v635, %v634
      %v688 = vpack.c.b16 %v637, %v636
      %v689 = vpack.c.b16 %v639, %v638
      %v690 = vpack.c.b16 %v641, %v640
      %vm740 = vcmask 130048
      %v742 = vsel %vm740, %v326, 0
      %v745 = vsel %vm740, %v333, 0
      %v748 = vsel %vm740, %v340, 0
      %v751 = vsel %vm740, %v347, 0
      %753 = vmatpush.bf16.msra.mxu0 %v649
      %754 = vmatpush.bf16.msra.mxu0 %v648
      %755 = vmatpush.bf16.msra.mxu0 %v647
      %756 = vmatpush.bf16.msra.mxu0 %v646
      %757 = vmatpush.bf16.msra.mxu0 %v645
      %758 = vmatpush.bf16.msra.mxu0 %v644
      %759 = vmatpush.bf16.msra.mxu0 %v643
      %760 = vmatpush.bf16.msra.mxu0 %v642
      %761 = vmatmul.bf16.gmra.mxu0 %v320
      %v762 = vpop.f32.mrf.mxu0
      %v763 = vadd.f32 0.0, %v762
      %v764 = vpop.f32.mrf.mxu0
      %v765 = vadd.f32 0.0, %v764
      %766 = vmatmul.bf16.gmra.mxu0 %v327
      %v767 = vpop.f32.mrf.mxu0
      %v768 = vadd.f32 0.0, %v767
      %v769 = vpop.f32.mrf.mxu0
      %v770 = vadd.f32 0.0, %v769
      %771 = vmatmul.bf16.gmra.mxu0 %v334
      %v772 = vpop.f32.mrf.mxu0
      %v773 = vadd.f32 0.0, %v772
      %v774 = vpop.f32.mrf.mxu0
      %v775 = vadd.f32 0.0, %v774
      %776 = vmatmul.bf16.gmra.mxu0 %v341
      %v777 = vpop.f32.mrf.mxu0
      %v778 = vadd.f32 0.0, %v777
      %v779 = vpop.f32.mrf.mxu0
      %v780 = vadd.f32 0.0, %v779
      %781 = vdwg.mxu0
      %782 = vmatpush.bf16.msra.mxu0 %v657
      %783 = vmatpush.bf16.msra.mxu0 %v656
      %784 = vmatpush.bf16.msra.mxu0 %v655
      %785 = vmatpush.bf16.msra.mxu0 %v654
      %786 = vmatpush.bf16.msra.mxu0 %v653
      %787 = vmatpush.bf16.msra.mxu0 %v652
      %788 = vmatpush.bf16.msra.mxu0 %v651
      %789 = vmatpush.bf16.msra.mxu0 %v650
      %790 = vmatmul.bf16.gmra.mxu0 %v321
      %v791 = vpop.f32.mrf.mxu0
      %v792 = vadd.f32 %v763, %v791
      %v793 = vpop.f32.mrf.mxu0
      %v794 = vadd.f32 %v765, %v793
      %795 = vmatmul.bf16.gmra.mxu0 %v328
      %v796 = vpop.f32.mrf.mxu0
      %v797 = vadd.f32 %v768, %v796
      %v798 = vpop.f32.mrf.mxu0
      %v799 = vadd.f32 %v770, %v798
      %800 = vmatmul.bf16.gmra.mxu0 %v335
      %v801 = vpop.f32.mrf.mxu0
      %v802 = vadd.f32 %v773, %v801
      %v803 = vpop.f32.mrf.mxu0
      %v804 = vadd.f32 %v775, %v803
      %805 = vmatmul.bf16.gmra.mxu0 %v342
      %v806 = vpop.f32.mrf.mxu0
      %v807 = vadd.f32 %v778, %v806
      %v808 = vpop.f32.mrf.mxu0
      %v809 = vadd.f32 %v780, %v808
      %810 = vdwg.mxu0
      %811 = vmatpush.bf16.msra.mxu0 %v665
      %812 = vmatpush.bf16.msra.mxu0 %v664
      %813 = vmatpush.bf16.msra.mxu0 %v663
      %814 = vmatpush.bf16.msra.mxu0 %v662
      %815 = vmatpush.bf16.msra.mxu0 %v661
      %816 = vmatpush.bf16.msra.mxu0 %v660
      %817 = vmatpush.bf16.msra.mxu0 %v659
      %818 = vmatpush.bf16.msra.mxu0 %v658
      %819 = vmatmul.bf16.gmra.mxu0 %v322
      %v820 = vpop.f32.mrf.mxu0
      %v821 = vadd.f32 %v792, %v820
      %v822 = vpop.f32.mrf.mxu0
      %v823 = vadd.f32 %v794, %v822
      %824 = vmatmul.bf16.gmra.mxu0 %v329
      %v825 = vpop.f32.mrf.mxu0
      %v826 = vadd.f32 %v797, %v825
      %v827 = vpop.f32.mrf.mxu0
      %v828 = vadd.f32 %v799, %v827
      %829 = vmatmul.bf16.gmra.mxu0 %v336
      %v830 = vpop.f32.mrf.mxu0
      %v831 = vadd.f32 %v802, %v830
      %v832 = vpop.f32.mrf.mxu0
      %v833 = vadd.f32 %v804, %v832
      %834 = vmatmul.bf16.gmra.mxu0 %v343
      %v835 = vpop.f32.mrf.mxu0
      %v836 = vadd.f32 %v807, %v835
      %v837 = vpop.f32.mrf.mxu0
      %v838 = vadd.f32 %v809, %v837
      %839 = vdwg.mxu0
      %840 = vmatpush.bf16.msra.mxu0 %v673
      %841 = vmatpush.bf16.msra.mxu0 %v672
      %842 = vmatpush.bf16.msra.mxu0 %v671
      %843 = vmatpush.bf16.msra.mxu0 %v670
      %844 = vmatpush.bf16.msra.mxu0 %v669
      %845 = vmatpush.bf16.msra.mxu0 %v668
      %846 = vmatpush.bf16.msra.mxu0 %v667
      %847 = vmatpush.bf16.msra.mxu0 %v666
      %848 = vmatmul.bf16.gmra.mxu0 %v323
      %v849 = vpop.f32.mrf.mxu0
      %v850 = vadd.f32 %v821, %v849
      %v851 = vpop.f32.mrf.mxu0
      %v852 = vadd.f32 %v823, %v851
      %853 = vmatmul.bf16.gmra.mxu0 %v330
      %v854 = vpop.f32.mrf.mxu0
      %v855 = vadd.f32 %v826, %v854
      %v856 = vpop.f32.mrf.mxu0
      %v857 = vadd.f32 %v828, %v856
      %858 = vmatmul.bf16.gmra.mxu0 %v337
      %v859 = vpop.f32.mrf.mxu0
      %v860 = vadd.f32 %v831, %v859
      %v861 = vpop.f32.mrf.mxu0
      %v862 = vadd.f32 %v833, %v861
      %863 = vmatmul.bf16.gmra.mxu0 %v344
      %v864 = vpop.f32.mrf.mxu0
      %v865 = vadd.f32 %v836, %v864
      %v866 = vpop.f32.mrf.mxu0
      %v867 = vadd.f32 %v838, %v866
      %868 = vdwg.mxu0
      %869 = vmatpush.bf16.msra.mxu0 %v681
      %870 = vmatpush.bf16.msra.mxu0 %v680
      %871 = vmatpush.bf16.msra.mxu0 %v679
      %872 = vmatpush.bf16.msra.mxu0 %v678
      %873 = vmatpush.bf16.msra.mxu0 %v677
      %874 = vmatpush.bf16.msra.mxu0 %v676
      %875 = vmatpush.bf16.msra.mxu0 %v675
      %876 = vmatpush.bf16.msra.mxu0 %v674
      %877 = vmatmul.bf16.gmra.mxu0 %v324
      %v878 = vpop.f32.mrf.mxu0
      %v879 = vadd.f32 %v850, %v878
      %v880 = vpop.f32.mrf.mxu0
      %v881 = vadd.f32 %v852, %v880
      %882 = vmatmul.bf16.gmra.mxu0 %v331
      %v883 = vpop.f32.mrf.mxu0
      %v884 = vadd.f32 %v855, %v883
      %v885 = vpop.f32.mrf.mxu0
      %v886 = vadd.f32 %v857, %v885
      %887 = vmatmul.bf16.gmra.mxu0 %v338
      %v888 = vpop.f32.mrf.mxu0
      %v889 = vadd.f32 %v860, %v888
      %v890 = vpop.f32.mrf.mxu0
      %v891 = vadd.f32 %v862, %v890
      %892 = vmatmul.bf16.gmra.mxu0 %v345
      %v893 = vpop.f32.mrf.mxu0
      %v894 = vadd.f32 %v865, %v893
      %v895 = vpop.f32.mrf.mxu0
      %v896 = vadd.f32 %v867, %v895
      %897 = vdwg.mxu0
      %898 = vmatpush.bf16.msra.mxu0 %v689
      %899 = vmatpush.bf16.msra.mxu0 %v688
      %900 = vmatpush.bf16.msra.mxu0 %v687
      %901 = vmatpush.bf16.msra.mxu0 %v686
      %902 = vmatpush.bf16.msra.mxu0 %v685
      %903 = vmatpush.bf16.msra.mxu0 %v684
      %904 = vmatpush.bf16.msra.mxu0 %v683
      %905 = vmatpush.bf16.msra.mxu0 %v682
      %906 = vmatmul.bf16.gmra.mxu0 %v325
      %v907 = vpop.f32.mrf.mxu0
      %v908 = vadd.f32 %v879, %v907
      %v909 = vpop.f32.mrf.mxu0
      %v910 = vadd.f32 %v881, %v909
      %911 = vmatmul.bf16.gmra.mxu0 %v332
      %v912 = vpop.f32.mrf.mxu0
      %v913 = vadd.f32 %v884, %v912
      %v914 = vpop.f32.mrf.mxu0
      %v915 = vadd.f32 %v886, %v914
      %916 = vmatmul.bf16.gmra.mxu0 %v339
      %v917 = vpop.f32.mrf.mxu0
      %v918 = vadd.f32 %v889, %v917
      %v919 = vpop.f32.mrf.mxu0
      %v920 = vadd.f32 %v891, %v919
      %921 = vmatmul.bf16.gmra.mxu0 %v346
      %v922 = vpop.f32.mrf.mxu0
      %v923 = vadd.f32 %v894, %v922
      %v924 = vpop.f32.mrf.mxu0
      %v925 = vadd.f32 %v896, %v924
      %926 = vdwg.mxu0
      %927 = vmatpush.bf16.msra.mxu0 0
      %928 = vmatpush.bf16.msra.mxu0 0
      %929 = vmatpush.bf16.msra.mxu0 0
      %930 = vmatpush.bf16.msra.mxu0 0
      %931 = vmatpush.bf16.msra.mxu0 0
      %932 = vmatpush.bf16.msra.mxu0 0
      %933 = vmatpush.bf16.msra.mxu0 0
      %934 = vmatpush.bf16.msra.mxu0 %v690
      %935 = vmatmul.bf16.gmra.mxu0 %v742
      %v936 = vpop.f32.mrf.mxu0
      %v937 = vadd.f32 %v908, %v936
      %v938 = vpop.f32.mrf.mxu0
      %v939 = vadd.f32 %v910, %v938
      %940 = vmatmul.bf16.gmra.mxu0 %v745
      %v941 = vpop.f32.mrf.mxu0
      %v942 = vadd.f32 %v913, %v941
      %v943 = vpop.f32.mrf.mxu0
      %v944 = vadd.f32 %v915, %v943
      %945 = vmatmul.bf16.gmra.mxu0 %v748
      %v946 = vpop.f32.mrf.mxu0
      %v947 = vadd.f32 %v918, %v946
      %v948 = vpop.f32.mrf.mxu0
      %v949 = vadd.f32 %v920, %v948
      %950 = vmatmul.bf16.gmra.mxu0 %v751
      %v951 = vpop.f32.mrf.mxu0
      %v952 = vadd.f32 %v923, %v951
      %v953 = vpop.f32.mrf.mxu0
      %v954 = vadd.f32 %v925, %v953
      %955 = vdwg.mxu0
      %v956 = vpack.c.bf16 %v937, %v937
      %v957 = vpack.c.bf16 %v939, %v939
      %v958 = vpack.c.bf16 %v942, %v942
      %v959 = vpack.c.bf16 %v944, %v944
      %v960 = vpack.c.bf16 %v947, %v947
      %v961 = vpack.c.bf16 %v949, %v949
      %v962 = vpack.c.bf16 %v952, %v952
      %v963 = vpack.c.bf16 %v954, %v954
      %964 = vst [vmem:[%s247] sm:$0xf] %v956
      %965 = vst [vmem:[%s247 + $0x4] sm:$0xf] %v957
      %966 = vst [vmem:[%s247 + $0x8] sm:$0xf] %v958
      %967 = vst [vmem:[%s247 + $0xc] sm:$0xf] %v959
      %968 = vst [vmem:[%s247 + $0x10] sm:$0xf] %v960
      %969 = vst [vmem:[%s247 + $0x14] sm:$0xf] %v961
      %970 = vst [vmem:[%s247 + $0x18] sm:$0xf] %v962
      %971 = vst [vmem:[%s247 + $0x1c] sm:$0xf] %v963
      %v972 = vunpack.c.l.bf16 %v956
      %v973 = vunpack.c.l.bf16 %v957
      %v974 = vunpack.c.l.bf16 %v958
      %v975 = vunpack.c.l.bf16 %v959
      %v976 = vunpack.c.l.bf16 %v960
      %v977 = vunpack.c.l.bf16 %v961
      %v978 = vunpack.c.l.bf16 %v962
      %v979 = vunpack.c.l.bf16 %v963
      %v980 = vld [vmem:[%s253] sm:$0x1]
      %v981 = vadd.f32 %v972, %v973
      %v982 = vadd.f32 %v981, %v974
      %v983 = vadd.f32 %v982, %v975
      %v984 = vadd.f32 %v983, %v976
      %v985 = vadd.f32 %v984, %v977
      %v986 = vadd.f32 %v985, %v978
      %v987 = vadd.f32 %v986, %v979
      %v988 = vrot.slane %v987, 4
      %v989 = vadd.f32 %v987, %v988
      %v990 = vrot.slane %v989, 2
      %v991 = vadd.f32 %v989, %v990
      %v992 = vrot.slane %v991, 1
      %v993 = vadd.f32 %v991, %v992
      %v994 = vadd.f32 %v980, %v993
      %995 = vst [vmem:[%s253] sm:$0x1] %v994
      %v996 = vld [vmem:[%s256] sm:$0x1]
      %v997 = vmul.f32 %v972, %v972
      %v998 = vmul.f32 %v973, %v973
      %v999 = vmul.f32 %v974, %v974
      %v1000 = vmul.f32 %v975, %v975
      %v1001 = vmul.f32 %v976, %v976
      %v1002 = vmul.f32 %v977, %v977
      %v1003 = vmul.f32 %v978, %v978
      %v1004 = vmul.f32 %v979, %v979
      %v1005 = vadd.f32 %v997, %v998
      %v1006 = vadd.f32 %v1005, %v999
      %v1007 = vadd.f32 %v1006, %v1000
      %v1008 = vadd.f32 %v1007, %v1001
      %v1009 = vadd.f32 %v1008, %v1002
      %v1010 = vadd.f32 %v1009, %v1003
      %v1011 = vadd.f32 %v1010, %v1004
      %v1012 = vrot.slane %v1011, 4
      %v1013 = vadd.f32 %v1011, %v1012
      %v1014 = vrot.slane %v1013, 2
      %v1015 = vadd.f32 %v1013, %v1014
      %v1016 = vrot.slane %v1015, 1
      %v1017 = vadd.f32 %v1015, %v1016
      %v1018 = vadd.f32 %v996, %v1017
      %1019 = vst [vmem:[%s256] sm:$0x1] %v1018
      %s1020 = smul.u32 %s20, 2
      %s1021 = sadd.s32 %s1020, %s21
      %s1022 = smul.u32 8, %s1021
      %p1023 = scmp.lt.s32.totalorder %s1022, 31
      %s1024 = scalar_select %p1023, %s1022, 31
      %s1025 = smul.addr %s1024, 4
      %s1026 = scalar_lea.vmem %s2, %s1025
      %p1027 = scmp.lt.s32.totalorder %s20, 1
      %s1028 = scalar_select %p1027, %s20, 1
      %s1029 = scalar_lea.vmem %s3, %s1028
      %p1030 = scmp.lt.s32.totalorder %s20, 1
      %s1031 = scalar_select %p1030, %s20, 1
      %s1032 = scalar_lea.vmem %s4, %s1031
      // Predicated region
      $region33: #{mlp_forward.3} parent=27 // pred_check
        %p1033 = pneg %p101
      $region34: #{mlp_forward.3} parent=27 // pred_check_branch
        %1035 = sbr.rel (%p1033) target = $region36
      $region35: #{mlp_forward.3} parent=27 // pred_region
        %s1036 = smul.u32 %s20, 2
        %s1037 = sadd.s32 %s1036, %s21
        %s1038 = smul.u32 8, %s1037
      $region36: #{mlp_forward.3} parent=27 // pred_fallthru
        _
      // Predicated region
      $region37: #{mlp_forward.3} parent=27 // pred_check
        %p1039 = pneg %p127
      $region38: #{mlp_forward.3} parent=27 // pred_check_branch
        %1041 = sbr.rel (%p1039) target = $region40
      $region39: #{mlp_forward.3} parent=27 // pred_region
        _
      $region40: #{mlp_forward.3} parent=27 // pred_fallthru
        _
      // Predicated region
      $region41: #{mlp_forward.3} parent=27 // pred_check
        %p1042 = pneg %p153
      $region42: #{mlp_forward.3} parent=27 // pred_check_branch
        %1044 = sbr.rel (%p1042) target = $region44
      $region43: #{mlp_forward.3} parent=27 // pred_region
        _
      $region44: #{mlp_forward.3} parent=27 // pred_fallthru
        _
    $region28: #{mlp_forward.3} parent=5 // pred_fallthru
      _
    %p1045 = scmp.le.s32.totalorder 2, %s11
    // Predicated region
    $region45: #{mlp_forward.3} parent=5 // pred_check
      %p1046 = pneg %p1045
    $region46: #{mlp_forward.3} parent=5 // pred_check_branch
      %1048 = sbr.rel (%p1046) target = $region48
    $region47: #{mlp_forward.3} parent=5 // pred_region
      %s1049 = ssub.s32 %s11, 2
      // Predicated region
      $region49: #{mlp_forward.3} parent=47 // pred_check
        %p1050 = pneg %p107
      $region50: #{mlp_forward.3} parent=47 // pred_check_branch
        %1052 = sbr.rel (%p1050) target = $region52
      $region51: #{mlp_forward.3} parent=47 // pred_region
        %s1053 = smul.u32 %s22, 2
        %s1054 = sadd.s32 %s1053, %s23
        %s1055 = smul.u32 8, %s1054
        %p1056 = scmp.lt.s32.totalorder %s1055, 31
        %s1057 = scalar_select %p1056, %s1055, 31
        %s1058 = smul.addr %s1057, 4
        %s1059 = scalar_lea.vmem %s2, %s1058
      $region52: #{mlp_forward.3} parent=47 // pred_fallthru
        _
      // Predicated region
      $region53: #{mlp_forward.3} parent=47 // pred_check
        %p1060 = pneg %p133
      $region54: #{mlp_forward.3} parent=47 // pred_check_branch
        %1062 = sbr.rel (%p1060) target = $region56
      $region55: #{mlp_forward.3} parent=47 // pred_region
        %p1063 = scmp.lt.s32.totalorder %s22, 1
        %s1064 = scalar_select %p1063, %s22, 1
        %s1065 = scalar_lea.vmem %s3, %s1064
      $region56: #{mlp_forward.3} parent=47 // pred_fallthru
        _
      // Predicated region
      $region57: #{mlp_forward.3} parent=47 // pred_check
        %p1066 = pneg %p159
      $region58: #{mlp_forward.3} parent=47 // pred_check_branch
        %1068 = sbr.rel (%p1066) target = $region60
      $region59: #{mlp_forward.3} parent=47 // pred_region
        %p1069 = scmp.lt.s32.totalorder %s22, 1
        %s1070 = scalar_select %p1069, %s22, 1
        %s1071 = scalar_lea.vmem %s4, %s1070
      $region60: #{mlp_forward.3} parent=47 // pred_fallthru
        _
    $region48: #{mlp_forward.3} parent=5 // pred_fallthru
      _
  $region6: #{mlp_forward.3} parent=0 // loop_footer
    %s15 = sadd.s32 1, %s11
  $region7: #{mlp_forward.3} parent=0 // loop_footer_branch
    %10 = sbr.rel target = $region3
  $region8: #{mlp_forward.3} parent=0 // loop_exit
    _

// kernel: mlp_forward.5
$region0: #{mlp_forward.5}
  #allocation0 [shape = 'u32[]', space=smem, size = 0x4, offset = 0x4, fixed_abs, tag = 'smem constant byte address 0x4 - core index']
  #allocation1 [shape = 'u32[72,128]{1,0:T(1,128)}', space=vmem, size = 0x9000, scoped, tag = 'internal scratch']
  %s0 = inlined_call_operand.vmem [shape: bf16[256,256], index: 0, kind: input, shape index: {}]
  %s1 = inlined_call_operand.vmem [shape: bf16[256,128], index: 1, kind: input, shape index: {}]
  %s2 = inlined_call_operand.vmem [shape: f32[1,128], index: 2, kind: input, shape index: {}]
  %s3 = inlined_call_operand.vmem [shape: f32[2,1,256], index: 3, kind: input, shape index: {}]
  %s4 = inlined_call_operand.vmem [shape: f32[2,1,256], index: 4, kind: input, shape index: {}]
  %s5 = inlined_call_operand.vmem [shape: f32[1,256], index: 5, kind: input, shape index: {}]
  %s6 = inlined_call_operand.vmem [shape: f32[1,256], index: 6, kind: input, shape index: {}]
  %s7 = inlined_call_operand.vmem [shape: f32[256,128], index: 7, kind: output, shape index: {0}]
  %s8 = inlined_call_operand.vmem [shape: bf16[256,128], index: 8, kind: output, shape index: {1}]
  %9 = xla_tuple %s7, %s8
  %s10 = sld [smem:[#allocation0]]
  $region69: #{mlp_forward.5} parent=0
    _
  %s12 = ssub.s32 1, %s10
  %s13 = scalar_select 0, %s12, %s10
  loop: start=0, step=1, limit=6
  $region2: #{mlp_forward.5} parent=0 // loop_pre_header
    _
  $region3: #{mlp_forward.5} parent=0 // loop_header
    %s15 = sphi 0, %s19
    %p16 = scmp.ge.s32.totalorder %s15, 6
    %s25 = sphi 0, %s27
    %s28 = sphi 0, %s25
    %s29 = sphi 0, %s28
    %s45 = sphi 0, %s29
    %s49 = sphi 0, %s49
    %s51 = sphi 0, %s49
    %s52 = sphi 0, %s51
    %s66 = sphi 0, %s52
    %s70 = sphi 0, %s70
    %s72 = sphi 0, %s70
    %s73 = sphi 0, %s72
    %s87 = sphi 0, %s73
    %s91 = sphi 0, %s91
    %s93 = sphi 0, %s91
    %s94 = sphi 0, %s93
    %s108 = sphi 0, %s94
    %s112 = sphi 0, %s112
    %s114 = sphi 0, %s112
    %s115 = sphi 0, %s114
    %s129 = sphi 0, %s115
    %s133 = sphi 0, %s133
    %s135 = sphi 0, %s133
    %s136 = sphi 0, %s135
    %s150 = sphi 0, %s136
    %s154 = sphi 0, %s154
    %s156 = sphi 0, %s154
    %s157 = sphi 0, %s156
    %s171 = sphi 0, %s157
    %s177 = sphi 0, %s179
    %s180 = sphi 0, %s177
    %s181 = sphi 0, %s180
    %s197 = sphi 0, %s181
    %s203 = sphi 0, %s205
    %s206 = sphi 0, %s203
    %s207 = sphi 0, %s206
    %s223 = sphi 0, %s207
  $region4: #{mlp_forward.5} parent=0 // loop_header_branch
    %18 = sbr.rel (%p16) target = $region8
  $region5: #{mlp_forward.5} parent=0 // loop_body
    %s20 = ssub.s32 %s15, 1
    %s21 = ssub.s32 %s15, 2
    %s22 = sadd.s32 %s15, 1
    %s23 = ssub.s32 %s15, %s22
    %p24 = scmp.eq.s32.totalorder %s23, 0
    %s26 = sadd.s32 %s25, 1
    %s27 = scalar_select %p24, %s25, %s26
    %p30 = pneg %p24
    %p31 = scmp.eq.s32.totalorder %s15, 3
    %p32 = por %p30, %p31
    %p33 = scmp.ne.s32.totalorder %s25, %s28
    %p34 = scmp.eq.s32.totalorder %s15, 0
    %p35 = por %p33, %p34
    %p36 = scmp.ne.s32.totalorder %s25, %s28
    %p37 = scmp.eq.s32.totalorder %s20, 3
    %p38 = por %p36, %p37
    %p39 = scmp.ne.s32.totalorder %s28, %s29
    %p40 = scmp.eq.s32.totalorder %s20, 0
    %p41 = por %p39, %p40
    %p42 = scmp.ne.s32.totalorder %s28, %s29
    %p43 = scmp.eq.s32.totalorder %s21, 3
    %p44 = por %p42, %p43
    %p46 = scmp.ne.s32.totalorder %s29, %s45
    %p47 = scmp.eq.s32.totalorder %s21, 0
    %p48 = por %p46, %p47
    %s50 = sadd.s32 %s49, 1
    %p53 = scmp.eq.s32.totalorder %s15, 3
    %p54 = scmp.ne.s32.totalorder %s49, %s51
    %p55 = scmp.eq.s32.totalorder %s15, 0
    %p56 = por %p54, %p55
    %p57 = scmp.ne.s32.totalorder %s49, %s51
    %p58 = scmp.eq.s32.totalorder %s20, 3
    %p59 = por %p57, %p58
    %p60 = scmp.ne.s32.totalorder %s51, %s52
    %p61 = scmp.eq.s32.totalorder %s20, 0
    %p62 = por %p60, %p61
    %p63 = scmp.ne.s32.totalorder %s51, %s52
    %p64 = scmp.eq.s32.totalorder %s21, 3
    %p65 = por %p63, %p64
    %p67 = scmp.ne.s32.totalorder %s52, %s66
    %p68 = scmp.eq.s32.totalorder %s21, 0
    %p69 = por %p67, %p68
    %s71 = sadd.s32 %s70, 1
    %p74 = scmp.eq.s32.totalorder %s15, 3
    %p75 = scmp.ne.s32.totalorder %s70, %s72
    %p76 = scmp.eq.s32.totalorder %s15, 0
    %p77 = por %p75, %p76
    %p78 = scmp.ne.s32.totalorder %s70, %s72
    %p79 = scmp.eq.s32.totalorder %s20, 3
    %p80 = por %p78, %p79
    %p81 = scmp.ne.s32.totalorder %s72, %s73
    %p82 = scmp.eq.s32.totalorder %s20, 0
    %p83 = por %p81, %p82
    %p84 = scmp.ne.s32.totalorder %s72, %s73
    %p85 = scmp.eq.s32.totalorder %s21, 3
    %p86 = por %p84, %p85
    %p88 = scmp.ne.s32.totalorder %s73, %s87
    %p89 = scmp.eq.s32.totalorder %s21, 0
    %p90 = por %p88, %p89
    %s92 = sadd.s32 %s91, 1
    %p95 = scmp.eq.s32.totalorder %s15, 3
    %p96 = scmp.ne.s32.totalorder %s91, %s93
    %p97 = scmp.eq.s32.totalorder %s15, 0
    %p98 = por %p96, %p97
    %p99 = scmp.ne.s32.totalorder %s91, %s93
    %p100 = scmp.eq.s32.totalorder %s20, 3
    %p101 = por %p99, %p100
    %p102 = scmp.ne.s32.totalorder %s93, %s94
    %p103 = scmp.eq.s32.totalorder %s20, 0
    %p104 = por %p102, %p103
    %p105 = scmp.ne.s32.totalorder %s93, %s94
    %p106 = scmp.eq.s32.totalorder %s21, 3
    %p107 = por %p105, %p106
    %p109 = scmp.ne.s32.totalorder %s94, %s108
    %p110 = scmp.eq.s32.totalorder %s21, 0
    %p111 = por %p109, %p110
    %s113 = sadd.s32 %s112, 1
    %p116 = scmp.eq.s32.totalorder %s15, 3
    %p117 = scmp.ne.s32.totalorder %s112, %s114
    %p118 = scmp.eq.s32.totalorder %s15, 0
    %p119 = por %p117, %p118
    %p120 = scmp.ne.s32.totalorder %s112, %s114
    %p121 = scmp.eq.s32.totalorder %s20, 3
    %p122 = por %p120, %p121
    %p123 = scmp.ne.s32.totalorder %s114, %s115
    %p124 = scmp.eq.s32.totalorder %s20, 0
    %p125 = por %p123, %p124
    %p126 = scmp.ne.s32.totalorder %s114, %s115
    %p127 = scmp.eq.s32.totalorder %s21, 3
    %p128 = por %p126, %p127
    %p130 = scmp.ne.s32.totalorder %s115, %s129
    %p131 = scmp.eq.s32.totalorder %s21, 0
    %p132 = por %p130, %p131
    %s134 = sadd.s32 %s133, 1
    %p137 = scmp.eq.s32.totalorder %s15, 3
    %p138 = scmp.ne.s32.totalorder %s133, %s135
    %p139 = scmp.eq.s32.totalorder %s15, 0
    %p140 = por %p138, %p139
    %p141 = scmp.ne.s32.totalorder %s133, %s135
    %p142 = scmp.eq.s32.totalorder %s20, 3
    %p143 = por %p141, %p142
    %p144 = scmp.ne.s32.totalorder %s135, %s136
    %p145 = scmp.eq.s32.totalorder %s20, 0
    %p146 = por %p144, %p145
    %p147 = scmp.ne.s32.totalorder %s135, %s136
    %p148 = scmp.eq.s32.totalorder %s21, 3
    %p149 = por %p147, %p148
    %p151 = scmp.ne.s32.totalorder %s136, %s150
    %p152 = scmp.eq.s32.totalorder %s21, 0
    %p153 = por %p151, %p152
    %s155 = sadd.s32 %s154, 1
    %p158 = scmp.eq.s32.totalorder %s15, 3
    %p159 = scmp.ne.s32.totalorder %s154, %s156
    %p160 = scmp.eq.s32.totalorder %s15, 0
    %p161 = por %p159, %p160
    %p162 = scmp.ne.s32.totalorder %s154, %s156
    %p163 = scmp.eq.s32.totalorder %s20, 3
    %p164 = por %p162, %p163
    %p165 = scmp.ne.s32.totalorder %s156, %s157
    %p166 = scmp.eq.s32.totalorder %s20, 0
    %p167 = por %p165, %p166
    %p168 = scmp.ne.s32.totalorder %s156, %s157
    %p169 = scmp.eq.s32.totalorder %s21, 3
    %p170 = por %p168, %p169
    %p172 = scmp.ne.s32.totalorder %s157, %s171
    %p173 = scmp.eq.s32.totalorder %s21, 0
    %p174 = por %p172, %p173
    %s175 = ssub.s32 %s15, %s22
    %p176 = scmp.eq.s32.totalorder %s175, 0
    %s178 = sadd.s32 %s177, 1
    %s179 = scalar_select %p176, %s177, %s178
    %p182 = pneg %p176
    %p183 = scmp.eq.s32.totalorder %s15, 3
    %p184 = por %p182, %p183
    %p185 = scmp.ne.s32.totalorder %s177, %s180
    %p186 = scmp.eq.s32.totalorder %s15, 0
    %p187 = por %p185, %p186
    %p188 = scmp.ne.s32.totalorder %s177, %s180
    %p189 = scmp.eq.s32.totalorder %s20, 3
    %p190 = por %p188, %p189
    %p191 = scmp.ne.s32.totalorder %s180, %s181
    %p192 = scmp.eq.s32.totalorder %s20, 0
    %p193 = por %p191, %p192
    %p194 = scmp.ne.s32.totalorder %s180, %s181
    %p195 = scmp.eq.s32.totalorder %s21, 3
    %p196 = por %p194, %p195
    %p198 = scmp.ne.s32.totalorder %s181, %s197
    %p199 = scmp.eq.s32.totalorder %s21, 0
    %p200 = por %p198, %p199
    %s201 = ssub.s32 %s15, %s22
    %p202 = scmp.eq.s32.totalorder %s201, 0
    %s204 = sadd.s32 %s203, 1
    %s205 = scalar_select %p202, %s203, %s204
    %p208 = pneg %p202
    %p209 = scmp.eq.s32.totalorder %s15, 3
    %p210 = por %p208, %p209
    %p211 = scmp.ne.s32.totalorder %s203, %s206
    %p212 = scmp.eq.s32.totalorder %s15, 0
    %p213 = por %p211, %p212
    %p214 = scmp.ne.s32.totalorder %s203, %s206
    %p215 = scmp.eq.s32.totalorder %s20, 3
    %p216 = por %p214, %p215
    %p217 = scmp.ne.s32.totalorder %s206, %s207
    %p218 = scmp.eq.s32.totalorder %s20, 0
    %p219 = por %p217, %p218
    %p220 = scmp.ne.s32.totalorder %s206, %s207
    %p221 = scmp.eq.s32.totalorder %s21, 3
    %p222 = por %p220, %p221
    %p224 = scmp.ne.s32.totalorder %s207, %s223
    %p225 = scmp.eq.s32.totalorder %s21, 0
    %p226 = por %p224, %p225
    %p227 = scmp.le.s32.totalorder 1, %s15
    %p228 = scmp.lt.s32.totalorder %s15, 5
    %p229 = pnand %p227, %p228
    %p230 = pneg %p229
    // Predicated region
    $region9: #{mlp_forward.5} parent=5 // pred_check
      _
    $region10: #{mlp_forward.5} parent=5 // pred_check_branch
      %232 = sbr.rel (%p229) target = $region12
    $region11: #{mlp_forward.5} parent=5 // pred_region
      %s233 = ssub.s32 %s15, 1
      // Predicated region
      $region13: #{mlp_forward.5} parent=11 // pred_check
        %p234 = pneg %p62
      $region14: #{mlp_forward.5} parent=11 // pred_check_branch
        %236 = sbr.rel (%p234) target = $region16
      $region15: #{mlp_forward.5} parent=11 // pred_region
        _
      $region16: #{mlp_forward.5} parent=11 // pred_fallthru
        _
      // Predicated region
      $region17: #{mlp_forward.5} parent=11 // pred_check
        %p237 = pneg %p83
      $region18: #{mlp_forward.5} parent=11 // pred_check_branch
        %239 = sbr.rel (%p237) target = $region20
      $region19: #{mlp_forward.5} parent=11 // pred_region
        _
      $region20: #{mlp_forward.5} parent=11 // pred_fallthru
        _
      // Predicated region
      $region21: #{mlp_forward.5} parent=11 // pred_check
        %p240 = pneg %p104
      $region22: #{mlp_forward.5} parent=11 // pred_check_branch
        %242 = sbr.rel (%p240) target = $region24
      $region23: #{mlp_forward.5} parent=11 // pred_region
        _
      $region24: #{mlp_forward.5} parent=11 // pred_fallthru
        _
      // Predicated region
      $region25: #{mlp_forward.5} parent=11 // pred_check
        %p243 = pneg %p125
      $region26: #{mlp_forward.5} parent=11 // pred_check_branch
        %245 = sbr.rel (%p243) target = $region28
      $region27: #{mlp_forward.5} parent=11 // pred_region
        _
      $region28: #{mlp_forward.5} parent=11 // pred_fallthru
        _
      // Predicated region
      $region29: #{mlp_forward.5} parent=11 // pred_check
        %p246 = pneg %p146
      $region30: #{mlp_forward.5} parent=11 // pred_check_branch
        %248 = sbr.rel (%p246) target = $region32
      $region31: #{mlp_forward.5} parent=11 // pred_region
        _
      $region32: #{mlp_forward.5} parent=11 // pred_fallthru
        _
      // Predicated region
      $region33: #{mlp_forward.5} parent=11 // pred_check
        %p249 = pneg %p167
      $region34: #{mlp_forward.5} parent=11 // pred_check_branch
        %251 = sbr.rel (%p249) target = $region36
      $region35: #{mlp_forward.5} parent=11 // pred_region
        _
      $region36: #{mlp_forward.5} parent=11 // pred_fallthru
        _
    $region12: #{mlp_forward.5} parent=5 // pred_fallthru
      _
    %p252 = scmp.lt.s32.totalorder %s15, 4
    // Predicated region
    $region37: #{mlp_forward.5} parent=5 // pred_check
      %p253 = pneg %p252
    $region38: #{mlp_forward.5} parent=5 // pred_check_branch
      %255 = sbr.rel (%p253) target = $region40
    $region39: #{mlp_forward.5} parent=5 // pred_region
      // Predicated region
      $region41: #{mlp_forward.5} parent=39 // pred_check
        %p256 = pneg %p35
      $region42: #{mlp_forward.5} parent=39 // pred_check_branch
        %258 = sbr.rel (%p256) target = $region44
      $region43: #{mlp_forward.5} parent=39 // pred_region
        %s259 = smul.u32 8, %s15
        %p260 = scmp.lt.s32.totalorder %s259, 31
        %s261 = scalar_select %p260, %s259, 31
        %s262 = smul.addr %s261, 2
        %s263 = smul.addr %s262, 4
        %s264 = scalar_lea.vmem %s0, %s263
        %s265 = smul.u32 8, %s15
      $region44: #{mlp_forward.5} parent=39 // pred_fallthru
        _
    $region40: #{mlp_forward.5} parent=5 // pred_fallthru
      _
    %p266 = scmp.le.s32.totalorder 1, %s15
    %p267 = scmp.lt.s32.totalorder %s15, 5
    %p268 = pnand %p266, %p267
    %p269 = pneg %p268
    // Predicated region
    $region45: #{mlp_forward.5} parent=5 // pred_check
      _
    $region46: #{mlp_forward.5} parent=5 // pred_check_branch
      %271 = sbr.rel (%p268) target = $region48
    $region47: #{mlp_forward.5} parent=5 // pred_region
      %s272 = ssub.s32 %s15, 1
      %s273 = smul.u32 8, %s20
      %p274 = scmp.lt.s32.totalorder %s273, 31
      %s275 = scalar_select %p274, %s273, 31
      %s276 = smul.addr %s275, 2
      %s277 = smul.addr %s276, 4
      %s278 = scalar_lea.vmem %s0, %s277
      %p279 = pneg %p41
      %p280 = pneg %p38
      %p281 = pneg %p62
      %p282 = pneg %p59
      %p283 = pneg %p83
      %p284 = pneg %p80
      %p285 = pneg %p104
      %p286 = pneg %p101
      %p287 = pneg %p125
      %p288 = pneg %p122
      %p289 = pneg %p146
      %p290 = pneg %p143
      %p291 = pneg %p167
      %p292 = pneg %p164
      %p293 = pneg %p193
      %p294 = pneg %p190
      %s295 = smul.u32 8, %s20
      %p296 = scmp.lt.s32.totalorder %s295, 31
      %s297 = scalar_select %p296, %s295, 31
      %s298 = smul.addr %s297, 8
      %s299 = scalar_lea.vmem %s7, %s298
      %p300 = pneg %p219
      %p301 = pneg %p216
      %s302 = smul.u32 8, %s20
      %p303 = scmp.lt.s32.totalorder %s302, 31
      %s304 = scalar_select %p303, %s302, 31
      %s305 = smul.addr %s304, 4
      %s306 = scalar_lea.vmem %s8, %s305
      %s307 = smul.u32 8, %s20
      %p308 = scmp.lt.s32.totalorder %s307, 31
      %s309 = scalar_select %p308, %s307, 31
      %s310 = smul.addr %s309, 2
      %s311 = smul.addr %s310, 4
      %s312 = scalar_lea.vmem %s0, %s311
      %s313 = smul.u32 8, %s20
      %s314 = smul.u32 8, %s20
      %p315 = scmp.lt.s32.totalorder %s314, 31
      %s316 = scalar_select %p315, %s314, 31
      %s317 = smul.addr %s316, 8
      %s318 = scalar_lea.vmem %s7, %s317
      %s319 = smul.u32 8, %s20
      %s320 = smul.u32 8, %s20
      %p321 = scmp.lt.s32.totalorder %s320, 31
      %s322 = scalar_select %p321, %s320, 31
      %s323 = smul.addr %s322, 4
      %s324 = scalar_lea.vmem %s8, %s323
      %s325 = smul.u32 8, %s20
      %v326 = vld [vmem:[%s3] sm:$0x3]
      %v327 = vld [vmem:[%s3 + $0x2] sm:$0x3]
      %v330 = vperm.slane %v326, 0
      %v331 = vperm.slane %v326, 1
      %v332 = vperm.slane %v327, 0
      %v333 = vperm.slane %v327, 1
      %vm338 = vcmask 1040384
      %v339 = vsel %vm338, %v330, 0.0
      %v340 = vsel %vm338, %v332, 0.0
      %v341 = vadd.f32 %v339, %v340
      %v342 = vsel %vm338, %v331, 0.0
      %v343 = vsel %vm338, %v333, 0.0
      %v344 = vadd.f32 %v342, %v343
      %v345 = vld [vmem:[%s4] sm:$0x3]
      %v346 = vld [vmem:[%s4 + $0x2] sm:$0x3]
      %v349 = vperm.slane %v345, 0
      %v350 = vperm.slane %v345, 1
      %v351 = vperm.slane %v346, 0
      %v352 = vperm.slane %v346, 1
      %v357 = vsel %vm338, %v349, 0.0
      %v358 = vsel %vm338, %v351, 0.0
      %v359 = vadd.f32 %v357, %v358
      %v360 = vsel %vm338, %v350, 0.0
      %v361 = vsel %vm338, %v352, 0.0
      %v362 = vadd.f32 %v360, %v361
      %v363 = vmul.f32 %v341, 0.005
      %v364 = vmul.f32 %v344, 0.005
      %v365 = vmul.f32 %v359, 0.005
      %v366 = vmul.f32 %v362, 0.005
      %v367 = vmul.f32 %v363, %v363
      %v368 = vmul.f32 %v364, %v364
      %v369 = vsub.f32 %v365, %v367
      %v370 = vsub.f32 %v366, %v368
      %v371 = vmax.f32 %v369, 0.0
      %v372 = vmax.f32 %v370, 0.0
      %v373 = vld [vmem:[%s5] sm:$0x3]
      %v374 = vadd.f32 %v371, 1e-05
      %v375 = vadd.f32 %v372, 1e-05
      %v376 = vrsqrt.pop %v374
      %v377 = vmul.f32 %v376, %v374
      %v378 = vmul.f32 %v377, %v376
      %v379 = vmul.f32 0.5, %v378
      %v380 = vsub.f32 1.5, %v379
      %v381 = vmul.f32 %v376, %v380
      %vm382 = vweird.f32 %v374
      %vm383 = vweird.f32 %v376
      %vm384 = vmor %vm382, %vm383
      %v385 = vsel %vm384, %v376, %v381
      %v386 = vrsqrt.pop %v375
      %v387 = vmul.f32 %v386, %v375
      %v388 = vmul.f32 %v387, %v386
      %v389 = vmul.f32 0.5, %v388
      %v390 = vsub.f32 1.5, %v389
      %v391 = vmul.f32 %v386, %v390
      %vm392 = vweird.f32 %v375
      %vm393 = vweird.f32 %v386
      %vm394 = vmor %vm392, %vm393
      %v395 = vsel %vm394, %v386, %v391
      %v398 = vrot.slane %v395, 7
      %v399 = vsel %vm338, %v385, %v398
      %v401 = vmul.f32 %v373, %v399
      %v402 = vld [vmem:[%s6] sm:$0x3]
      %v404 = vperm.slane %v401, 0
      %v405 = vperm.slane %v401, 1
      %v408 = vmul.f32 %v363, %v404
      %v409 = vmul.f32 %v364, %v405
      %v412 = vrot.slane %v409, 7
      %v413 = vsel %vm338, %v408, %v412
      %v415 = vsub.f32 %v402, %v413
      %v416 = vld [vmem:[%s312] sm:$0xff]
      %v417 = vld [vmem:[%s312 + $0x8] sm:$0xff]
      %v418 = vld [vmem:[%s312 + $0x10] sm:$0xff]
      %v419 = vld [vmem:[%s312 + $0x18] sm:$0xff]
      %v420 = vld [vmem:[%s312 + $0x20] sm:$0xff]
      %v421 = vld [vmem:[%s312 + $0x28] sm:$0xff]
      %v422 = vld [vmem:[%s312 + $0x30] sm:$0xff]
      %v423 = vld [vmem:[%s312 + $0x38] sm:$0xff]
      %v424 = vunpack.c.l.bf16 %v416
      %v425 = vunpack.c.h.bf16 %v416
      %v426 = vunpack.c.l.bf16 %v417
      %v427 = vunpack.c.h.bf16 %v417
      %v428 = vunpack.c.l.bf16 %v418
      %v429 = vunpack.c.h.bf16 %v418
      %v430 = vunpack.c.l.bf16 %v419
      %v431 = vunpack.c.h.bf16 %v419
      %v432 = vunpack.c.l.bf16 %v420
      %v433 = vunpack.c.h.bf16 %v420
      %v434 = vunpack.c.l.bf16 %v421
      %v435 = vunpack.c.h.bf16 %v421
      %v436 = vunpack.c.l.bf16 %v422
      %v437 = vunpack.c.h.bf16 %v422
      %v438 = vunpack.c.l.bf16 %v423
      %v439 = vunpack.c.h.bf16 %v423
      %v440 = vmul.f32 %v424, %v404
      %v441 = vmul.f32 %v425, %v405
      %v442 = vmul.f32 %v426, %v404
      %v443 = vmul.f32 %v427, %v405
      %v444 = vmul.f32 %v428, %v404
      %v445 = vmul.f32 %v429, %v405
      %v446 = vmul.f32 %v430, %v404
      %v447 = vmul.f32 %v431, %v405
      %v448 = vmul.f32 %v432, %v404
      %v449 = vmul.f32 %v433, %v405
      %v450 = vmul.f32 %v434, %v404
      %v451 = vmul.f32 %v435, %v405
      %v452 = vmul.f32 %v436, %v404
      %v453 = vmul.f32 %v437, %v405
      %v454 = vmul.f32 %v438, %v404
      %v455 = vmul.f32 %v439, %v405
      %v457 = vperm.slane %v415, 0
      %v458 = vperm.slane %v415, 1
      %v461 = vadd.f32 %v440, %v457
      %v462 = vadd.f32 %v441, %v458
      %v463 = vadd.f32 %v442, %v457
      %v464 = vadd.f32 %v443, %v458
      %v465 = vadd.f32 %v444, %v457
      %v466 = vadd.f32 %v445, %v458
      %v467 = vadd.f32 %v446, %v457
      %v468 = vadd.f32 %v447, %v458
      %v469 = vadd.f32 %v448, %v457
      %v470 = vadd.f32 %v449, %v458
      %v471 = vadd.f32 %v450, %v457
      %v472 = vadd.f32 %v451, %v458
      %v473 = vadd.f32 %v452, %v457
      %v474 = vadd.f32 %v453, %v458
      %v475 = vadd.f32 %v454, %v457
      %v476 = vadd.f32 %v455, %v458
      %v477 = vmax.f32 %v461, 0.0
      %v478 = vmax.f32 %v462, 0.0
      %v479 = vmax.f32 %v463, 0.0
      %v480 = vmax.f32 %v464, 0.0
      %v481 = vmax.f32 %v465, 0.0
      %v482 = vmax.f32 %v466, 0.0
      %v483 = vmax.f32 %v467, 0.0
      %v484 = vmax.f32 %v468, 0.0
      %v485 = vmax.f32 %v469, 0.0
      %v486 = vmax.f32 %v470, 0.0
      %v487 = vmax.f32 %v471, 0.0
      %v488 = vmax.f32 %v472, 0.0
      %v489 = vmax.f32 %v473, 0.0
      %v490 = vmax.f32 %v474, 0.0
      %v491 = vmax.f32 %v475, 0.0
      %v492 = vmax.f32 %v476, 0.0
      %v493 = vpack.c.bf16 %v479, %v477
      %v494 = vpack.c.bf16 %v480, %v478
      %v495 = vpack.c.bf16 %v483, %v481
      %v496 = vpack.c.bf16 %v484, %v482
      %v497 = vpack.c.bf16 %v487, %v485
      %v498 = vpack.c.bf16 %v488, %v486
      %v499 = vpack.c.bf16 %v491, %v489
      %v500 = vpack.c.bf16 %v492, %v490
      %v501 = vld [vmem:[%s1] sm:$0xf]
      %v502 = vld [vmem:[%s1 + $0x4] sm:$0xf]
      %v503 = vld [vmem:[%s1 + $0x8] sm:$0xf]
      %v504 = vld [vmem:[%s1 + $0xc] sm:$0xf]
      %v505 = vld [vmem:[%s1 + $0x10] sm:$0xf]
      %v506 = vld [vmem:[%s1 + $0x14] sm:$0xf]
      %v507 = vld [vmem:[%s1 + $0x18] sm:$0xf]
      %v508 = vld [vmem:[%s1 + $0x1c] sm:$0xf]
      %v509 = vld [vmem:[%s1 + $0x20] sm:$0xf]
      %v510 = vld [vmem:[%s1 + $0x24] sm:$0xf]
      %v511 = vld [vmem:[%s1 + $0x28] sm:$0xf]
      %v512 = vld [vmem:[%s1 + $0x2c] sm:$0xf]
      %v513 = vld [vmem:[%s1 + $0x30] sm:$0xf]
      %v514 = vld [vmem:[%s1 + $0x34] sm:$0xf]
      %v515 = vld [vmem:[%s1 + $0x38] sm:$0xf]
      %v516 = vld [vmem:[%s1 + $0x3c] sm:$0xf]
      %v517 = vld [vmem:[%s1 + $0x40] sm:$0xf]
      %v518 = vld [vmem:[%s1 + $0x44] sm:$0xf]
      %v519 = vld [vmem:[%s1 + $0x48] sm:$0xf]
      %v520 = vld [vmem:[%s1 + $0x4c] sm:$0xf]
      %v521 = vld [vmem:[%s1 + $0x50] sm:$0xf]
      %v522 = vld [vmem:[%s1 + $0x54] sm:$0xf]
      %v523 = vld [vmem:[%s1 + $0x58] sm:$0xf]
      %v524 = vld [vmem:[%s1 + $0x5c] sm:$0xf]
      %v525 = vld [vmem:[%s1 + $0x60] sm:$0xf]
      %v526 = vld [vmem:[%s1 + $0x64] sm:$0xf]
      %v527 = vld [vmem:[%s1 + $0x68] sm:$0xf]
      %v528 = vld [vmem:[%s1 + $0x6c] sm:$0xf]
      %v529 = vld [vmem:[%s1 + $0x70] sm:$0xf]
      %v530 = vld [vmem:[%s1 + $0x74] sm:$0xf]
      %v531 = vld [vmem:[%s1 + $0x78] sm:$0xf]
      %v532 = vld [vmem:[%s1 + $0x7c] sm:$0xf]
      %v533 = vld [vmem:[%s2] sm:$0x1]
      %v535 = vperm.slane %v533, 0
      %v569 = vunpack.c.l.b16 %v501
      %v570 = vunpack.c.l.b16 %v502
      %v571 = vunpack.c.l.b16 %v503
      %v572 = vunpack.c.l.b16 %v504
      %v573 = vunpack.c.l.b16 %v505
      %v574 = vunpack.c.l.b16 %v506
      %v575 = vunpack.c.l.b16 %v507
      %v576 = vunpack.c.l.b16 %v508
      %v577 = vunpack.c.l.b16 %v509
      %v578 = vunpack.c.l.b16 %v510
      %v579 = vunpack.c.l.b16 %v511
      %v580 = vunpack.c.l.b16 %v512
      %v581 = vunpack.c.l.b16 %v513
      %v582 = vunpack.c.l.b16 %v514
      %v583 = vunpack.c.l.b16 %v515
      %v584 = vunpack.c.l.b16 %v516
      %v585 = vunpack.c.l.b16 %v517
      %v586 = vunpack.c.l.b16 %v518
      %v587 = vunpack.c.l.b16 %v519
      %v588 = vunpack.c.l.b16 %v520
      %v589 = vunpack.c.l.b16 %v521
      %v590 = vunpack.c.l.b16 %v522
      %v591 = vunpack.c.l.b16 %v523
      %v592 = vunpack.c.l.b16 %v524
      %v593 = vunpack.c.l.b16 %v525
      %v594 = vunpack.c.l.b16 %v526
      %v595 = vunpack.c.l.b16 %v527
      %v596 = vunpack.c.l.b16 %v528
      %v597 = vunpack.c.l.b16 %v529
      %v598 = vunpack.c.l.b16 %v530
      %v599 = vunpack.c.l.b16 %v531
      %v600 = vunpack.c.l.b16 %v532
      %v601 = vpack.c.b16 %v570, %v569
      %v602 = vpack.c.b16 %v572, %v571
      %v603 = vpack.c.b16 %v574, %v573
      %v604 = vpack.c.b16 %v576, %v575
      %v605 = vpack.c.b16 %v578, %v577
      %v606 = vpack.c.b16 %v580, %v579
      %v607 = vpack.c.b16 %v582, %v581
      %v608 = vpack.c.b16 %v584, %v583
      %v609 = vpack.c.b16 %v586, %v585
      %v610 = vpack.c.b16 %v588, %v587
      %v611 = vpack.c.b16 %v590, %v589
      %v612 = vpack.c.b16 %v592, %v591
      %v613 = vpack.c.b16 %v594, %v593
      %v614 = vpack.c.b16 %v596, %v595
      %v615 = vpack.c.b16 %v598, %v597
      %v616 = vpack.c.b16 %v600, %v599
      %633 = vmatpush.bf16.msra.mxu0 %v608
      %634 = vmatpush.bf16.msra.mxu0 %v607
      %635 = vmatpush.bf16.msra.mxu0 %v606
      %636 = vmatpush.bf16.msra.mxu0 %v605
      %637 = vmatpush.bf16.msra.mxu0 %v604
      %638 = vmatpush.bf16.msra.mxu0 %v603
      %639 = vmatpush.bf16.msra.mxu0 %v602
      %640 = vmatpush.bf16.msra.mxu0 %v601
      %641 = vmatmul.bf16.gmra.mxu0 %v493
      %v642 = vpop.f32.mrf.mxu0
      %v643 = vadd.f32 %v535, %v642
      %v644 = vpop.f32.mrf.mxu0
      %v645 = vadd.f32 %v535, %v644
      %646 = vmatmul.bf16.gmra.mxu0 %v495
      %v647 = vpop.f32.mrf.mxu0
      %v648 = vadd.f32 %v535, %v647
      %v649 = vpop.f32.mrf.mxu0
      %v650 = vadd.f32 %v535, %v649
      %651 = vmatmul.bf16.gmra.mxu0 %v497
      %v652 = vpop.f32.mrf.mxu0
      %v653 = vadd.f32 %v535, %v652
      %v654 = vpop.f32.mrf.mxu0
      %v655 = vadd.f32 %v535, %v654
      %656 = vmatmul.bf16.gmra.mxu0 %v499
      %v657 = vpop.f32.mrf.mxu0
      %v658 = vadd.f32 %v535, %v657
      %v659 = vpop.f32.mrf.mxu0
      %v660 = vadd.f32 %v535, %v659
      %661 = vdwg.mxu0
      %662 = vmatpush.bf16.msra.mxu0 %v616
      %663 = vmatpush.bf16.msra.mxu0 %v615
      %664 = vmatpush.bf16.msra.mxu0 %v614
      %665 = vmatpush.bf16.msra.mxu0 %v613
      %666 = vmatpush.bf16.msra.mxu0 %v612
      %667 = vmatpush.bf16.msra.mxu0 %v611
      %668 = vmatpush.bf16.msra.mxu0 %v610
      %669 = vmatpush.bf16.msra.mxu0 %v609
      %670 = vmatmul.bf16.gmra.mxu0 %v494
      %v671 = vpop.f32.mrf.mxu0
      %v672 = vadd.f32 %v643, %v671
      %v673 = vpop.f32.mrf.mxu0
      %v674 = vadd.f32 %v645, %v673
      %675 = vmatmul.bf16.gmra.mxu0 %v496
      %v676 = vpop.f32.mrf.mxu0
      %v677 = vadd.f32 %v648, %v676
      %v678 = vpop.f32.mrf.mxu0
      %v679 = vadd.f32 %v650, %v678
      %680 = vmatmul.bf16.gmra.mxu0 %v498
      %v681 = vpop.f32.mrf.mxu0
      %v682 = vadd.f32 %v653, %v681
      %v683 = vpop.f32.mrf.mxu0
      %v684 = vadd.f32 %v655, %v683
      %685 = vmatmul.bf16.gmra.mxu0 %v500
      %v686 = vpop.f32.mrf.mxu0
      %v687 = vadd.f32 %v658, %v686
      %v688 = vpop.f32.mrf.mxu0
      %v689 = vadd.f32 %v660, %v688
      %690 = vdwg.mxu0
      %691 = vst [vmem:[%s318] sm:$0xff] %v672
      %692 = vst [vmem:[%s318 + $0x8] sm:$0xff] %v674
      %693 = vst [vmem:[%s318 + $0x10] sm:$0xff] %v677
      %694 = vst [vmem:[%s318 + $0x18] sm:$0xff] %v679
      %695 = vst [vmem:[%s318 + $0x20] sm:$0xff] %v682
      %696 = vst [vmem:[%s318 + $0x28] sm:$0xff] %v684
      %697 = vst [vmem:[%s318 + $0x30] sm:$0xff] %v687
      %698 = vst [vmem:[%s318 + $0x38] sm:$0xff] %v689
      %699 = vmax.xlane.f32.xlu0 %v672
      %v700 = vpop.xlane.xlu0 %699
      %701 = vmax.xlane.f32.xlu0 %v674
      %v702 = vpop.xlane.xlu0 %701
      %703 = vmax.xlane.f32.xlu0 %v677
      %v704 = vpop.xlane.xlu0 %703
      %705 = vmax.xlane.f32.xlu0 %v679
      %v706 = vpop.xlane.xlu0 %705
      %707 = vmax.xlane.f32.xlu0 %v682
      %v708 = vpop.xlane.xlu0 %707
      %709 = vmax.xlane.f32.xlu0 %v684
      %v710 = vpop.xlane.xlu0 %709
      %711 = vmax.xlane.f32.xlu0 %v687
      %v712 = vpop.xlane.xlu0 %711
      %713 = vmax.xlane.f32.xlu0 %v689
      %v714 = vpop.xlane.xlu0 %713
      %v715 = vsub.f32 %v672, %v700
      %v716 = vsub.f32 %v674, %v702
      %v717 = vsub.f32 %v677, %v704
      %v718 = vsub.f32 %v679, %v706
      %v719 = vsub.f32 %v682, %v708
      %v720 = vsub.f32 %v684, %v710
      %v721 = vsub.f32 %v687, %v712
      %v722 = vsub.f32 %v689, %v714
      %v723 = vmul.f32 %v715, 1.442695
      %v724 = vpow.pop %v723
      %v725 = vmul.f32 %v716, 1.442695
      %v726 = vpow.pop %v725
      %v727 = vmul.f32 %v717, 1.442695
      %v728 = vpow.pop %v727
      %v729 = vmul.f32 %v718, 1.442695
      %v730 = vpow.pop %v729
      %v731 = vmul.f32 %v719, 1.442695
      %v732 = vpow.pop %v731
      %v733 = vmul.f32 %v720, 1.442695
      %v734 = vpow.pop %v733
      %v735 = vmul.f32 %v721, 1.442695
      %v736 = vpow.pop %v735
      %v737 = vmul.f32 %v722, 1.442695
      %v738 = vpow.pop %v737
      %739 = vadd.xlane.f32.xlu0 %v724
      %v740 = vpop.xlane.xlu0 %739
      %741 = vadd.xlane.f32.xlu0 %v726
      %v742 = vpop.xlane.xlu0 %741
      %743 = vadd.xlane.f32.xlu0 %v728
      %v744 = vpop.xlane.xlu0 %743
      %745 = vadd.xlane.f32.xlu0 %v730
      %v746 = vpop.xlane.xlu0 %745
      %747 = vadd.xlane.f32.xlu0 %v732
      %v748 = vpop.xlane.xlu0 %747
      %749 = vadd.xlane.f32.xlu0 %v734
      %v750 = vpop.xlane.xlu0 %749
      %751 = vadd.xlane.f32.xlu0 %v736
      %v752 = vpop.xlane.xlu0 %751
      %753 = vadd.xlane.f32.xlu0 %v738
      %v754 = vpop.xlane.xlu0 %753
      %v755 = vrcp.pop %v740
      %v756 = vmul.f32 %v740, %v755
      %v757 = vsub.f32 1.0, %v756
      %v758 = vmul.f32 %v755, %v757
      %v759 = vadd.f32 %v755, %v758
      %vm760 = vweird.f32 %v740
      %vm761 = vweird.f32 %v755
      %vm762 = vmor %vm760, %vm761
      %v763 = vsel %vm762, %v755, %v759
      %v764 = vand.u32 2147483647, %v740
      %vm765 = vcmp.eq.f32.partialorder %v764, 8.507059e+37
      %v766 = vand.u32 %v740, 2147483648
      %v767 = vor.u32 1.1754944e-38, %v766
      %v768 = vsel %vm765, %v767, %v763
      %v769 = vrcp.pop %v742
      %v770 = vmul.f32 %v742, %v769
      %v771 = vsub.f32 1.0, %v770
      %v772 = vmul.f32 %v769, %v771
      %v773 = vadd.f32 %v769, %v772
      %vm774 = vweird.f32 %v742
      %vm775 = vweird.f32 %v769
      %vm776 = vmor %vm774, %vm775
      %v777 = vsel %vm776, %v769, %v773
      %v778 = vand.u32 2147483647, %v742
      %vm779 = vcmp.eq.f32.partialorder %v778, 8.507059e+37
      %v780 = vand.u32 %v742, 2147483648
      %v781 = vor.u32 1.1754944e-38, %v780
      %v782 = vsel %vm779, %v781, %v777
      %v783 = vrcp.pop %v744
      %v784 = vmul.f32 %v744, %v783
      %v785 = vsub.f32 1.0, %v784
      %v786 = vmul.f32 %v783, %v785
      %v787 = vadd.f32 %v783, %v786
      %vm788 = vweird.f32 %v744
      %vm789 = vweird.f32 %v783
      %vm790 = vmor %vm788, %vm789
      %v791 = vsel %vm790, %v783, %v787
      %v792 = vand.u32 2147483647, %v744
      %vm793 = vcmp.eq.f32.partialorder %v792, 8.507059e+37
      %v794 = vand.u32 %v744, 2147483648
      %v795 = vor.u32 1.1754944e-38, %v794
      %v796 = vsel %vm793, %v795, %v791
      %v797 = vrcp.pop %v746
      %v798 = vmul.f32 %v746, %v797
      %v799 = vsub.f32 1.0, %v798
      %v800 = vmul.f32 %v797, %v799
      %v801 = vadd.f32 %v797, %v800
      %vm802 = vweird.f32 %v746
      %vm803 = vweird.f32 %v797
      %vm804 = vmor %vm802, %vm803
      %v805 = vsel %vm804, %v797, %v801
      %v806 = vand.u32 2147483647, %v746
      %vm807 = vcmp.eq.f32.partialorder %v806, 8.507059e+37
      %v808 = vand.u32 %v746, 2147483648
      %v809 = vor.u32 1.1754944e-38, %v808
      %v810 = vsel %vm807, %v809, %v805
      %v811 = vrcp.pop %v748
      %v812 = vmul.f32 %v748, %v811
      %v813 = vsub.f32 1.0, %v812
      %v814 = vmul.f32 %v811, %v813
      %v815 = vadd.f32 %v811, %v814
      %vm816 = vweird.f32 %v748
      %vm817 = vweird.f32 %v811
      %vm818 = vmor %vm816, %vm817
      %v819 = vsel %vm818, %v811, %v815
      %v820 = vand.u32 2147483647, %v748
      %vm821 = vcmp.eq.f32.partialorder %v820, 8.507059e+37
      %v822 = vand.u32 %v748, 2147483648
      %v823 = vor.u32 1.1754944e-38, %v822
      %v824 = vsel %vm821, %v823, %v819
      %v825 = vrcp.pop %v750
      %v826 = vmul.f32 %v750, %v825
      %v827 = vsub.f32 1.0, %v826
      %v828 = vmul.f32 %v825, %v827
      %v829 = vadd.f32 %v825, %v828
      %vm830 = vweird.f32 %v750
      %vm831 = vweird.f32 %v825
      %vm832 = vmor %vm830, %vm831
      %v833 = vsel %vm832, %v825, %v829
      %v834 = vand.u32 2147483647, %v750
      %vm835 = vcmp.eq.f32.partialorder %v834, 8.507059e+37
      %v836 = vand.u32 %v750, 2147483648
      %v837 = vor.u32 1.1754944e-38, %v836
      %v838 = vsel %vm835, %v837, %v833
      %v839 = vrcp.pop %v752
      %v840 = vmul.f32 %v752, %v839
      %v841 = vsub.f32 1.0, %v840
      %v842 = vmul.f32 %v839, %v841
      %v843 = vadd.f32 %v839, %v842
      %vm844 = vweird.f32 %v752
      %vm845 = vweird.f32 %v839
      %vm846 = vmor %vm844, %vm845
      %v847 = vsel %vm846, %v839, %v843
      %v848 = vand.u32 2147483647, %v752
      %vm849 = vcmp.eq.f32.partialorder %v848, 8.507059e+37
      %v850 = vand.u32 %v752, 2147483648
      %v851 = vor.u32 1.1754944e-38, %v850
      %v852 = vsel %vm849, %v851, %v847
      %v853 = vrcp.pop %v754
      %v854 = vmul.f32 %v754, %v853
      %v855 = vsub.f32 1.0, %v854
      %v856 = vmul.f32 %v853, %v855
      %v857 = vadd.f32 %v853, %v856
      %vm858 = vweird.f32 %v754
      %vm859 = vweird.f32 %v853
      %vm860 = vmor %vm858, %vm859
      %v861 = vsel %vm860, %v853, %v857
      %v862 = vand.u32 2147483647, %v754
      %vm863 = vcmp.eq.f32.partialorder %v862, 8.507059e+37
      %v864 = vand.u32 %v754, 2147483648
      %v865 = vor.u32 1.1754944e-38, %v864
      %v866 = vsel %vm863, %v865, %v861
      %v867 = vmul.f32 %v724, %v768
      %v868 = vmul.f32 %v726, %v782
      %v869 = vmul.f32 %v728, %v796
      %v870 = vmul.f32 %v730, %v810
      %v871 = vmul.f32 %v732, %v824
      %v872 = vmul.f32 %v734, %v838
      %v873 = vmul.f32 %v736, %v852
      %v874 = vmul.f32 %v738, %v866
      %v875 = vpack.c.bf16 %v867, %v867
      %v876 = vpack.c.bf16 %v868, %v868
      %v877 = vpack.c.bf16 %v869, %v869
      %v878 = vpack.c.bf16 %v870, %v870
      %v879 = vpack.c.bf16 %v871, %v871
      %v880 = vpack.c.bf16 %v872, %v872
      %v881 = vpack.c.bf16 %v873, %v873
      %v882 = vpack.c.bf16 %v874, %v874
      %883 = vst [vmem:[%s324] sm:$0xf] %v875
      %884 = vst [vmem:[%s324 + $0x4] sm:$0xf] %v876
      %885 = vst [vmem:[%s324 + $0x8] sm:$0xf] %v877
      %886 = vst [vmem:[%s324 + $0xc] sm:$0xf] %v878
      %887 = vst [vmem:[%s324 + $0x10] sm:$0xf] %v879
      %888 = vst [vmem:[%s324 + $0x14] sm:$0xf] %v880
      %889 = vst [vmem:[%s324 + $0x18] sm:$0xf] %v881
      %890 = vst [vmem:[%s324 + $0x1c] sm:$0xf] %v882
      %s891 = smul.u32 8, %s20
      %p892 = scmp.lt.s32.totalorder %s891, 31
      %s893 = scalar_select %p892, %s891, 31
      %s894 = smul.addr %s893, 8
      %s895 = scalar_lea.vmem %s7, %s894
      %s896 = smul.u32 8, %s20
      %p897 = scmp.lt.s32.totalorder %s896, 31
      %s898 = scalar_select %p897, %s896, 31
      %s899 = smul.addr %s898, 4
      %s900 = scalar_lea.vmem %s8, %s899
      // Predicated region
      $region49: #{mlp_forward.5} parent=47 // pred_check
        %p901 = pneg %p190
      $region50: #{mlp_forward.5} parent=47 // pred_check_branch
        %903 = sbr.rel (%p901) target = $region52
      $region51: #{mlp_forward.5} parent=47 // pred_region
        %s904 = smul.u32 8, %s20
      $region52: #{mlp_forward.5} parent=47 // pred_fallthru
        _
      // Predicated region
      $region53: #{mlp_forward.5} parent=47 // pred_check
        %p905 = pneg %p216
      $region54: #{mlp_forward.5} parent=47 // pred_check_branch
        %907 = sbr.rel (%p905) target = $region56
      $region55: #{mlp_forward.5} parent=47 // pred_region
        %s908 = smul.u32 8, %s20
      $region56: #{mlp_forward.5} parent=47 // pred_fallthru
        _
    $region48: #{mlp_forward.5} parent=5 // pred_fallthru
      _
    %p909 = scmp.le.s32.totalorder 2, %s15
    // Predicated region
    $region57: #{mlp_forward.5} parent=5 // pred_check
      %p910 = pneg %p909
    $region58: #{mlp_forward.5} parent=5 // pred_check_branch
      %912 = sbr.rel (%p910) target = $region60
    $region59: #{mlp_forward.5} parent=5 // pred_region
      %s913 = ssub.s32 %s15, 2
      // Predicated region
      $region61: #{mlp_forward.5} parent=59 // pred_check
        %p914 = pneg %p196
      $region62: #{mlp_forward.5} parent=59 // pred_check_branch
        %916 = sbr.rel (%p914) target = $region64
      $region63: #{mlp_forward.5} parent=59 // pred_region
        %s917 = smul.u32 8, %s21
        %p918 = scmp.lt.s32.totalorder %s917, 31
        %s919 = scalar_select %p918, %s917, 31
        %s920 = smul.addr %s919, 8
        %s921 = scalar_lea.vmem %s7, %s920
      $region64: #{mlp_forward.5} parent=59 // pred_fallthru
        _
      // Predicated region
      $region65: #{mlp_forward.5} parent=59 // pred_check
        %p922 = pneg %p222
      $region66: #{mlp_forward.5} parent=59 // pred_check_branch
        %924 = sbr.rel (%p922) target = $region68
      $region67: #{mlp_forward.5} parent=59 // pred_region
        %s925 = smul.u32 8, %s21
        %p926 = scmp.lt.s32.totalorder %s925, 31
        %s927 = scalar_select %p926, %s925, 31
        %s928 = smul.addr %s927, 4
        %s929 = scalar_lea.vmem %s8, %s928
      $region68: #{mlp_forward.5} parent=59 // pred_fallthru
        _
    $region60: #{mlp_forward.5} parent=5 // pred_fallthru
      _
  $region6: #{mlp_forward.5} parent=0 // loop_footer
    %s19 = sadd.s32 1, %s15
  $region7: #{mlp_forward.5} parent=0 // loop_footer_branch
    %14 = sbr.rel target = $region3
  $region8: #{mlp_forward.5} parent=0 // loop_exit
    _

</llo_original>
